<compile_context>
chip_gen: v7x
topology: tpu7x:2x2x1
jax: 0.10.0
libtpu: 0.0.40
codegen_flags: <defaults>
</compile_context>

<pallas_src>
import jax
import jax.numpy as jnp
from jax.experimental import pallas as pl
from jax.experimental.pallas import tpu as pltpu

_VMEM = pl.BlockSpec(memory_space=pltpu.MemorySpace.VMEM)
_SMEM = pl.BlockSpec(memory_space=pltpu.MemorySpace.SMEM)


# ---------------------------------------------------------------------------
# In-kernel building blocks
# ---------------------------------------------------------------------------
def _encode(x_ref, cnt_ref, w_ref, with_mse):
    """Synthetic encoder: masked mean-pool over time + linear projection (bf16-at-the-dot)."""
    x = x_ref[...]                                                   # (N, T, F) f32
    cnt = cnt_ref[...]                                               # (N, 1, 1) f32 valid counts
    n, t, f = x.shape
    # Build the valid-frame mask in-kernel (no (N,T,1) mask DMA from the caller).
    t_idx = jax.lax.broadcasted_iota(jnp.int32, (n, t, 1), 1).astype(jnp.float32)
    m = (t_idx < cnt).astype(jnp.float32)                            # (N, T, 1)
    inv_cnt = pl.reciprocal(jnp.maximum(cnt, 1.0), approx=True)      # EUP, (N, 1, 1)
    wt = m * inv_cnt                                                 # fused mask/cnt weight
    xm = x * wt                                                      # (N, T, F)
    pooled = jnp.sum(xm, axis=1)                                     # (N, F) masked mean pool
    emb = jnp.dot(pooled.astype(jnp.bfloat16), w_ref[...].astype(jnp.bfloat16),
                  preferred_element_type=jnp.float32)                # (N, D), f32 acc
    if not with_mse:
        return emb, None
    sq = jnp.sum(x * xm, axis=1)                                     # (N, F) = sum_t x^2*m/cnt
    mse = jnp.mean(jnp.sum(sq, axis=-1, keepdims=True)) * (1.0 / f)  # scalar
    return emb, mse


def _mlp(x, w1_ref, g_ref, b_ref, w2_ref):
    """Linear(no bias) -> BatchNorm1d(training stats) -> ReLU -> Linear(no bias)."""
    h = jnp.dot(x.astype(jnp.bfloat16), w1_ref[...].astype(jnp.bfloat16),
                preferred_element_type=jnp.float32)                  # (N, H), f32 acc
    mean = jnp.mean(h, axis=0, keepdims=True)                        # (1, H)
    var = jnp.mean(jnp.square(h - mean), axis=0, keepdims=True)      # biased var (training BN)
    hn = (h - mean) * jax.lax.rsqrt(var + 1e-5)
    hn = jnp.maximum(hn * g_ref[...] + b_ref[...], 0.0)              # affine + ReLU (f32 VPU)
    return jnp.dot(hn.astype(jnp.bfloat16), w2_ref[...].astype(jnp.bfloat16),
                   preferred_element_type=jnp.float32)               # (N, Dout)


def _byol_fused_kernel(
        im_q_ref, cnt_q_ref, im_k_ref, cnt_k_ref,
        wq_ref, wk_ref,
        hq_w1, hq_g, hq_b, hq_w2,
        pq_w1, pq_g, pq_b, pq_w2,
        hk_w1, hk_g, hk_b, hk_w2,
        loss_byol_ref, loss_mse_ref):
    # query branch: encoder_q -> head_q -> predictor_q
    q, mse_q = _encode(im_q_ref, cnt_q_ref, wq_ref, with_mse=True)
    q = _mlp(q, hq_w1, hq_g, hq_b, hq_w2)
    q = _mlp(q, pq_w1, pq_g, pq_b, pq_w2)

    # momentum (key) branch: encoder_k -> head_k (weights already EMA-updated by the caller)
    k, _ = _encode(im_k_ref, cnt_k_ref, wk_ref, with_mse=False)
    k = _mlp(k, hk_w1, hk_g, hk_b, hk_w2)

    # byol_loss_func(simplified=True): 2 - 2 * mean_i cos(q_i, normalize(k)_i)
    zn = k * jax.lax.rsqrt(jnp.maximum(jnp.sum(k * k, axis=-1, keepdims=True), 1e-24))
    dot = jnp.sum(q * zn, axis=-1, keepdims=True)                    # (N, 1)
    pn = jnp.sqrt(jnp.sum(q * q, axis=-1, keepdims=True))            # (N, 1); ||zn|| == 1
    cos = dot * pl.reciprocal(jnp.maximum(pn, 1e-8), approx=True)    # cosine_similarity eps

    loss_byol_ref[0, 0] = 2.0 - 2.0 * jnp.mean(cos)
    loss_mse_ref[0, 0] = mse_q


# ---------------------------------------------------------------------------
# Wrappers
# ---------------------------------------------------------------------------
def _byol_fused_call(im_q, cnt_q, im_k, cnt_k, wq, wk, head_q, pred_q, head_k):
    loss_byol, loss_mse = pl.pallas_call(
        _byol_fused_kernel,
        out_shape=(jax.ShapeDtypeStruct((1, 1), jnp.float32),
                   jax.ShapeDtypeStruct((1, 1), jnp.float32)),
        in_specs=[_VMEM] * 18,
        out_specs=(_SMEM, _SMEM),
        compiler_params=pltpu.CompilerParams(vmem_limit_bytes=32 * 1024 * 1024),
    )(im_q, cnt_q, im_k, cnt_k, wq, wk,
      head_q["w1"], head_q["gamma"], head_q["beta"], head_q["w2"],
      pred_q["w1"], pred_q["gamma"], pred_q["beta"], pred_q["w2"],
      head_k["w1"], head_k["gamma"], head_k["beta"], head_k["w2"])
    return loss_byol[0, 0], loss_mse[0, 0]


@jax.jit
def _byol_step(params_q, params_k, im_q, len_q, im_k, len_k, m):
    """EMA momentum update + fully fused forward, all in one jitted graph."""
    ema = lambda pk, pq: pk * m + pq * (1.0 - m)
    new_k = jax.tree.map(ema, params_k,
                         {"enc": params_q["enc"], "head": params_q["head"]})
    cnt_q = len_q.astype(jnp.float32).reshape(-1, 1, 1)              # (N, 1, 1)
    cnt_k = len_k.astype(jnp.float32).reshape(-1, 1, 1)
    loss_byol, loss_mse = _byol_fused_call(
        im_q, cnt_q, im_k, cnt_k,
        params_q["enc"]["w"], new_k["enc"]["w"],
        params_q["head"], params_q["pred"], new_k["head"])
    return loss_byol, loss_mse, new_k


class ByolPallas:
    """Pallas re-implementation of the Byol module forward pass (single fused TPU kernel)."""

    def __init__(self, key, feat_dim=128, embed_dim=256, mlp_dim=512,
                 num_classes=256, m=0.999, T=0.07):
        # mlp_dim is scaled down from 4096 -> 512 for the small synthetic config.
        self.m = m
        self.T = T
        ks = jax.random.split(key, 5)

        def lin(k, din, dout):
            return jax.random.normal(k, (din, dout), jnp.float32) / jnp.sqrt(jnp.float32(din))

        def mlp(k1, k2, din, dmid, dout):
            return {"w1": lin(k1, din, dmid),
                    "gamma": jnp.ones((1, dmid), jnp.float32),
                    "beta": jnp.zeros((1, dmid), jnp.float32),
                    "w2": lin(k2, dmid, dout)}

        self.params_q = {
            "enc": {"w": lin(ks[0], feat_dim, embed_dim)},
            "head": mlp(ks[1], ks[2], embed_dim, mlp_dim, num_classes),
            "pred": mlp(ks[3], ks[4], num_classes, mlp_dim, num_classes),
        }
        # key branch initialized as a copy of the query branch (as in Byol.__init__)
        self.params_k = jax.tree.map(lambda a: a,
                                     {"enc": self.params_q["enc"],
                                      "head": self.params_q["head"]})

    def __call__(self, im_q, len_q, mask_q, im_k, len_k, mask_k):
        # masks are rebuilt in-kernel from the lengths (drop the degenerate (N,T,1) input).
        del mask_q, mask_k
        loss_byol, loss_mse, new_k = _byol_step(
            self.params_q, self.params_k, im_q, len_q, im_k, len_k, self.m)
        self.params_k = new_k
        # NOTE: original torch code returns an undefined `loss_mse`; we return encoder_q's mse.
        return loss_byol, loss_mse


# ---------------------------------------------------------------------------
if __name__ == "__main__":
    N, T, F = 8, 16, 128   # batch, time frames, feature dim

    key = jax.random.PRNGKey(0)
    k1, k2 = jax.random.split(key, 2)
    im_q = jax.random.normal(k1, (N, T, F), jnp.float32)
    im_k = jax.random.normal(k2, (N, T, F), jnp.float32)
    len_q = jnp.array([16, 12, 16, 9, 16, 14, 7, 16], jnp.int32)
    len_k = jnp.array([16, 16, 11, 16, 8, 16, 13, 10], jnp.int32)
    t_idx = jnp.arange(T)[None, :]
    mask_q = (t_idx < len_q[:, None]).astype(jnp.float32)[..., None]   # accepted for parity, unused
    mask_k = (t_idx < len_k[:, None]).astype(jnp.float32)[..., None]

    model = ByolPallas(jax.random.PRNGKey(42))
    loss_byol, loss_mse = model(im_q, len_q, mask_q, im_k, len_k, mask_k)
    jax.block_until_ready((loss_byol, loss_mse))
    print("KERNEL_OK")
</pallas_src>

<mosaic_0001>
module attributes {stable_mosaic.version = 11 : i64} {
  func.func @_byol_fused_kernel(%arg0: memref<8x16x128xf32, #tpu.memory_space<vmem>>, %arg1: memref<8x1x1xf32, #tpu.memory_space<vmem>>, %arg2: memref<8x16x128xf32, #tpu.memory_space<vmem>>, %arg3: memref<8x1x1xf32, #tpu.memory_space<vmem>>, %arg4: memref<128x256xf32, #tpu.memory_space<vmem>>, %arg5: memref<128x256xf32, #tpu.memory_space<vmem>>, %arg6: memref<256x512xf32, #tpu.memory_space<vmem>>, %arg7: memref<1x512xf32, #tpu.memory_space<vmem>>, %arg8: memref<1x512xf32, #tpu.memory_space<vmem>>, %arg9: memref<512x256xf32, #tpu.memory_space<vmem>>, %arg10: memref<256x512xf32, #tpu.memory_space<vmem>>, %arg11: memref<1x512xf32, #tpu.memory_space<vmem>>, %arg12: memref<1x512xf32, #tpu.memory_space<vmem>>, %arg13: memref<512x256xf32, #tpu.memory_space<vmem>>, %arg14: memref<256x512xf32, #tpu.memory_space<vmem>>, %arg15: memref<1x512xf32, #tpu.memory_space<vmem>>, %arg16: memref<1x512xf32, #tpu.memory_space<vmem>>, %arg17: memref<512x256xf32, #tpu.memory_space<vmem>>, %arg18: memref<1x1xf32, #tpu.memory_space<smem>>, %arg19: memref<1x1xf32, #tpu.memory_space<smem>>) attributes {dimension_semantics = [], scalar_prefetch = 0 : i64, scratch_operands = 0 : i64, tpu.core_type = #tpu.core_type<tc>} {
    %c0 = arith.constant 0 : index
    %c0_0 = arith.constant 0 : index
    %c0_1 = arith.constant 0 : index
    %0 = vector.load %arg0[%c0, %c0_0, %c0_1] : memref<8x16x128xf32, #tpu.memory_space<vmem>>, vector<8x16x128xf32>
    %c0_2 = arith.constant 0 : index
    %c0_3 = arith.constant 0 : index
    %c0_4 = arith.constant 0 : index
    %1 = vector.load %arg1[%c0_2, %c0_3, %c0_4] : memref<8x1x1xf32, #tpu.memory_space<vmem>>, vector<8x1x1xf32>
    %2 = tpu.iota {dimensions = array<i32: 1>} : vector<8x16x1xi32>
    %3 = arith.sitofp %2 : vector<8x16x1xi32> to vector<8x16x1xf32>
    %4 = vector.broadcast %1 : vector<8x1x1xf32> to vector<8x16x1xf32>
    %5 = arith.cmpf olt, %3, %4 : vector<8x16x1xf32>
    %6 = arith.extui %5 : vector<8x16x1xi1> to vector<8x16x1xi32>
    %7 = arith.sitofp %6 : vector<8x16x1xi32> to vector<8x16x1xf32>
    %cst = arith.constant 1.000000e+00 : f32
    %8 = vector.broadcast %cst : f32 to vector<8x1x1xf32>
    %9 = arith.maximumf %1, %8 : vector<8x1x1xf32>
    %10 = tpu.reciprocal %9 {approx = true} : vector<8x1x1xf32> -> vector<8x1x1xf32>
    %11 = vector.broadcast %10 : vector<8x1x1xf32> to vector<8x16x1xf32>
    %12 = arith.mulf %7, %11 : vector<8x16x1xf32>
    %13 = vector.broadcast %12 : vector<8x16x1xf32> to vector<8x16x128xf32>
    %14 = arith.mulf %0, %13 : vector<8x16x128xf32>
    %cst_5 = arith.constant dense<0.000000e+00> : vector<8x128xf32>
    %15 = vector.multi_reduction <add>, %14, %cst_5 [1] : vector<8x16x128xf32> to vector<8x128xf32>
    %16 = arith.truncf %15 : vector<8x128xf32> to vector<8x128xbf16>
    %c0_6 = arith.constant 0 : index
    %c0_7 = arith.constant 0 : index
    %17 = vector.load %arg4[%c0_6, %c0_7] : memref<128x256xf32, #tpu.memory_space<vmem>>, vector<128x256xf32>
    %18 = arith.truncf %17 : vector<128x256xf32> to vector<128x256xbf16>
    %cst_8 = arith.constant dense<0.000000e+00> : vector<8x256xf32>
    %19 = tpu.matmul %16, %18, %cst_8 {dimension_numbers = #tpu.dot_dimension_numbers<[1], [0], [0], [1], [0, 0, 1, 1], [], []>} : vector<8x128xbf16>, vector<128x256xbf16>, vector<8x256xf32> -> vector<8x256xf32>
    %20 = arith.mulf %0, %14 : vector<8x16x128xf32>
    %cst_9 = arith.constant dense<0.000000e+00> : vector<8x128xf32>
    %21 = vector.multi_reduction <add>, %20, %cst_9 [1] : vector<8x16x128xf32> to vector<8x128xf32>
    %cst_10 = arith.constant dense<0.000000e+00> : vector<8xf32>
    %22 = vector.multi_reduction <add>, %21, %cst_10 [1] : vector<8x128xf32> to vector<8xf32>
    %23 = vector.shape_cast %22 : vector<8xf32> to vector<8x1xf32>
    %24 = vector.shape_cast %23 : vector<8x1xf32> to vector<1x8x1xf32>
    %cst_11 = arith.constant dense<0.000000e+00> : vector<1xf32>
    %25 = vector.multi_reduction <add>, %24, %cst_11 [1, 2] : vector<1x8x1xf32> to vector<1xf32>
    %26 = vector.shape_cast %25 : vector<1xf32> to vector<1x1x1xf32>
    %27 = vector.extract %26[0, 0, 0] : f32 from vector<1x1x1xf32>
    %cst_12 = arith.constant 8.000000e+00 : f32
    %28 = arith.divf %27, %cst_12 : f32
    %cst_13 = arith.constant 7.812500e-03 : f32
    %29 = arith.mulf %28, %cst_13 : f32
    %30 = arith.truncf %19 : vector<8x256xf32> to vector<8x256xbf16>
    %c0_14 = arith.constant 0 : index
    %c0_15 = arith.constant 0 : index
    %31 = vector.load %arg6[%c0_14, %c0_15] : memref<256x512xf32, #tpu.memory_space<vmem>>, vector<256x512xf32>
    %32 = arith.truncf %31 : vector<256x512xf32> to vector<256x512xbf16>
    %cst_16 = arith.constant dense<0.000000e+00> : vector<8x512xf32>
    %33 = tpu.matmul %30, %32, %cst_16 {dimension_numbers = #tpu.dot_dimension_numbers<[1], [0], [0], [1], [0, 0, 1, 1], [], []>} : vector<8x256xbf16>, vector<256x512xbf16>, vector<8x512xf32> -> vector<8x512xf32>
    %cst_17 = arith.constant dense<0.000000e+00> : vector<512xf32>
    %34 = vector.multi_reduction <add>, %33, %cst_17 [0] : vector<8x512xf32> to vector<512xf32>
    %35 = vector.shape_cast %34 : vector<512xf32> to vector<1x512xf32>
    %cst_18 = arith.constant 8.000000e+00 : f32
    %36 = vector.broadcast %cst_18 : f32 to vector<1x512xf32>
    %37 = arith.divf %35, %36 : vector<1x512xf32>
    %38 = vector.broadcast %37 : vector<1x512xf32> to vector<8x512xf32>
    %39 = arith.subf %33, %38 : vector<8x512xf32>
    %40 = arith.mulf %39, %39 : vector<8x512xf32>
    %cst_19 = arith.constant dense<0.000000e+00> : vector<512xf32>
    %41 = vector.multi_reduction <add>, %40, %cst_19 [0] : vector<8x512xf32> to vector<512xf32>
    %42 = vector.shape_cast %41 : vector<512xf32> to vector<1x512xf32>
    %cst_20 = arith.constant 8.000000e+00 : f32
    %43 = vector.broadcast %cst_20 : f32 to vector<1x512xf32>
    %44 = arith.divf %42, %43 : vector<1x512xf32>
    %45 = vector.broadcast %37 : vector<1x512xf32> to vector<8x512xf32>
    %46 = arith.subf %33, %45 : vector<8x512xf32>
    %cst_21 = arith.constant 9.99999974E-6 : f32
    %47 = vector.broadcast %cst_21 : f32 to vector<1x512xf32>
    %48 = arith.addf %44, %47 : vector<1x512xf32>
    %49 = math.rsqrt %48 : vector<1x512xf32>
    %50 = vector.broadcast %49 : vector<1x512xf32> to vector<8x512xf32>
    %51 = arith.mulf %46, %50 : vector<8x512xf32>
    %c0_22 = arith.constant 0 : index
    %c0_23 = arith.constant 0 : index
    %52 = vector.load %arg7[%c0_22, %c0_23] : memref<1x512xf32, #tpu.memory_space<vmem>>, vector<1x512xf32>
    %53 = vector.broadcast %52 : vector<1x512xf32> to vector<8x512xf32>
    %54 = arith.mulf %51, %53 : vector<8x512xf32>
    %c0_24 = arith.constant 0 : index
    %c0_25 = arith.constant 0 : index
    %55 = vector.load %arg8[%c0_24, %c0_25] : memref<1x512xf32, #tpu.memory_space<vmem>>, vector<1x512xf32>
    %56 = vector.broadcast %55 : vector<1x512xf32> to vector<8x512xf32>
    %57 = arith.addf %54, %56 : vector<8x512xf32>
    %cst_26 = arith.constant 0.000000e+00 : f32
    %58 = vector.broadcast %cst_26 : f32 to vector<8x512xf32>
    %59 = arith.maximumf %57, %58 : vector<8x512xf32>
    %60 = arith.truncf %59 : vector<8x512xf32> to vector<8x512xbf16>
    %c0_27 = arith.constant 0 : index
    %c0_28 = arith.constant 0 : index
    %61 = vector.load %arg9[%c0_27, %c0_28] : memref<512x256xf32, #tpu.memory_space<vmem>>, vector<512x256xf32>
    %62 = arith.truncf %61 : vector<512x256xf32> to vector<512x256xbf16>
    %cst_29 = arith.constant dense<0.000000e+00> : vector<8x256xf32>
    %63 = tpu.matmul %60, %62, %cst_29 {dimension_numbers = #tpu.dot_dimension_numbers<[1], [0], [0], [1], [0, 0, 1, 1], [], []>} : vector<8x512xbf16>, vector<512x256xbf16>, vector<8x256xf32> -> vector<8x256xf32>
    %64 = arith.truncf %63 : vector<8x256xf32> to vector<8x256xbf16>
    %c0_30 = arith.constant 0 : index
    %c0_31 = arith.constant 0 : index
    %65 = vector.load %arg10[%c0_30, %c0_31] : memref<256x512xf32, #tpu.memory_space<vmem>>, vector<256x512xf32>
    %66 = arith.truncf %65 : vector<256x512xf32> to vector<256x512xbf16>
    %cst_32 = arith.constant dense<0.000000e+00> : vector<8x512xf32>
    %67 = tpu.matmul %64, %66, %cst_32 {dimension_numbers = #tpu.dot_dimension_numbers<[1], [0], [0], [1], [0, 0, 1, 1], [], []>} : vector<8x256xbf16>, vector<256x512xbf16>, vector<8x512xf32> -> vector<8x512xf32>
    %cst_33 = arith.constant dense<0.000000e+00> : vector<512xf32>
    %68 = vector.multi_reduction <add>, %67, %cst_33 [0] : vector<8x512xf32> to vector<512xf32>
    %69 = vector.shape_cast %68 : vector<512xf32> to vector<1x512xf32>
    %cst_34 = arith.constant 8.000000e+00 : f32
    %70 = vector.broadcast %cst_34 : f32 to vector<1x512xf32>
    %71 = arith.divf %69, %70 : vector<1x512xf32>
    %72 = vector.broadcast %71 : vector<1x512xf32> to vector<8x512xf32>
    %73 = arith.subf %67, %72 : vector<8x512xf32>
    %74 = arith.mulf %73, %73 : vector<8x512xf32>
    %cst_35 = arith.constant dense<0.000000e+00> : vector<512xf32>
    %75 = vector.multi_reduction <add>, %74, %cst_35 [0] : vector<8x512xf32> to vector<512xf32>
    %76 = vector.shape_cast %75 : vector<512xf32> to vector<1x512xf32>
    %cst_36 = arith.constant 8.000000e+00 : f32
    %77 = vector.broadcast %cst_36 : f32 to vector<1x512xf32>
    %78 = arith.divf %76, %77 : vector<1x512xf32>
    %79 = vector.broadcast %71 : vector<1x512xf32> to vector<8x512xf32>
    %80 = arith.subf %67, %79 : vector<8x512xf32>
    %cst_37 = arith.constant 9.99999974E-6 : f32
    %81 = vector.broadcast %cst_37 : f32 to vector<1x512xf32>
    %82 = arith.addf %78, %81 : vector<1x512xf32>
    %83 = math.rsqrt %82 : vector<1x512xf32>
    %84 = vector.broadcast %83 : vector<1x512xf32> to vector<8x512xf32>
    %85 = arith.mulf %80, %84 : vector<8x512xf32>
    %c0_38 = arith.constant 0 : index
    %c0_39 = arith.constant 0 : index
    %86 = vector.load %arg11[%c0_38, %c0_39] : memref<1x512xf32, #tpu.memory_space<vmem>>, vector<1x512xf32>
    %87 = vector.broadcast %86 : vector<1x512xf32> to vector<8x512xf32>
    %88 = arith.mulf %85, %87 : vector<8x512xf32>
    %c0_40 = arith.constant 0 : index
    %c0_41 = arith.constant 0 : index
    %89 = vector.load %arg12[%c0_40, %c0_41] : memref<1x512xf32, #tpu.memory_space<vmem>>, vector<1x512xf32>
    %90 = vector.broadcast %89 : vector<1x512xf32> to vector<8x512xf32>
    %91 = arith.addf %88, %90 : vector<8x512xf32>
    %cst_42 = arith.constant 0.000000e+00 : f32
    %92 = vector.broadcast %cst_42 : f32 to vector<8x512xf32>
    %93 = arith.maximumf %91, %92 : vector<8x512xf32>
    %94 = arith.truncf %93 : vector<8x512xf32> to vector<8x512xbf16>
    %c0_43 = arith.constant 0 : index
    %c0_44 = arith.constant 0 : index
    %95 = vector.load %arg13[%c0_43, %c0_44] : memref<512x256xf32, #tpu.memory_space<vmem>>, vector<512x256xf32>
    %96 = arith.truncf %95 : vector<512x256xf32> to vector<512x256xbf16>
    %cst_45 = arith.constant dense<0.000000e+00> : vector<8x256xf32>
    %97 = tpu.matmul %94, %96, %cst_45 {dimension_numbers = #tpu.dot_dimension_numbers<[1], [0], [0], [1], [0, 0, 1, 1], [], []>} : vector<8x512xbf16>, vector<512x256xbf16>, vector<8x256xf32> -> vector<8x256xf32>
    %c0_46 = arith.constant 0 : index
    %c0_47 = arith.constant 0 : index
    %c0_48 = arith.constant 0 : index
    %98 = vector.load %arg2[%c0_46, %c0_47, %c0_48] : memref<8x16x128xf32, #tpu.memory_space<vmem>>, vector<8x16x128xf32>
    %c0_49 = arith.constant 0 : index
    %c0_50 = arith.constant 0 : index
    %c0_51 = arith.constant 0 : index
    %99 = vector.load %arg3[%c0_49, %c0_50, %c0_51] : memref<8x1x1xf32, #tpu.memory_space<vmem>>, vector<8x1x1xf32>
    %100 = tpu.iota {dimensions = array<i32: 1>} : vector<8x16x1xi32>
    %101 = arith.sitofp %100 : vector<8x16x1xi32> to vector<8x16x1xf32>
    %102 = vector.broadcast %99 : vector<8x1x1xf32> to vector<8x16x1xf32>
    %103 = arith.cmpf olt, %101, %102 : vector<8x16x1xf32>
    %104 = arith.extui %103 : vector<8x16x1xi1> to vector<8x16x1xi32>
    %105 = arith.sitofp %104 : vector<8x16x1xi32> to vector<8x16x1xf32>
    %cst_52 = arith.constant 1.000000e+00 : f32
    %106 = vector.broadcast %cst_52 : f32 to vector<8x1x1xf32>
    %107 = arith.maximumf %99, %106 : vector<8x1x1xf32>
    %108 = tpu.reciprocal %107 {approx = true} : vector<8x1x1xf32> -> vector<8x1x1xf32>
    %109 = vector.broadcast %108 : vector<8x1x1xf32> to vector<8x16x1xf32>
    %110 = arith.mulf %105, %109 : vector<8x16x1xf32>
    %111 = vector.broadcast %110 : vector<8x16x1xf32> to vector<8x16x128xf32>
    %112 = arith.mulf %98, %111 : vector<8x16x128xf32>
    %cst_53 = arith.constant dense<0.000000e+00> : vector<8x128xf32>
    %113 = vector.multi_reduction <add>, %112, %cst_53 [1] : vector<8x16x128xf32> to vector<8x128xf32>
    %114 = arith.truncf %113 : vector<8x128xf32> to vector<8x128xbf16>
    %c0_54 = arith.constant 0 : index
    %c0_55 = arith.constant 0 : index
    %115 = vector.load %arg5[%c0_54, %c0_55] : memref<128x256xf32, #tpu.memory_space<vmem>>, vector<128x256xf32>
    %116 = arith.truncf %115 : vector<128x256xf32> to vector<128x256xbf16>
    %cst_56 = arith.constant dense<0.000000e+00> : vector<8x256xf32>
    %117 = tpu.matmul %114, %116, %cst_56 {dimension_numbers = #tpu.dot_dimension_numbers<[1], [0], [0], [1], [0, 0, 1, 1], [], []>} : vector<8x128xbf16>, vector<128x256xbf16>, vector<8x256xf32> -> vector<8x256xf32>
    %118 = arith.truncf %117 : vector<8x256xf32> to vector<8x256xbf16>
    %c0_57 = arith.constant 0 : index
    %c0_58 = arith.constant 0 : index
    %119 = vector.load %arg14[%c0_57, %c0_58] : memref<256x512xf32, #tpu.memory_space<vmem>>, vector<256x512xf32>
    %120 = arith.truncf %119 : vector<256x512xf32> to vector<256x512xbf16>
    %cst_59 = arith.constant dense<0.000000e+00> : vector<8x512xf32>
    %121 = tpu.matmul %118, %120, %cst_59 {dimension_numbers = #tpu.dot_dimension_numbers<[1], [0], [0], [1], [0, 0, 1, 1], [], []>} : vector<8x256xbf16>, vector<256x512xbf16>, vector<8x512xf32> -> vector<8x512xf32>
    %cst_60 = arith.constant dense<0.000000e+00> : vector<512xf32>
    %122 = vector.multi_reduction <add>, %121, %cst_60 [0] : vector<8x512xf32> to vector<512xf32>
    %123 = vector.shape_cast %122 : vector<512xf32> to vector<1x512xf32>
    %cst_61 = arith.constant 8.000000e+00 : f32
    %124 = vector.broadcast %cst_61 : f32 to vector<1x512xf32>
    %125 = arith.divf %123, %124 : vector<1x512xf32>
    %126 = vector.broadcast %125 : vector<1x512xf32> to vector<8x512xf32>
    %127 = arith.subf %121, %126 : vector<8x512xf32>
    %128 = arith.mulf %127, %127 : vector<8x512xf32>
    %cst_62 = arith.constant dense<0.000000e+00> : vector<512xf32>
    %129 = vector.multi_reduction <add>, %128, %cst_62 [0] : vector<8x512xf32> to vector<512xf32>
    %130 = vector.shape_cast %129 : vector<512xf32> to vector<1x512xf32>
    %cst_63 = arith.constant 8.000000e+00 : f32
    %131 = vector.broadcast %cst_63 : f32 to vector<1x512xf32>
    %132 = arith.divf %130, %131 : vector<1x512xf32>
    %133 = vector.broadcast %125 : vector<1x512xf32> to vector<8x512xf32>
    %134 = arith.subf %121, %133 : vector<8x512xf32>
    %cst_64 = arith.constant 9.99999974E-6 : f32
    %135 = vector.broadcast %cst_64 : f32 to vector<1x512xf32>
    %136 = arith.addf %132, %135 : vector<1x512xf32>
    %137 = math.rsqrt %136 : vector<1x512xf32>
    %138 = vector.broadcast %137 : vector<1x512xf32> to vector<8x512xf32>
    %139 = arith.mulf %134, %138 : vector<8x512xf32>
    %c0_65 = arith.constant 0 : index
    %c0_66 = arith.constant 0 : index
    %140 = vector.load %arg15[%c0_65, %c0_66] : memref<1x512xf32, #tpu.memory_space<vmem>>, vector<1x512xf32>
    %141 = vector.broadcast %140 : vector<1x512xf32> to vector<8x512xf32>
    %142 = arith.mulf %139, %141 : vector<8x512xf32>
    %c0_67 = arith.constant 0 : index
    %c0_68 = arith.constant 0 : index
    %143 = vector.load %arg16[%c0_67, %c0_68] : memref<1x512xf32, #tpu.memory_space<vmem>>, vector<1x512xf32>
    %144 = vector.broadcast %143 : vector<1x512xf32> to vector<8x512xf32>
    %145 = arith.addf %142, %144 : vector<8x512xf32>
    %cst_69 = arith.constant 0.000000e+00 : f32
    %146 = vector.broadcast %cst_69 : f32 to vector<8x512xf32>
    %147 = arith.maximumf %145, %146 : vector<8x512xf32>
    %148 = arith.truncf %147 : vector<8x512xf32> to vector<8x512xbf16>
    %c0_70 = arith.constant 0 : index
    %c0_71 = arith.constant 0 : index
    %149 = vector.load %arg17[%c0_70, %c0_71] : memref<512x256xf32, #tpu.memory_space<vmem>>, vector<512x256xf32>
    %150 = arith.truncf %149 : vector<512x256xf32> to vector<512x256xbf16>
    %cst_72 = arith.constant dense<0.000000e+00> : vector<8x256xf32>
    %151 = tpu.matmul %148, %150, %cst_72 {dimension_numbers = #tpu.dot_dimension_numbers<[1], [0], [0], [1], [0, 0, 1, 1], [], []>} : vector<8x512xbf16>, vector<512x256xbf16>, vector<8x256xf32> -> vector<8x256xf32>
    %152 = arith.mulf %151, %151 : vector<8x256xf32>
    %cst_73 = arith.constant dense<0.000000e+00> : vector<8xf32>
    %153 = vector.multi_reduction <add>, %152, %cst_73 [1] : vector<8x256xf32> to vector<8xf32>
    %154 = vector.shape_cast %153 : vector<8xf32> to vector<8x1xf32>
    %cst_74 = arith.constant 1.000000e-24 : f32
    %155 = vector.broadcast %cst_74 : f32 to vector<8x1xf32>
    %156 = arith.maximumf %154, %155 : vector<8x1xf32>
    %157 = math.rsqrt %156 : vector<8x1xf32>
    %158 = vector.broadcast %157 : vector<8x1xf32> to vector<8x256xf32>
    %159 = arith.mulf %151, %158 : vector<8x256xf32>
    %160 = arith.mulf %97, %159 : vector<8x256xf32>
    %cst_75 = arith.constant dense<0.000000e+00> : vector<8xf32>
    %161 = vector.multi_reduction <add>, %160, %cst_75 [1] : vector<8x256xf32> to vector<8xf32>
    %162 = vector.shape_cast %161 : vector<8xf32> to vector<8x1xf32>
    %163 = arith.mulf %97, %97 : vector<8x256xf32>
    %cst_76 = arith.constant dense<0.000000e+00> : vector<8xf32>
    %164 = vector.multi_reduction <add>, %163, %cst_76 [1] : vector<8x256xf32> to vector<8xf32>
    %165 = vector.shape_cast %164 : vector<8xf32> to vector<8x1xf32>
    %166 = math.sqrt %165 : vector<8x1xf32>
    %cst_77 = arith.constant 9.99999993E-9 : f32
    %167 = vector.broadcast %cst_77 : f32 to vector<8x1xf32>
    %168 = arith.maximumf %166, %167 : vector<8x1xf32>
    %169 = tpu.reciprocal %168 {approx = true} : vector<8x1xf32> -> vector<8x1xf32>
    %170 = arith.mulf %162, %169 : vector<8x1xf32>
    %171 = vector.shape_cast %170 : vector<8x1xf32> to vector<1x8x1xf32>
    %cst_78 = arith.constant dense<0.000000e+00> : vector<1xf32>
    %172 = vector.multi_reduction <add>, %171, %cst_78 [1, 2] : vector<1x8x1xf32> to vector<1xf32>
    %173 = vector.shape_cast %172 : vector<1xf32> to vector<1x1x1xf32>
    %174 = vector.extract %173[0, 0, 0] : f32 from vector<1x1x1xf32>
    %cst_79 = arith.constant 8.000000e+00 : f32
    %175 = arith.divf %174, %cst_79 : f32
    %cst_80 = arith.constant 2.000000e+00 : f32
    %176 = arith.mulf %cst_80, %175 : f32
    %cst_81 = arith.constant 2.000000e+00 : f32
    %177 = arith.subf %cst_81, %176 : f32
    %c0_82 = arith.constant 0 : index
    %c0_83 = arith.constant 0 : index
    %178 = memref.load %arg18[%c0_82, %c0_83] : memref<1x1xf32, #tpu.memory_space<smem>>
    memref.store %177, %arg18[%c0_82, %c0_83] : memref<1x1xf32, #tpu.memory_space<smem>>
    %c0_84 = arith.constant 0 : index
    %c0_85 = arith.constant 0 : index
    %179 = memref.load %arg19[%c0_84, %c0_85] : memref<1x1xf32, #tpu.memory_space<smem>>
    memref.store %29, %arg19[%c0_84, %c0_85] : memref<1x1xf32, #tpu.memory_space<smem>>
    return
  }
}

</mosaic_0001>

<llo_original>
// kernel: _byol_step.1
$region0: #{_byol_step.1}
  #allocation0 [shape = 'u32[]', space=smem, size = 0x4, offset = 0x4, fixed_abs, tag = 'smem constant byte address 0x4 - core index']
  #allocation1 [shape = 'u32[144,128]{1,0:T(1,128)}', space=vmem, size = 0x12000, scoped, tag = 'internal scratch']
  %s0 = inlined_call_operand.vmem [shape: f32[8,16,128], index: 0, kind: input, shape index: {}]
  %s1 = inlined_call_operand.vmem [shape: f32[8,1,1], index: 1, kind: input, shape index: {}]
  %s2 = inlined_call_operand.vmem [shape: f32[8,16,128], index: 2, kind: input, shape index: {}]
  %s3 = inlined_call_operand.vmem [shape: f32[8,1,1], index: 3, kind: input, shape index: {}]
  %s4 = inlined_call_operand.vmem [shape: f32[128,256], index: 4, kind: input, shape index: {}]
  %s5 = inlined_call_operand.vmem [shape: f32[128,256], index: 5, kind: input, shape index: {}]
  %s6 = inlined_call_operand.vmem [shape: f32[256,512], index: 6, kind: input, shape index: {}]
  %s7 = inlined_call_operand.vmem [shape: f32[1,512], index: 7, kind: input, shape index: {}]
  %s8 = inlined_call_operand.vmem [shape: f32[1,512], index: 8, kind: input, shape index: {}]
  %s9 = inlined_call_operand.vmem [shape: f32[512,256], index: 9, kind: input, shape index: {}]
  %s10 = inlined_call_operand.vmem [shape: f32[256,512], index: 10, kind: input, shape index: {}]
  %s11 = inlined_call_operand.vmem [shape: f32[1,512], index: 11, kind: input, shape index: {}]
  %s12 = inlined_call_operand.vmem [shape: f32[1,512], index: 12, kind: input, shape index: {}]
  %s13 = inlined_call_operand.vmem [shape: f32[512,256], index: 13, kind: input, shape index: {}]
  %s14 = inlined_call_operand.vmem [shape: f32[256,512], index: 14, kind: input, shape index: {}]
  %s15 = inlined_call_operand.vmem [shape: f32[1,512], index: 15, kind: input, shape index: {}]
  %s16 = inlined_call_operand.vmem [shape: f32[1,512], index: 16, kind: input, shape index: {}]
  %s17 = inlined_call_operand.vmem [shape: f32[512,256], index: 17, kind: input, shape index: {}]
  %s18 = inlined_call_operand.hbm [shape: f32[1,1], index: 18, kind: output, shape index: {0}]
  %s19 = inlined_call_operand.hbm [shape: f32[1,1], index: 19, kind: output, shape index: {1}]
  %20 = xla_tuple %s18, %s19
  %s21 = sld [smem:[#allocation0]]
  $region90: #{_byol_step.1} parent=0
    _
  %s23 = ssub.s32 1, %s21
  %s24 = scalar_select 0, %s23, %s21
  $region1: #{_byol_step.1} parent=0
    #allocation2 [shape = 'u8[512]{0}', space=smem, size = 0x200, scoped, tag = 'output window, operand 0, single buffered']
    #allocation3 [shape = 's32[1]{0}', space=sflag, size = 0x4, scoped, tag = 'scoped memory for _byol_step.1']
    #allocation4 [shape = 'u8[512]{0}', space=smem, size = 0x200, scoped, tag = 'output window, operand 1, single buffered']
    #allocation5 [shape = 's32[1]{0}', space=sflag, size = 0x4, scoped, tag = 'scoped memory for _byol_step.1']
    %25 = vsyncpa [#allocation3], 0
    %26 = vsyncpa [#allocation5], 0
    // Predicated region
    $region2: #{_byol_step.1} parent=1 // pred_check
      _
    $region3: #{_byol_step.1} parent=1 // pred_check_branch
      %28 = sbr.rel (0) target = $region5
    $region4: #{_byol_step.1} parent=1 // pred_region
      _
    $region5: #{_byol_step.1} parent=1 // pred_fallthru
      _
    // Predicated region
    $region6: #{_byol_step.1} parent=1 // pred_check
      _
    $region7: #{_byol_step.1} parent=1 // pred_check_branch
      %30 = sbr.rel (0) target = $region9
    $region8: #{_byol_step.1} parent=1 // pred_region
      _
    $region9: #{_byol_step.1} parent=1 // pred_fallthru
      _
    // Predicated region
    $region10: #{_byol_step.1} parent=1 // pred_check
      _
    $region11: #{_byol_step.1} parent=1 // pred_check_branch
      %32 = sbr.rel (0) target = $region13
    $region12: #{_byol_step.1} parent=1 // pred_region
      _
    $region13: #{_byol_step.1} parent=1 // pred_fallthru
      _
    // Predicated region
    $region14: #{_byol_step.1} parent=1 // pred_check
      _
    $region15: #{_byol_step.1} parent=1 // pred_check_branch
      %34 = sbr.rel (0) target = $region17
    $region16: #{_byol_step.1} parent=1 // pred_region
      _
    $region17: #{_byol_step.1} parent=1 // pred_fallthru
      _
    // Predicated region
    $region18: #{_byol_step.1} parent=1 // pred_check
      _
    $region19: #{_byol_step.1} parent=1 // pred_check_branch
      %36 = sbr.rel (0) target = $region21
    $region20: #{_byol_step.1} parent=1 // pred_region
      _
    $region21: #{_byol_step.1} parent=1 // pred_fallthru
      _
    // Predicated region
    $region22: #{_byol_step.1} parent=1 // pred_check
      _
    $region23: #{_byol_step.1} parent=1 // pred_check_branch
      %38 = sbr.rel (0) target = $region25
    $region24: #{_byol_step.1} parent=1 // pred_region
      _
    $region25: #{_byol_step.1} parent=1 // pred_fallthru
      _
    // Predicated region
    $region26: #{_byol_step.1} parent=1 // pred_check
      _
    $region27: #{_byol_step.1} parent=1 // pred_check_branch
      %40 = sbr.rel (0) target = $region29
    $region28: #{_byol_step.1} parent=1 // pred_region
      _
    $region29: #{_byol_step.1} parent=1 // pred_fallthru
      _
    // Predicated region
    $region30: #{_byol_step.1} parent=1 // pred_check
      _
    $region31: #{_byol_step.1} parent=1 // pred_check_branch
      %42 = sbr.rel (0) target = $region33
    $region32: #{_byol_step.1} parent=1 // pred_region
      _
    $region33: #{_byol_step.1} parent=1 // pred_fallthru
      _
    // Predicated region
    $region34: #{_byol_step.1} parent=1 // pred_check
      _
    $region35: #{_byol_step.1} parent=1 // pred_check_branch
      %44 = sbr.rel (0) target = $region37
    $region36: #{_byol_step.1} parent=1 // pred_region
      _
    $region37: #{_byol_step.1} parent=1 // pred_fallthru
      _
    // Predicated region
    $region38: #{_byol_step.1} parent=1 // pred_check
      _
    $region39: #{_byol_step.1} parent=1 // pred_check_branch
      %46 = sbr.rel (0) target = $region41
    $region40: #{_byol_step.1} parent=1 // pred_region
      _
    $region41: #{_byol_step.1} parent=1 // pred_fallthru
      _
    // Predicated region
    $region42: #{_byol_step.1} parent=1 // pred_check
      _
    $region43: #{_byol_step.1} parent=1 // pred_check_branch
      %48 = sbr.rel (0) target = $region45
    $region44: #{_byol_step.1} parent=1 // pred_region
      _
    $region45: #{_byol_step.1} parent=1 // pred_fallthru
      _
    // Predicated region
    $region46: #{_byol_step.1} parent=1 // pred_check
      _
    $region47: #{_byol_step.1} parent=1 // pred_check_branch
      %50 = sbr.rel (0) target = $region49
    $region48: #{_byol_step.1} parent=1 // pred_region
      _
    $region49: #{_byol_step.1} parent=1 // pred_fallthru
      _
    // Predicated region
    $region50: #{_byol_step.1} parent=1 // pred_check
      _
    $region51: #{_byol_step.1} parent=1 // pred_check_branch
      %52 = sbr.rel (0) target = $region53
    $region52: #{_byol_step.1} parent=1 // pred_region
      _
    $region53: #{_byol_step.1} parent=1 // pred_fallthru
      _
    // Predicated region
    $region54: #{_byol_step.1} parent=1 // pred_check
      _
    $region55: #{_byol_step.1} parent=1 // pred_check_branch
      %54 = sbr.rel (0) target = $region57
    $region56: #{_byol_step.1} parent=1 // pred_region
      _
    $region57: #{_byol_step.1} parent=1 // pred_fallthru
      _
    // Predicated region
    $region58: #{_byol_step.1} parent=1 // pred_check
      _
    $region59: #{_byol_step.1} parent=1 // pred_check_branch
      %56 = sbr.rel (0) target = $region61
    $region60: #{_byol_step.1} parent=1 // pred_region
      _
    $region61: #{_byol_step.1} parent=1 // pred_fallthru
      _
    // Predicated region
    $region62: #{_byol_step.1} parent=1 // pred_check
      _
    $region63: #{_byol_step.1} parent=1 // pred_check_branch
      %58 = sbr.rel (0) target = $region65
    $region64: #{_byol_step.1} parent=1 // pred_region
      _
    $region65: #{_byol_step.1} parent=1 // pred_fallthru
      _
    // Predicated region
    $region66: #{_byol_step.1} parent=1 // pred_check
      _
    $region67: #{_byol_step.1} parent=1 // pred_check_branch
      %60 = sbr.rel (0) target = $region69
    $region68: #{_byol_step.1} parent=1 // pred_region
      _
    $region69: #{_byol_step.1} parent=1 // pred_fallthru
      _
    // Predicated region
    $region70: #{_byol_step.1} parent=1 // pred_check
      _
    $region71: #{_byol_step.1} parent=1 // pred_check_branch
      %62 = sbr.rel (0) target = $region73
    $region72: #{_byol_step.1} parent=1 // pred_region
      _
    $region73: #{_byol_step.1} parent=1 // pred_fallthru
      _
    %v64 = vld [vmem:[%s0] sm:$0xff]
    %v65 = vld [vmem:[%s0 + $0x8] sm:$0xff]
    %v66 = vld [vmem:[%s0 + $0x10] sm:$0xff]
    %v67 = vld [vmem:[%s0 + $0x18] sm:$0xff]
    %v68 = vld [vmem:[%s0 + $0x20] sm:$0xff]
    %v69 = vld [vmem:[%s0 + $0x28] sm:$0xff]
    %v70 = vld [vmem:[%s0 + $0x30] sm:$0xff]
    %v71 = vld [vmem:[%s0 + $0x38] sm:$0xff]
    %v72 = vld [vmem:[%s0 + $0x40] sm:$0xff]
    %v73 = vld [vmem:[%s0 + $0x48] sm:$0xff]
    %v74 = vld [vmem:[%s0 + $0x50] sm:$0xff]
    %v75 = vld [vmem:[%s0 + $0x58] sm:$0xff]
    %v76 = vld [vmem:[%s0 + $0x60] sm:$0xff]
    %v77 = vld [vmem:[%s0 + $0x68] sm:$0xff]
    %v78 = vld [vmem:[%s0 + $0x70] sm:$0xff]
    %v79 = vld [vmem:[%s0 + $0x78] sm:$0xff]
    %v80 = vld [vmem:[%s1] sm:$0x1]
    %v81 = vld [vmem:[%s1 + $0x1] sm:$0x1]
    %v82 = vld [vmem:[%s1 + $0x2] sm:$0x1]
    %v83 = vld [vmem:[%s1 + $0x3] sm:$0x1]
    %v84 = vld [vmem:[%s1 + $0x4] sm:$0x1]
    %v85 = vld [vmem:[%s1 + $0x5] sm:$0x1]
    %v86 = vld [vmem:[%s1 + $0x6] sm:$0x1]
    %v87 = vld [vmem:[%s1 + $0x7] sm:$0x1]
    %v88 = vlaneseq
    %v89 = vshrl.u32 %v88, 7
    %v90 = vadd.s32 %v89, 8
    %v91 = vcvt.s32.f32 %v89
    %v92 = vcvt.s32.f32 %v90
    %v101 = vlaneseq
    %v102 = vshrl.u32 %v101, 7
    %v103 = vsub.s32 0, %v102
    %v104 = vrot.slane %v80, %v103
    %v105 = vlaneseq
    %v106 = vshrl.u32 %v105, 7
    %v107 = vsub.s32 0, %v106
    %v108 = vrot.slane %v81, %v107
    %v109 = vlaneseq
    %v110 = vshrl.u32 %v109, 7
    %v111 = vsub.s32 0, %v110
    %v112 = vrot.slane %v82, %v111
    %v113 = vlaneseq
    %v114 = vshrl.u32 %v113, 7
    %v115 = vsub.s32 0, %v114
    %v116 = vrot.slane %v83, %v115
    %v117 = vlaneseq
    %v118 = vshrl.u32 %v117, 7
    %v119 = vsub.s32 0, %v118
    %v120 = vrot.slane %v84, %v119
    %v121 = vlaneseq
    %v122 = vshrl.u32 %v121, 7
    %v123 = vsub.s32 0, %v122
    %v124 = vrot.slane %v85, %v123
    %v125 = vlaneseq
    %v126 = vshrl.u32 %v125, 7
    %v127 = vsub.s32 0, %v126
    %v128 = vrot.slane %v86, %v127
    %v129 = vlaneseq
    %v130 = vshrl.u32 %v129, 7
    %v131 = vsub.s32 0, %v130
    %v132 = vrot.slane %v87, %v131
    %vm141 = vcmp.lt.f32.partialorder %v91, %v104
    %vm142 = vcmp.lt.f32.partialorder %v92, %v104
    %vm143 = vcmp.lt.f32.partialorder %v91, %v108
    %vm144 = vcmp.lt.f32.partialorder %v92, %v108
    %vm145 = vcmp.lt.f32.partialorder %v91, %v112
    %vm146 = vcmp.lt.f32.partialorder %v92, %v112
    %vm147 = vcmp.lt.f32.partialorder %v91, %v116
    %vm148 = vcmp.lt.f32.partialorder %v92, %v116
    %vm149 = vcmp.lt.f32.partialorder %v91, %v120
    %vm150 = vcmp.lt.f32.partialorder %v92, %v120
    %vm151 = vcmp.lt.f32.partialorder %v91, %v124
    %vm152 = vcmp.lt.f32.partialorder %v92, %v124
    %vm153 = vcmp.lt.f32.partialorder %v91, %v128
    %vm154 = vcmp.lt.f32.partialorder %v92, %v128
    %vm155 = vcmp.lt.f32.partialorder %v91, %v132
    %vm156 = vcmp.lt.f32.partialorder %v92, %v132
    %v157 = vsel %vm141, 1, 0
    %v158 = vsel %vm142, 1, 0
    %v159 = vsel %vm143, 1, 0
    %v160 = vsel %vm144, 1, 0
    %v161 = vsel %vm145, 1, 0
    %v162 = vsel %vm146, 1, 0
    %v163 = vsel %vm147, 1, 0
    %v164 = vsel %vm148, 1, 0
    %v165 = vsel %vm149, 1, 0
    %v166 = vsel %vm150, 1, 0
    %v167 = vsel %vm151, 1, 0
    %v168 = vsel %vm152, 1, 0
    %v169 = vsel %vm153, 1, 0
    %v170 = vsel %vm154, 1, 0
    %v171 = vsel %vm155, 1, 0
    %v172 = vsel %vm156, 1, 0
    %v173 = vcvt.s32.f32 %v157
    %v174 = vcvt.s32.f32 %v158
    %v175 = vcvt.s32.f32 %v159
    %v176 = vcvt.s32.f32 %v160
    %v177 = vcvt.s32.f32 %v161
    %v178 = vcvt.s32.f32 %v162
    %v179 = vcvt.s32.f32 %v163
    %v180 = vcvt.s32.f32 %v164
    %v181 = vcvt.s32.f32 %v165
    %v182 = vcvt.s32.f32 %v166
    %v183 = vcvt.s32.f32 %v167
    %v184 = vcvt.s32.f32 %v168
    %v185 = vcvt.s32.f32 %v169
    %v186 = vcvt.s32.f32 %v170
    %v187 = vcvt.s32.f32 %v171
    %v188 = vcvt.s32.f32 %v172
    %v189 = vmax.f32 %v80, 1.0
    %v190 = vmax.f32 %v81, 1.0
    %v191 = vmax.f32 %v82, 1.0
    %v192 = vmax.f32 %v83, 1.0
    %v193 = vmax.f32 %v84, 1.0
    %v194 = vmax.f32 %v85, 1.0
    %v195 = vmax.f32 %v86, 1.0
    %v196 = vmax.f32 %v87, 1.0
    %v197 = vrcp.pop %v189
    %v198 = vrcp.pop %v190
    %v199 = vrcp.pop %v191
    %v200 = vrcp.pop %v192
    %v201 = vrcp.pop %v193
    %v202 = vrcp.pop %v194
    %v203 = vrcp.pop %v195
    %v204 = vrcp.pop %v196
    %v213 = vlaneseq
    %v214 = vshrl.u32 %v213, 7
    %v215 = vsub.s32 0, %v214
    %v216 = vrot.slane %v197, %v215
    %v217 = vlaneseq
    %v218 = vshrl.u32 %v217, 7
    %v219 = vsub.s32 0, %v218
    %v220 = vrot.slane %v198, %v219
    %v221 = vlaneseq
    %v222 = vshrl.u32 %v221, 7
    %v223 = vsub.s32 0, %v222
    %v224 = vrot.slane %v199, %v223
    %v225 = vlaneseq
    %v226 = vshrl.u32 %v225, 7
    %v227 = vsub.s32 0, %v226
    %v228 = vrot.slane %v200, %v227
    %v229 = vlaneseq
    %v230 = vshrl.u32 %v229, 7
    %v231 = vsub.s32 0, %v230
    %v232 = vrot.slane %v201, %v231
    %v233 = vlaneseq
    %v234 = vshrl.u32 %v233, 7
    %v235 = vsub.s32 0, %v234
    %v236 = vrot.slane %v202, %v235
    %v237 = vlaneseq
    %v238 = vshrl.u32 %v237, 7
    %v239 = vsub.s32 0, %v238
    %v240 = vrot.slane %v203, %v239
    %v241 = vlaneseq
    %v242 = vshrl.u32 %v241, 7
    %v243 = vsub.s32 0, %v242
    %v244 = vrot.slane %v204, %v243
    %v253 = vmul.f32 %v173, %v216
    %v254 = vmul.f32 %v174, %v216
    %v255 = vmul.f32 %v175, %v220
    %v256 = vmul.f32 %v176, %v220
    %v257 = vmul.f32 %v177, %v224
    %v258 = vmul.f32 %v178, %v224
    %v259 = vmul.f32 %v179, %v228
    %v260 = vmul.f32 %v180, %v228
    %v261 = vmul.f32 %v181, %v232
    %v262 = vmul.f32 %v182, %v232
    %v263 = vmul.f32 %v183, %v236
    %v264 = vmul.f32 %v184, %v236
    %v265 = vmul.f32 %v185, %v240
    %v266 = vmul.f32 %v186, %v240
    %v267 = vmul.f32 %v187, %v244
    %v268 = vmul.f32 %v188, %v244
    %270 = vset.pattern.permute.xlu0 0
    %271 = vperm.xlu0 %270, %v253
    %v272 = vpop.permute.xlu0 %271
    %275 = vset.pattern.permute.xlu0 0
    %276 = vperm.xlu0 %275, %v254
    %v277 = vpop.permute.xlu0 %276
    %280 = vset.pattern.permute.xlu0 0
    %281 = vperm.xlu0 %280, %v255
    %v282 = vpop.permute.xlu0 %281
    %285 = vset.pattern.permute.xlu0 0
    %286 = vperm.xlu0 %285, %v256
    %v287 = vpop.permute.xlu0 %286
    %290 = vset.pattern.permute.xlu0 0
    %291 = vperm.xlu0 %290, %v257
    %v292 = vpop.permute.xlu0 %291
    %295 = vset.pattern.permute.xlu0 0
    %296 = vperm.xlu0 %295, %v258
    %v297 = vpop.permute.xlu0 %296
    %300 = vset.pattern.permute.xlu0 0
    %301 = vperm.xlu0 %300, %v259
    %v302 = vpop.permute.xlu0 %301
    %305 = vset.pattern.permute.xlu0 0
    %306 = vperm.xlu0 %305, %v260
    %v307 = vpop.permute.xlu0 %306
    %310 = vset.pattern.permute.xlu0 0
    %311 = vperm.xlu0 %310, %v261
    %v312 = vpop.permute.xlu0 %311
    %315 = vset.pattern.permute.xlu0 0
    %316 = vperm.xlu0 %315, %v262
    %v317 = vpop.permute.xlu0 %316
    %320 = vset.pattern.permute.xlu0 0
    %321 = vperm.xlu0 %320, %v263
    %v322 = vpop.permute.xlu0 %321
    %325 = vset.pattern.permute.xlu0 0
    %326 = vperm.xlu0 %325, %v264
    %v327 = vpop.permute.xlu0 %326
    %330 = vset.pattern.permute.xlu0 0
    %331 = vperm.xlu0 %330, %v265
    %v332 = vpop.permute.xlu0 %331
    %335 = vset.pattern.permute.xlu0 0
    %336 = vperm.xlu0 %335, %v266
    %v337 = vpop.permute.xlu0 %336
    %340 = vset.pattern.permute.xlu0 0
    %341 = vperm.xlu0 %340, %v267
    %v342 = vpop.permute.xlu0 %341
    %345 = vset.pattern.permute.xlu0 0
    %346 = vperm.xlu0 %345, %v268
    %v347 = vpop.permute.xlu0 %346
    %v349 = vmul.f32 %v64, %v272
    %v350 = vmul.f32 %v65, %v277
    %v351 = vmul.f32 %v66, %v282
    %v352 = vmul.f32 %v67, %v287
    %v353 = vmul.f32 %v68, %v292
    %v354 = vmul.f32 %v69, %v297
    %v355 = vmul.f32 %v70, %v302
    %v356 = vmul.f32 %v71, %v307
    %v357 = vmul.f32 %v72, %v312
    %v358 = vmul.f32 %v73, %v317
    %v359 = vmul.f32 %v74, %v322
    %v360 = vmul.f32 %v75, %v327
    %v361 = vmul.f32 %v76, %v332
    %v362 = vmul.f32 %v77, %v337
    %v363 = vmul.f32 %v78, %v342
    %v364 = vmul.f32 %v79, %v347
    %v365 = vadd.f32 %v349, %v350
    %v366 = vrot.slane %v365, 4
    %v367 = vadd.f32 %v365, %v366
    %v368 = vrot.slane %v367, 2
    %v369 = vadd.f32 %v367, %v368
    %v370 = vrot.slane %v369, 1
    %v371 = vadd.f32 %v369, %v370
    %v372 = vadd.f32 %v351, %v352
    %v373 = vrot.slane %v372, 4
    %v374 = vadd.f32 %v372, %v373
    %v375 = vrot.slane %v374, 2
    %v376 = vadd.f32 %v374, %v375
    %v377 = vrot.slane %v376, 1
    %v378 = vadd.f32 %v376, %v377
    %v379 = vadd.f32 %v353, %v354
    %v380 = vrot.slane %v379, 4
    %v381 = vadd.f32 %v379, %v380
    %v382 = vrot.slane %v381, 2
    %v383 = vadd.f32 %v381, %v382
    %v384 = vrot.slane %v383, 1
    %v385 = vadd.f32 %v383, %v384
    %v386 = vadd.f32 %v355, %v356
    %v387 = vrot.slane %v386, 4
    %v388 = vadd.f32 %v386, %v387
    %v389 = vrot.slane %v388, 2
    %v390 = vadd.f32 %v388, %v389
    %v391 = vrot.slane %v390, 1
    %v392 = vadd.f32 %v390, %v391
    %v393 = vadd.f32 %v357, %v358
    %v394 = vrot.slane %v393, 4
    %v395 = vadd.f32 %v393, %v394
    %v396 = vrot.slane %v395, 2
    %v397 = vadd.f32 %v395, %v396
    %v398 = vrot.slane %v397, 1
    %v399 = vadd.f32 %v397, %v398
    %v400 = vadd.f32 %v359, %v360
    %v401 = vrot.slane %v400, 4
    %v402 = vadd.f32 %v400, %v401
    %v403 = vrot.slane %v402, 2
    %v404 = vadd.f32 %v402, %v403
    %v405 = vrot.slane %v404, 1
    %v406 = vadd.f32 %v404, %v405
    %v407 = vadd.f32 %v361, %v362
    %v408 = vrot.slane %v407, 4
    %v409 = vadd.f32 %v407, %v408
    %v410 = vrot.slane %v409, 2
    %v411 = vadd.f32 %v409, %v410
    %v412 = vrot.slane %v411, 1
    %v413 = vadd.f32 %v411, %v412
    %v414 = vadd.f32 %v363, %v364
    %v415 = vrot.slane %v414, 4
    %v416 = vadd.f32 %v414, %v415
    %v417 = vrot.slane %v416, 2
    %v418 = vadd.f32 %v416, %v417
    %v419 = vrot.slane %v418, 1
    %v420 = vadd.f32 %v418, %v419
    %v421 = vpack.c.bf16 %v371, %v371
    %v422 = vpack.c.bf16 %v378, %v378
    %v423 = vpack.c.bf16 %v385, %v385
    %v424 = vpack.c.bf16 %v392, %v392
    %v425 = vpack.c.bf16 %v399, %v399
    %v426 = vpack.c.bf16 %v406, %v406
    %v427 = vpack.c.bf16 %v413, %v413
    %v428 = vpack.c.bf16 %v420, %v420
    %v429 = vld [vmem:[%s4] sm:$0xff]
    %v430 = vld [vmem:[%s4 + $0x8] sm:$0xff]
    %v431 = vld [vmem:[%s4 + $0x10] sm:$0xff]
    %v432 = vld [vmem:[%s4 + $0x18] sm:$0xff]
    %v433 = vld [vmem:[%s4 + $0x20] sm:$0xff]
    %v434 = vld [vmem:[%s4 + $0x28] sm:$0xff]
    %v435 = vld [vmem:[%s4 + $0x30] sm:$0xff]
    %v436 = vld [vmem:[%s4 + $0x38] sm:$0xff]
    %v437 = vld [vmem:[%s4 + $0x40] sm:$0xff]
    %v438 = vld [vmem:[%s4 + $0x48] sm:$0xff]
    %v439 = vld [vmem:[%s4 + $0x50] sm:$0xff]
    %v440 = vld [vmem:[%s4 + $0x58] sm:$0xff]
    %v441 = vld [vmem:[%s4 + $0x60] sm:$0xff]
    %v442 = vld [vmem:[%s4 + $0x68] sm:$0xff]
    %v443 = vld [vmem:[%s4 + $0x70] sm:$0xff]
    %v444 = vld [vmem:[%s4 + $0x78] sm:$0xff]
    %v445 = vld [vmem:[%s4 + $0x80] sm:$0xff]
    %v446 = vld [vmem:[%s4 + $0x88] sm:$0xff]
    %v447 = vld [vmem:[%s4 + $0x90] sm:$0xff]
    %v448 = vld [vmem:[%s4 + $0x98] sm:$0xff]
    %v449 = vld [vmem:[%s4 + $0xa0] sm:$0xff]
    %v450 = vld [vmem:[%s4 + $0xa8] sm:$0xff]
    %v451 = vld [vmem:[%s4 + $0xb0] sm:$0xff]
    %v452 = vld [vmem:[%s4 + $0xb8] sm:$0xff]
    %v453 = vld [vmem:[%s4 + $0xc0] sm:$0xff]
    %v454 = vld [vmem:[%s4 + $0xc8] sm:$0xff]
    %v455 = vld [vmem:[%s4 + $0xd0] sm:$0xff]
    %v456 = vld [vmem:[%s4 + $0xd8] sm:$0xff]
    %v457 = vld [vmem:[%s4 + $0xe0] sm:$0xff]
    %v458 = vld [vmem:[%s4 + $0xe8] sm:$0xff]
    %v459 = vld [vmem:[%s4 + $0xf0] sm:$0xff]
    %v460 = vld [vmem:[%s4 + $0xf8] sm:$0xff]
    %v461 = vpack.c.bf16 %v431, %v429
    %v462 = vpack.c.bf16 %v432, %v430
    %v463 = vpack.c.bf16 %v435, %v433
    %v464 = vpack.c.bf16 %v436, %v434
    %v465 = vpack.c.bf16 %v439, %v437
    %v466 = vpack.c.bf16 %v440, %v438
    %v467 = vpack.c.bf16 %v443, %v441
    %v468 = vpack.c.bf16 %v444, %v442
    %v469 = vpack.c.bf16 %v447, %v445
    %v470 = vpack.c.bf16 %v448, %v446
    %v471 = vpack.c.bf16 %v451, %v449
    %v472 = vpack.c.bf16 %v452, %v450
    %v473 = vpack.c.bf16 %v455, %v453
    %v474 = vpack.c.bf16 %v456, %v454
    %v475 = vpack.c.bf16 %v459, %v457
    %v476 = vpack.c.bf16 %v460, %v458
    %v485 = vunpack.c.l.b16 %v421
    %v486 = vunpack.c.l.b16 %v422
    %v487 = vunpack.c.l.b16 %v423
    %v488 = vunpack.c.l.b16 %v424
    %v489 = vunpack.c.l.b16 %v425
    %v490 = vunpack.c.l.b16 %v426
    %v491 = vunpack.c.l.b16 %v427
    %v492 = vunpack.c.l.b16 %v428
    %vm493 = vcmask 1041409
    %v494 = vsel %vm493, %v486, %v485
    %vm495 = vcmask 1042434
    %v496 = vsel %vm495, %v487, %v494
    %vm497 = vcmask 1043459
    %v498 = vsel %vm497, %v488, %v496
    %vm499 = vcmask 1044484
    %v500 = vsel %vm499, %v489, %v498
    %vm501 = vcmask 1045509
    %v502 = vsel %vm501, %v490, %v500
    %vm503 = vcmask 1046534
    %v504 = vsel %vm503, %v491, %v502
    %vm505 = vcmask 1047559
    %v506 = vsel %vm505, %v492, %v504
    %v507 = vpack.c.b16 %v506, %v506
    %509 = vmatprep.subr.bf16.mxu0 %v462
    %510 = vmatpush1.bf16.msra.mxu0 %v461
    %511 = vmatprep.subr.bf16.mxu0 %v464
    %512 = vmatpush1.bf16.msra.mxu0 %v463
    %513 = vmatprep.subr.bf16.mxu0 %v466
    %514 = vmatpush1.bf16.msra.mxu0 %v465
    %515 = vmatprep.subr.bf16.mxu0 %v468
    %516 = vmatpush1.bf16.msra.mxu0 %v467
    %517 = vmatprep.subr.bf16.mxu0 %v470
    %518 = vmatpush1.bf16.msra.mxu0 %v469
    %519 = vmatprep.subr.bf16.mxu0 %v472
    %520 = vmatpush1.bf16.msra.mxu0 %v471
    %521 = vmatprep.subr.bf16.mxu0 %v474
    %522 = vmatpush1.bf16.msra.mxu0 %v473
    %523 = vmatprep.subr.bf16.mxu0 %v476
    %524 = vmatpush1.bf16.msra.mxu0 %v475
    %525 = vmatprep.subr.bf16.mxu0 0
    %526 = vmatpush1.bf16.msra.mxu0 0
    %527 = vmatprep.subr.bf16.mxu0 0
    %528 = vmatpush1.bf16.msra.mxu0 0
    %529 = vmatprep.subr.bf16.mxu0 0
    %530 = vmatpush1.bf16.msra.mxu0 0
    %531 = vmatprep.subr.bf16.mxu0 0
    %532 = vmatpush1.bf16.msra.mxu0 0
    %533 = vmatprep.subr.bf16.mxu0 0
    %534 = vmatpush1.bf16.msra.mxu0 0
    %535 = vmatprep.subr.bf16.mxu0 0
    %536 = vmatpush1.bf16.msra.mxu0 0
    %537 = vmatprep.subr.bf16.mxu0 0
    %538 = vmatpush1.bf16.msra.mxu0 0
    %539 = vmatprep.subr.bf16.mxu0 0
    %540 = vmatpush1.bf16.msra.mxu0 0
    %541 = vmatprep.mubr.bf16.mxu0 0
    %542 = vmatmul.mubr.bf16.gmra.mrb[0].mxu0 %v507
    %v543 = vpop.f32.mrb[0].mxu0
    %v544 = vadd.f32 0.0, %v543
    %v545 = vpop.f32.mrb[0].mxu0
    %v546 = vadd.f32 0.0, %v545
    %v547 = vpop.f32.mrb[0].mxu0
    %v548 = vpop.f32.mrb[0].mxu0
    %549 = vdwg.mxu0
    %v550 = vmul.f32 %v64, %v349
    %v551 = vmul.f32 %v65, %v350
    %v552 = vmul.f32 %v66, %v351
    %v553 = vmul.f32 %v67, %v352
    %v554 = vmul.f32 %v68, %v353
    %v555 = vmul.f32 %v69, %v354
    %v556 = vmul.f32 %v70, %v355
    %v557 = vmul.f32 %v71, %v356
    %v558 = vmul.f32 %v72, %v357
    %v559 = vmul.f32 %v73, %v358
    %v560 = vmul.f32 %v74, %v359
    %v561 = vmul.f32 %v75, %v360
    %v562 = vmul.f32 %v76, %v361
    %v563 = vmul.f32 %v77, %v362
    %v564 = vmul.f32 %v78, %v363
    %v565 = vmul.f32 %v79, %v364
    %v566 = vadd.f32 %v550, %v551
    %v567 = vrot.slane %v566, 4
    %v568 = vadd.f32 %v566, %v567
    %v569 = vrot.slane %v568, 2
    %v570 = vadd.f32 %v568, %v569
    %v571 = vrot.slane %v570, 1
    %v572 = vadd.f32 %v570, %v571
    %v573 = vadd.f32 %v552, %v553
    %v574 = vrot.slane %v573, 4
    %v575 = vadd.f32 %v573, %v574
    %v576 = vrot.slane %v575, 2
    %v577 = vadd.f32 %v575, %v576
    %v578 = vrot.slane %v577, 1
    %v579 = vadd.f32 %v577, %v578
    %v580 = vadd.f32 %v554, %v555
    %v581 = vrot.slane %v580, 4
    %v582 = vadd.f32 %v580, %v581
    %v583 = vrot.slane %v582, 2
    %v584 = vadd.f32 %v582, %v583
    %v585 = vrot.slane %v584, 1
    %v586 = vadd.f32 %v584, %v585
    %v587 = vadd.f32 %v556, %v557
    %v588 = vrot.slane %v587, 4
    %v589 = vadd.f32 %v587, %v588
    %v590 = vrot.slane %v589, 2
    %v591 = vadd.f32 %v589, %v590
    %v592 = vrot.slane %v591, 1
    %v593 = vadd.f32 %v591, %v592
    %v594 = vadd.f32 %v558, %v559
    %v595 = vrot.slane %v594, 4
    %v596 = vadd.f32 %v594, %v595
    %v597 = vrot.slane %v596, 2
    %v598 = vadd.f32 %v596, %v597
    %v599 = vrot.slane %v598, 1
    %v600 = vadd.f32 %v598, %v599
    %v601 = vadd.f32 %v560, %v561
    %v602 = vrot.slane %v601, 4
    %v603 = vadd.f32 %v601, %v602
    %v604 = vrot.slane %v603, 2
    %v605 = vadd.f32 %v603, %v604
    %v606 = vrot.slane %v605, 1
    %v607 = vadd.f32 %v605, %v606
    %v608 = vadd.f32 %v562, %v563
    %v609 = vrot.slane %v608, 4
    %v610 = vadd.f32 %v608, %v609
    %v611 = vrot.slane %v610, 2
    %v612 = vadd.f32 %v610, %v611
    %v613 = vrot.slane %v612, 1
    %v614 = vadd.f32 %v612, %v613
    %v615 = vadd.f32 %v564, %v565
    %v616 = vrot.slane %v615, 4
    %v617 = vadd.f32 %v615, %v616
    %v618 = vrot.slane %v617, 2
    %v619 = vadd.f32 %v617, %v618
    %v620 = vrot.slane %v619, 1
    %v621 = vadd.f32 %v619, %v620
    %v630 = vsel %vm493, %v579, %v572
    %v631 = vsel %vm495, %v586, %v630
    %v632 = vsel %vm497, %v593, %v631
    %v633 = vsel %vm499, %v600, %v632
    %v634 = vsel %vm501, %v607, %v633
    %v635 = vsel %vm503, %v614, %v634
    %v636 = vsel %vm505, %v621, %v635
    %638 = vadd.xlane.f32.xlu0 %v636
    %v639 = vpop.xlane.xlu0 %638
    %vm640 = vcmask 7168
    %v641 = vsel %vm640, %v639, 0.0
    %642 = vadd.xlane.f32.xlu0 %v641
    %v643 = vpop.xlane.xlu0 %642
    %v644 = vrot.slane %v643, 4
    %v645 = vadd.f32 %v643, %v644
    %v646 = vrot.slane %v645, 2
    %v647 = vadd.f32 %v645, %v646
    %v648 = vrot.slane %v647, 1
    %v649 = vadd.f32 %v647, %v648
    %s650 = vtos %v649
    %v651 = vrcp.pop 8.0
    %s652 = vtos %v651
    %s653 = smul.f32 %s650, %s652
    %s654 = smul.f32 %s653, 0.0078125
    %v655 = vpack.c.bf16 %v544, %v544
    %v656 = vpack.c.bf16 %v546, %v546
    %v657 = vld [vmem:[%s6] sm:$0xff]
    %v658 = vld [vmem:[%s6 + $0x8] sm:$0xff]
    %v659 = vld [vmem:[%s6 + $0x10] sm:$0xff]
    %v660 = vld [vmem:[%s6 + $0x18] sm:$0xff]
    %v661 = vld [vmem:[%s6 + $0x20] sm:$0xff]
    %v662 = vld [vmem:[%s6 + $0x28] sm:$0xff]
    %v663 = vld [vmem:[%s6 + $0x30] sm:$0xff]
    %v664 = vld [vmem:[%s6 + $0x38] sm:$0xff]
    %v665 = vld [vmem:[%s6 + $0x40] sm:$0xff]
    %v666 = vld [vmem:[%s6 + $0x48] sm:$0xff]
    %v667 = vld [vmem:[%s6 + $0x50] sm:$0xff]
    %v668 = vld [vmem:[%s6 + $0x58] sm:$0xff]
    %v669 = vld [vmem:[%s6 + $0x60] sm:$0xff]
    %v670 = vld [vmem:[%s6 + $0x68] sm:$0xff]
    %v671 = vld [vmem:[%s6 + $0x70] sm:$0xff]
    %v672 = vld [vmem:[%s6 + $0x78] sm:$0xff]
    %v673 = vld [vmem:[%s6 + $0x80] sm:$0xff]
    %v674 = vld [vmem:[%s6 + $0x88] sm:$0xff]
    %v675 = vld [vmem:[%s6 + $0x90] sm:$0xff]
    %v676 = vld [vmem:[%s6 + $0x98] sm:$0xff]
    %v677 = vld [vmem:[%s6 + $0xa0] sm:$0xff]
    %v678 = vld [vmem:[%s6 + $0xa8] sm:$0xff]
    %v679 = vld [vmem:[%s6 + $0xb0] sm:$0xff]
    %v680 = vld [vmem:[%s6 + $0xb8] sm:$0xff]
    %v681 = vld [vmem:[%s6 + $0xc0] sm:$0xff]
    %v682 = vld [vmem:[%s6 + $0xc8] sm:$0xff]
    %v683 = vld [vmem:[%s6 + $0xd0] sm:$0xff]
    %v684 = vld [vmem:[%s6 + $0xd8] sm:$0xff]
    %v685 = vld [vmem:[%s6 + $0xe0] sm:$0xff]
    %v686 = vld [vmem:[%s6 + $0xe8] sm:$0xff]
    %v687 = vld [vmem:[%s6 + $0xf0] sm:$0xff]
    %v688 = vld [vmem:[%s6 + $0xf8] sm:$0xff]
    %v689 = vld [vmem:[%s6 + $0x100] sm:$0xff]
    %v690 = vld [vmem:[%s6 + $0x108] sm:$0xff]
    %v691 = vld [vmem:[%s6 + $0x110] sm:$0xff]
    %v692 = vld [vmem:[%s6 + $0x118] sm:$0xff]
    %v693 = vld [vmem:[%s6 + $0x120] sm:$0xff]
    %v694 = vld [vmem:[%s6 + $0x128] sm:$0xff]
    %v695 = vld [vmem:[%s6 + $0x130] sm:$0xff]
    %v696 = vld [vmem:[%s6 + $0x138] sm:$0xff]
    %v697 = vld [vmem:[%s6 + $0x140] sm:$0xff]
    %v698 = vld [vmem:[%s6 + $0x148] sm:$0xff]
    %v699 = vld [vmem:[%s6 + $0x150] sm:$0xff]
    %v700 = vld [vmem:[%s6 + $0x158] sm:$0xff]
    %v701 = vld [vmem:[%s6 + $0x160] sm:$0xff]
    %v702 = vld [vmem:[%s6 + $0x168] sm:$0xff]
    %v703 = vld [vmem:[%s6 + $0x170] sm:$0xff]
    %v704 = vld [vmem:[%s6 + $0x178] sm:$0xff]
    %v705 = vld [vmem:[%s6 + $0x180] sm:$0xff]
    %v706 = vld [vmem:[%s6 + $0x188] sm:$0xff]
    %v707 = vld [vmem:[%s6 + $0x190] sm:$0xff]
    %v708 = vld [vmem:[%s6 + $0x198] sm:$0xff]
    %v709 = vld [vmem:[%s6 + $0x1a0] sm:$0xff]
    %v710 = vld [vmem:[%s6 + $0x1a8] sm:$0xff]
    %v711 = vld [vmem:[%s6 + $0x1b0] sm:$0xff]
    %v712 = vld [vmem:[%s6 + $0x1b8] sm:$0xff]
    %v713 = vld [vmem:[%s6 + $0x1c0] sm:$0xff]
    %v714 = vld [vmem:[%s6 + $0x1c8] sm:$0xff]
    %v715 = vld [vmem:[%s6 + $0x1d0] sm:$0xff]
    %v716 = vld [vmem:[%s6 + $0x1d8] sm:$0xff]
    %v717 = vld [vmem:[%s6 + $0x1e0] sm:$0xff]
    %v718 = vld [vmem:[%s6 + $0x1e8] sm:$0xff]
    %v719 = vld [vmem:[%s6 + $0x1f0] sm:$0xff]
    %v720 = vld [vmem:[%s6 + $0x1f8] sm:$0xff]
    %v721 = vld [vmem:[%s6 + $0x200] sm:$0xff]
    %v722 = vld [vmem:[%s6 + $0x208] sm:$0xff]
    %v723 = vld [vmem:[%s6 + $0x210] sm:$0xff]
    %v724 = vld [vmem:[%s6 + $0x218] sm:$0xff]
    %v725 = vld [vmem:[%s6 + $0x220] sm:$0xff]
    %v726 = vld [vmem:[%s6 + $0x228] sm:$0xff]
    %v727 = vld [vmem:[%s6 + $0x230] sm:$0xff]
    %v728 = vld [vmem:[%s6 + $0x238] sm:$0xff]
    %v729 = vld [vmem:[%s6 + $0x240] sm:$0xff]
    %v730 = vld [vmem:[%s6 + $0x248] sm:$0xff]
    %v731 = vld [vmem:[%s6 + $0x250] sm:$0xff]
    %v732 = vld [vmem:[%s6 + $0x258] sm:$0xff]
    %v733 = vld [vmem:[%s6 + $0x260] sm:$0xff]
    %v734 = vld [vmem:[%s6 + $0x268] sm:$0xff]
    %v735 = vld [vmem:[%s6 + $0x270] sm:$0xff]
    %v736 = vld [vmem:[%s6 + $0x278] sm:$0xff]
    %v737 = vld [vmem:[%s6 + $0x280] sm:$0xff]
    %v738 = vld [vmem:[%s6 + $0x288] sm:$0xff]
    %v739 = vld [vmem:[%s6 + $0x290] sm:$0xff]
    %v740 = vld [vmem:[%s6 + $0x298] sm:$0xff]
    %v741 = vld [vmem:[%s6 + $0x2a0] sm:$0xff]
    %v742 = vld [vmem:[%s6 + $0x2a8] sm:$0xff]
    %v743 = vld [vmem:[%s6 + $0x2b0] sm:$0xff]
    %v744 = vld [vmem:[%s6 + $0x2b8] sm:$0xff]
    %v745 = vld [vmem:[%s6 + $0x2c0] sm:$0xff]
    %v746 = vld [vmem:[%s6 + $0x2c8] sm:$0xff]
    %v747 = vld [vmem:[%s6 + $0x2d0] sm:$0xff]
    %v748 = vld [vmem:[%s6 + $0x2d8] sm:$0xff]
    %v749 = vld [vmem:[%s6 + $0x2e0] sm:$0xff]
    %v750 = vld [vmem:[%s6 + $0x2e8] sm:$0xff]
    %v751 = vld [vmem:[%s6 + $0x2f0] sm:$0xff]
    %v752 = vld [vmem:[%s6 + $0x2f8] sm:$0xff]
    %v753 = vld [vmem:[%s6 + $0x300] sm:$0xff]
    %v754 = vld [vmem:[%s6 + $0x308] sm:$0xff]
    %v755 = vld [vmem:[%s6 + $0x310] sm:$0xff]
    %v756 = vld [vmem:[%s6 + $0x318] sm:$0xff]
    %v757 = vld [vmem:[%s6 + $0x320] sm:$0xff]
    %v758 = vld [vmem:[%s6 + $0x328] sm:$0xff]
    %v759 = vld [vmem:[%s6 + $0x330] sm:$0xff]
    %v760 = vld [vmem:[%s6 + $0x338] sm:$0xff]
    %v761 = vld [vmem:[%s6 + $0x340] sm:$0xff]
    %v762 = vld [vmem:[%s6 + $0x348] sm:$0xff]
    %v763 = vld [vmem:[%s6 + $0x350] sm:$0xff]
    %v764 = vld [vmem:[%s6 + $0x358] sm:$0xff]
    %v765 = vld [vmem:[%s6 + $0x360] sm:$0xff]
    %v766 = vld [vmem:[%s6 + $0x368] sm:$0xff]
    %v767 = vld [vmem:[%s6 + $0x370] sm:$0xff]
    %v768 = vld [vmem:[%s6 + $0x378] sm:$0xff]
    %v769 = vld [vmem:[%s6 + $0x380] sm:$0xff]
    %v770 = vld [vmem:[%s6 + $0x388] sm:$0xff]
    %v771 = vld [vmem:[%s6 + $0x390] sm:$0xff]
    %v772 = vld [vmem:[%s6 + $0x398] sm:$0xff]
    %v773 = vld [vmem:[%s6 + $0x3a0] sm:$0xff]
    %v774 = vld [vmem:[%s6 + $0x3a8] sm:$0xff]
    %v775 = vld [vmem:[%s6 + $0x3b0] sm:$0xff]
    %v776 = vld [vmem:[%s6 + $0x3b8] sm:$0xff]
    %v777 = vld [vmem:[%s6 + $0x3c0] sm:$0xff]
    %v778 = vld [vmem:[%s6 + $0x3c8] sm:$0xff]
    %v779 = vld [vmem:[%s6 + $0x3d0] sm:$0xff]
    %v780 = vld [vmem:[%s6 + $0x3d8] sm:$0xff]
    %v781 = vld [vmem:[%s6 + $0x3e0] sm:$0xff]
    %v782 = vld [vmem:[%s6 + $0x3e8] sm:$0xff]
    %v783 = vld [vmem:[%s6 + $0x3f0] sm:$0xff]
    %v784 = vld [vmem:[%s6 + $0x3f8] sm:$0xff]
    %v785 = vpack.c.bf16 %v661, %v657
    %v786 = vpack.c.bf16 %v662, %v658
    %v787 = vpack.c.bf16 %v663, %v659
    %v788 = vpack.c.bf16 %v664, %v660
    %v789 = vpack.c.bf16 %v669, %v665
    %v790 = vpack.c.bf16 %v670, %v666
    %v791 = vpack.c.bf16 %v671, %v667
    %v792 = vpack.c.bf16 %v672, %v668
    %v793 = vpack.c.bf16 %v677, %v673
    %v794 = vpack.c.bf16 %v678, %v674
    %v795 = vpack.c.bf16 %v679, %v675
    %v796 = vpack.c.bf16 %v680, %v676
    %v797 = vpack.c.bf16 %v685, %v681
    %v798 = vpack.c.bf16 %v686, %v682
    %v799 = vpack.c.bf16 %v687, %v683
    %v800 = vpack.c.bf16 %v688, %v684
    %v801 = vpack.c.bf16 %v693, %v689
    %v802 = vpack.c.bf16 %v694, %v690
    %v803 = vpack.c.bf16 %v695, %v691
    %v804 = vpack.c.bf16 %v696, %v692
    %v805 = vpack.c.bf16 %v701, %v697
    %v806 = vpack.c.bf16 %v702, %v698
    %v807 = vpack.c.bf16 %v703, %v699
    %v808 = vpack.c.bf16 %v704, %v700
    %v809 = vpack.c.bf16 %v709, %v705
    %v810 = vpack.c.bf16 %v710, %v706
    %v811 = vpack.c.bf16 %v711, %v707
    %v812 = vpack.c.bf16 %v712, %v708
    %v813 = vpack.c.bf16 %v717, %v713
    %v814 = vpack.c.bf16 %v718, %v714
    %v815 = vpack.c.bf16 %v719, %v715
    %v816 = vpack.c.bf16 %v720, %v716
    %v817 = vpack.c.bf16 %v725, %v721
    %v818 = vpack.c.bf16 %v726, %v722
    %v819 = vpack.c.bf16 %v727, %v723
    %v820 = vpack.c.bf16 %v728, %v724
    %v821 = vpack.c.bf16 %v733, %v729
    %v822 = vpack.c.bf16 %v734, %v730
    %v823 = vpack.c.bf16 %v735, %v731
    %v824 = vpack.c.bf16 %v736, %v732
    %v825 = vpack.c.bf16 %v741, %v737
    %v826 = vpack.c.bf16 %v742, %v738
    %v827 = vpack.c.bf16 %v743, %v739
    %v828 = vpack.c.bf16 %v744, %v740
    %v829 = vpack.c.bf16 %v749, %v745
    %v830 = vpack.c.bf16 %v750, %v746
    %v831 = vpack.c.bf16 %v751, %v747
    %v832 = vpack.c.bf16 %v752, %v748
    %v833 = vpack.c.bf16 %v757, %v753
    %v834 = vpack.c.bf16 %v758, %v754
    %v835 = vpack.c.bf16 %v759, %v755
    %v836 = vpack.c.bf16 %v760, %v756
    %v837 = vpack.c.bf16 %v765, %v761
    %v838 = vpack.c.bf16 %v766, %v762
    %v839 = vpack.c.bf16 %v767, %v763
    %v840 = vpack.c.bf16 %v768, %v764
    %v841 = vpack.c.bf16 %v773, %v769
    %v842 = vpack.c.bf16 %v774, %v770
    %v843 = vpack.c.bf16 %v775, %v771
    %v844 = vpack.c.bf16 %v776, %v772
    %v845 = vpack.c.bf16 %v781, %v777
    %v846 = vpack.c.bf16 %v782, %v778
    %v847 = vpack.c.bf16 %v783, %v779
    %v848 = vpack.c.bf16 %v784, %v780
    %849 = vmatprep.subr.bf16.mxu0 %v786
    %850 = vmatpush1.bf16.msra.mxu0 %v785
    %851 = vmatprep.subr.bf16.mxu0 %v790
    %852 = vmatpush1.bf16.msra.mxu0 %v789
    %853 = vmatprep.subr.bf16.mxu0 %v794
    %854 = vmatpush1.bf16.msra.mxu0 %v793
    %855 = vmatprep.subr.bf16.mxu0 %v798
    %856 = vmatpush1.bf16.msra.mxu0 %v797
    %857 = vmatprep.subr.bf16.mxu0 %v802
    %858 = vmatpush1.bf16.msra.mxu0 %v801
    %859 = vmatprep.subr.bf16.mxu0 %v806
    %860 = vmatpush1.bf16.msra.mxu0 %v805
    %861 = vmatprep.subr.bf16.mxu0 %v810
    %862 = vmatpush1.bf16.msra.mxu0 %v809
    %863 = vmatprep.subr.bf16.mxu0 %v814
    %864 = vmatpush1.bf16.msra.mxu0 %v813
    %865 = vmatprep.subr.bf16.mxu0 %v818
    %866 = vmatpush1.bf16.msra.mxu0 %v817
    %867 = vmatprep.subr.bf16.mxu0 %v822
    %868 = vmatpush1.bf16.msra.mxu0 %v821
    %869 = vmatprep.subr.bf16.mxu0 %v826
    %870 = vmatpush1.bf16.msra.mxu0 %v825
    %871 = vmatprep.subr.bf16.mxu0 %v830
    %872 = vmatpush1.bf16.msra.mxu0 %v829
    %873 = vmatprep.subr.bf16.mxu0 %v834
    %874 = vmatpush1.bf16.msra.mxu0 %v833
    %875 = vmatprep.subr.bf16.mxu0 %v838
    %876 = vmatpush1.bf16.msra.mxu0 %v837
    %877 = vmatprep.subr.bf16.mxu0 %v842
    %878 = vmatpush1.bf16.msra.mxu0 %v841
    %879 = vmatprep.subr.bf16.mxu0 %v846
    %880 = vmatpush1.bf16.msra.mxu0 %v845
    %881 = vmatprep.mubr.bf16.mxu0 %v656
    %882 = vmatmul.mubr.bf16.gmra.mrb[0].mxu0 %v655
    %v883 = vpop.f32.mrb[0].mxu0
    %v884 = vadd.f32 0.0, %v883
    %v885 = vpop.f32.mrb[0].mxu0
    %v886 = vadd.f32 0.0, %v885
    %v887 = vpop.f32.mrb[0].mxu0
    %v888 = vpop.f32.mrb[0].mxu0
    %889 = vdwg.mxu0
    %890 = vmatprep.subr.bf16.mxu0 %v788
    %891 = vmatpush1.bf16.msra.mxu0 %v787
    %892 = vmatprep.subr.bf16.mxu0 %v792
    %893 = vmatpush1.bf16.msra.mxu0 %v791
    %894 = vmatprep.subr.bf16.mxu0 %v796
    %895 = vmatpush1.bf16.msra.mxu0 %v795
    %896 = vmatprep.subr.bf16.mxu0 %v800
    %897 = vmatpush1.bf16.msra.mxu0 %v799
    %898 = vmatprep.subr.bf16.mxu0 %v804
    %899 = vmatpush1.bf16.msra.mxu0 %v803
    %900 = vmatprep.subr.bf16.mxu0 %v808
    %901 = vmatpush1.bf16.msra.mxu0 %v807
    %902 = vmatprep.subr.bf16.mxu0 %v812
    %903 = vmatpush1.bf16.msra.mxu0 %v811
    %904 = vmatprep.subr.bf16.mxu0 %v816
    %905 = vmatpush1.bf16.msra.mxu0 %v815
    %906 = vmatprep.subr.bf16.mxu0 %v820
    %907 = vmatpush1.bf16.msra.mxu0 %v819
    %908 = vmatprep.subr.bf16.mxu0 %v824
    %909 = vmatpush1.bf16.msra.mxu0 %v823
    %910 = vmatprep.subr.bf16.mxu0 %v828
    %911 = vmatpush1.bf16.msra.mxu0 %v827
    %912 = vmatprep.subr.bf16.mxu0 %v832
    %913 = vmatpush1.bf16.msra.mxu0 %v831
    %914 = vmatprep.subr.bf16.mxu0 %v836
    %915 = vmatpush1.bf16.msra.mxu0 %v835
    %916 = vmatprep.subr.bf16.mxu0 %v840
    %917 = vmatpush1.bf16.msra.mxu0 %v839
    %918 = vmatprep.subr.bf16.mxu0 %v844
    %919 = vmatpush1.bf16.msra.mxu0 %v843
    %920 = vmatprep.subr.bf16.mxu0 %v848
    %921 = vmatpush1.bf16.msra.mxu0 %v847
    %922 = vmatprep.mubr.bf16.mxu0 %v656
    %923 = vmatmul.mubr.bf16.gmra.mrb[0].mxu0 %v655
    %v924 = vpop.f32.mrb[0].mxu0
    %v925 = vadd.f32 0.0, %v924
    %v926 = vpop.f32.mrb[0].mxu0
    %v927 = vadd.f32 0.0, %v926
    %v928 = vpop.f32.mrb[0].mxu0
    %v929 = vpop.f32.mrb[0].mxu0
    %930 = vdwg.mxu0
    %v931 = vrot.slane %v884, 4
    %v932 = vadd.f32 %v884, %v931
    %v933 = vrot.slane %v932, 2
    %v934 = vadd.f32 %v932, %v933
    %v935 = vrot.slane %v934, 1
    %v936 = vadd.f32 %v934, %v935
    %v937 = vrot.slane %v886, 4
    %v938 = vadd.f32 %v886, %v937
    %v939 = vrot.slane %v938, 2
    %v940 = vadd.f32 %v938, %v939
    %v941 = vrot.slane %v940, 1
    %v942 = vadd.f32 %v940, %v941
    %v943 = vrot.slane %v925, 4
    %v944 = vadd.f32 %v925, %v943
    %v945 = vrot.slane %v944, 2
    %v946 = vadd.f32 %v944, %v945
    %v947 = vrot.slane %v946, 1
    %v948 = vadd.f32 %v946, %v947
    %v949 = vrot.slane %v927, 4
    %v950 = vadd.f32 %v927, %v949
    %v951 = vrot.slane %v950, 2
    %v952 = vadd.f32 %v950, %v951
    %v953 = vrot.slane %v952, 1
    %v954 = vadd.f32 %v952, %v953
    %v955 = vrcp.pop 8.0
    %v956 = vmul.f32 %v936, %v955
    %v957 = vmul.f32 %v942, %v955
    %v958 = vmul.f32 %v948, %v955
    %v959 = vmul.f32 %v954, %v955
    %v960 = vsub.f32 %v884, %v956
    %v961 = vsub.f32 %v886, %v957
    %v962 = vsub.f32 %v925, %v958
    %v963 = vsub.f32 %v927, %v959
    %v964 = vmul.f32 %v960, %v960
    %v965 = vmul.f32 %v961, %v961
    %v966 = vmul.f32 %v962, %v962
    %v967 = vmul.f32 %v963, %v963
    %v968 = vrot.slane %v964, 4
    %v969 = vadd.f32 %v964, %v968
    %v970 = vrot.slane %v969, 2
    %v971 = vadd.f32 %v969, %v970
    %v972 = vrot.slane %v971, 1
    %v973 = vadd.f32 %v971, %v972
    %v974 = vrot.slane %v965, 4
    %v975 = vadd.f32 %v965, %v974
    %v976 = vrot.slane %v975, 2
    %v977 = vadd.f32 %v975, %v976
    %v978 = vrot.slane %v977, 1
    %v979 = vadd.f32 %v977, %v978
    %v980 = vrot.slane %v966, 4
    %v981 = vadd.f32 %v966, %v980
    %v982 = vrot.slane %v981, 2
    %v983 = vadd.f32 %v981, %v982
    %v984 = vrot.slane %v983, 1
    %v985 = vadd.f32 %v983, %v984
    %v986 = vrot.slane %v967, 4
    %v987 = vadd.f32 %v967, %v986
    %v988 = vrot.slane %v987, 2
    %v989 = vadd.f32 %v987, %v988
    %v990 = vrot.slane %v989, 1
    %v991 = vadd.f32 %v989, %v990
    %v992 = vmul.f32 %v973, %v955
    %v993 = vmul.f32 %v979, %v955
    %v994 = vmul.f32 %v985, %v955
    %v995 = vmul.f32 %v991, %v955
    %v996 = vadd.f32 %v992, 1e-05
    %v997 = vadd.f32 %v993, 1e-05
    %v998 = vadd.f32 %v994, 1e-05
    %v999 = vadd.f32 %v995, 1e-05
    %v1000 = vrsqrt.pop %v996
    %v1001 = vrsqrt.pop %v997
    %v1002 = vrsqrt.pop %v998
    %v1003 = vrsqrt.pop %v999
    %v1004 = vmul.f32 %v960, %v1000
    %v1005 = vmul.f32 %v961, %v1001
    %v1006 = vmul.f32 %v962, %v1002
    %v1007 = vmul.f32 %v963, %v1003
    %v1008 = vld [vmem:[%s7] sm:$0xf]
    %v1010 = vlaneseq
    %v1011 = vshrl.u32 %v1010, 7
    %v1012 = vsub.s32 0, %v1011
    %v1013 = vrot.slane %v1008, %v1012
    %v1014 = vlaneseq
    %v1015 = vshrl.u32 %v1014, 7
    %v1016 = vsub.s32 1, %v1015
    %v1017 = vrot.slane %v1008, %v1016
    %v1018 = vlaneseq
    %v1019 = vshrl.u32 %v1018, 7
    %v1020 = vsub.s32 2, %v1019
    %v1021 = vrot.slane %v1008, %v1020
    %v1022 = vlaneseq
    %v1023 = vshrl.u32 %v1022, 7
    %v1024 = vsub.s32 3, %v1023
    %v1025 = vrot.slane %v1008, %v1024
    %v1030 = vmul.f32 %v1004, %v1013
    %v1031 = vmul.f32 %v1005, %v1017
    %v1032 = vmul.f32 %v1006, %v1021
    %v1033 = vmul.f32 %v1007, %v1025
    %v1034 = vld [vmem:[%s8] sm:$0xf]
    %v1036 = vlaneseq
    %v1037 = vshrl.u32 %v1036, 7
    %v1038 = vsub.s32 0, %v1037
    %v1039 = vrot.slane %v1034, %v1038
    %v1040 = vlaneseq
    %v1041 = vshrl.u32 %v1040, 7
    %v1042 = vsub.s32 1, %v1041
    %v1043 = vrot.slane %v1034, %v1042
    %v1044 = vlaneseq
    %v1045 = vshrl.u32 %v1044, 7
    %v1046 = vsub.s32 2, %v1045
    %v1047 = vrot.slane %v1034, %v1046
    %v1048 = vlaneseq
    %v1049 = vshrl.u32 %v1048, 7
    %v1050 = vsub.s32 3, %v1049
    %v1051 = vrot.slane %v1034, %v1050
    %v1056 = vadd.f32 %v1030, %v1039
    %v1057 = vadd.f32 %v1031, %v1043
    %v1058 = vadd.f32 %v1032, %v1047
    %v1059 = vadd.f32 %v1033, %v1051
    %v1060 = vmax.f32 %v1056, 0.0
    %v1061 = vmax.f32 %v1057, 0.0
    %v1062 = vmax.f32 %v1058, 0.0
    %v1063 = vmax.f32 %v1059, 0.0
    %v1064 = vpack.c.bf16 %v1060, %v1060
    %v1065 = vpack.c.bf16 %v1061, %v1061
    %v1066 = vpack.c.bf16 %v1062, %v1062
    %v1067 = vpack.c.bf16 %v1063, %v1063
    %v1068 = vld [vmem:[%s9] sm:$0xff]
    %v1069 = vld [vmem:[%s9 + $0x8] sm:$0xff]
    %v1070 = vld [vmem:[%s9 + $0x10] sm:$0xff]
    %v1071 = vld [vmem:[%s9 + $0x18] sm:$0xff]
    %v1072 = vld [vmem:[%s9 + $0x20] sm:$0xff]
    %v1073 = vld [vmem:[%s9 + $0x28] sm:$0xff]
    %v1074 = vld [vmem:[%s9 + $0x30] sm:$0xff]
    %v1075 = vld [vmem:[%s9 + $0x38] sm:$0xff]
    %v1076 = vld [vmem:[%s9 + $0x40] sm:$0xff]
    %v1077 = vld [vmem:[%s9 + $0x48] sm:$0xff]
    %v1078 = vld [vmem:[%s9 + $0x50] sm:$0xff]
    %v1079 = vld [vmem:[%s9 + $0x58] sm:$0xff]
    %v1080 = vld [vmem:[%s9 + $0x60] sm:$0xff]
    %v1081 = vld [vmem:[%s9 + $0x68] sm:$0xff]
    %v1082 = vld [vmem:[%s9 + $0x70] sm:$0xff]
    %v1083 = vld [vmem:[%s9 + $0x78] sm:$0xff]
    %v1084 = vld [vmem:[%s9 + $0x80] sm:$0xff]
    %v1085 = vld [vmem:[%s9 + $0x88] sm:$0xff]
    %v1086 = vld [vmem:[%s9 + $0x90] sm:$0xff]
    %v1087 = vld [vmem:[%s9 + $0x98] sm:$0xff]
    %v1088 = vld [vmem:[%s9 + $0xa0] sm:$0xff]
    %v1089 = vld [vmem:[%s9 + $0xa8] sm:$0xff]
    %v1090 = vld [vmem:[%s9 + $0xb0] sm:$0xff]
    %v1091 = vld [vmem:[%s9 + $0xb8] sm:$0xff]
    %v1092 = vld [vmem:[%s9 + $0xc0] sm:$0xff]
    %v1093 = vld [vmem:[%s9 + $0xc8] sm:$0xff]
    %v1094 = vld [vmem:[%s9 + $0xd0] sm:$0xff]
    %v1095 = vld [vmem:[%s9 + $0xd8] sm:$0xff]
    %v1096 = vld [vmem:[%s9 + $0xe0] sm:$0xff]
    %v1097 = vld [vmem:[%s9 + $0xe8] sm:$0xff]
    %v1098 = vld [vmem:[%s9 + $0xf0] sm:$0xff]
    %v1099 = vld [vmem:[%s9 + $0xf8] sm:$0xff]
    %v1100 = vld [vmem:[%s9 + $0x100] sm:$0xff]
    %v1101 = vld [vmem:[%s9 + $0x108] sm:$0xff]
    %v1102 = vld [vmem:[%s9 + $0x110] sm:$0xff]
    %v1103 = vld [vmem:[%s9 + $0x118] sm:$0xff]
    %v1104 = vld [vmem:[%s9 + $0x120] sm:$0xff]
    %v1105 = vld [vmem:[%s9 + $0x128] sm:$0xff]
    %v1106 = vld [vmem:[%s9 + $0x130] sm:$0xff]
    %v1107 = vld [vmem:[%s9 + $0x138] sm:$0xff]
    %v1108 = vld [vmem:[%s9 + $0x140] sm:$0xff]
    %v1109 = vld [vmem:[%s9 + $0x148] sm:$0xff]
    %v1110 = vld [vmem:[%s9 + $0x150] sm:$0xff]
    %v1111 = vld [vmem:[%s9 + $0x158] sm:$0xff]
    %v1112 = vld [vmem:[%s9 + $0x160] sm:$0xff]
    %v1113 = vld [vmem:[%s9 + $0x168] sm:$0xff]
    %v1114 = vld [vmem:[%s9 + $0x170] sm:$0xff]
    %v1115 = vld [vmem:[%s9 + $0x178] sm:$0xff]
    %v1116 = vld [vmem:[%s9 + $0x180] sm:$0xff]
    %v1117 = vld [vmem:[%s9 + $0x188] sm:$0xff]
    %v1118 = vld [vmem:[%s9 + $0x190] sm:$0xff]
    %v1119 = vld [vmem:[%s9 + $0x198] sm:$0xff]
    %v1120 = vld [vmem:[%s9 + $0x1a0] sm:$0xff]
    %v1121 = vld [vmem:[%s9 + $0x1a8] sm:$0xff]
    %v1122 = vld [vmem:[%s9 + $0x1b0] sm:$0xff]
    %v1123 = vld [vmem:[%s9 + $0x1b8] sm:$0xff]
    %v1124 = vld [vmem:[%s9 + $0x1c0] sm:$0xff]
    %v1125 = vld [vmem:[%s9 + $0x1c8] sm:$0xff]
    %v1126 = vld [vmem:[%s9 + $0x1d0] sm:$0xff]
    %v1127 = vld [vmem:[%s9 + $0x1d8] sm:$0xff]
    %v1128 = vld [vmem:[%s9 + $0x1e0] sm:$0xff]
    %v1129 = vld [vmem:[%s9 + $0x1e8] sm:$0xff]
    %v1130 = vld [vmem:[%s9 + $0x1f0] sm:$0xff]
    %v1131 = vld [vmem:[%s9 + $0x1f8] sm:$0xff]
    %v1132 = vld [vmem:[%s9 + $0x200] sm:$0xff]
    %v1133 = vld [vmem:[%s9 + $0x208] sm:$0xff]
    %v1134 = vld [vmem:[%s9 + $0x210] sm:$0xff]
    %v1135 = vld [vmem:[%s9 + $0x218] sm:$0xff]
    %v1136 = vld [vmem:[%s9 + $0x220] sm:$0xff]
    %v1137 = vld [vmem:[%s9 + $0x228] sm:$0xff]
    %v1138 = vld [vmem:[%s9 + $0x230] sm:$0xff]
    %v1139 = vld [vmem:[%s9 + $0x238] sm:$0xff]
    %v1140 = vld [vmem:[%s9 + $0x240] sm:$0xff]
    %v1141 = vld [vmem:[%s9 + $0x248] sm:$0xff]
    %v1142 = vld [vmem:[%s9 + $0x250] sm:$0xff]
    %v1143 = vld [vmem:[%s9 + $0x258] sm:$0xff]
    %v1144 = vld [vmem:[%s9 + $0x260] sm:$0xff]
    %v1145 = vld [vmem:[%s9 + $0x268] sm:$0xff]
    %v1146 = vld [vmem:[%s9 + $0x270] sm:$0xff]
    %v1147 = vld [vmem:[%s9 + $0x278] sm:$0xff]
    %v1148 = vld [vmem:[%s9 + $0x280] sm:$0xff]
    %v1149 = vld [vmem:[%s9 + $0x288] sm:$0xff]
    %v1150 = vld [vmem:[%s9 + $0x290] sm:$0xff]
    %v1151 = vld [vmem:[%s9 + $0x298] sm:$0xff]
    %v1152 = vld [vmem:[%s9 + $0x2a0] sm:$0xff]
    %v1153 = vld [vmem:[%s9 + $0x2a8] sm:$0xff]
    %v1154 = vld [vmem:[%s9 + $0x2b0] sm:$0xff]
    %v1155 = vld [vmem:[%s9 + $0x2b8] sm:$0xff]
    %v1156 = vld [vmem:[%s9 + $0x2c0] sm:$0xff]
    %v1157 = vld [vmem:[%s9 + $0x2c8] sm:$0xff]
    %v1158 = vld [vmem:[%s9 + $0x2d0] sm:$0xff]
    %v1159 = vld [vmem:[%s9 + $0x2d8] sm:$0xff]
    %v1160 = vld [vmem:[%s9 + $0x2e0] sm:$0xff]
    %v1161 = vld [vmem:[%s9 + $0x2e8] sm:$0xff]
    %v1162 = vld [vmem:[%s9 + $0x2f0] sm:$0xff]
    %v1163 = vld [vmem:[%s9 + $0x2f8] sm:$0xff]
    %v1164 = vld [vmem:[%s9 + $0x300] sm:$0xff]
    %v1165 = vld [vmem:[%s9 + $0x308] sm:$0xff]
    %v1166 = vld [vmem:[%s9 + $0x310] sm:$0xff]
    %v1167 = vld [vmem:[%s9 + $0x318] sm:$0xff]
    %v1168 = vld [vmem:[%s9 + $0x320] sm:$0xff]
    %v1169 = vld [vmem:[%s9 + $0x328] sm:$0xff]
    %v1170 = vld [vmem:[%s9 + $0x330] sm:$0xff]
    %v1171 = vld [vmem:[%s9 + $0x338] sm:$0xff]
    %v1172 = vld [vmem:[%s9 + $0x340] sm:$0xff]
    %v1173 = vld [vmem:[%s9 + $0x348] sm:$0xff]
    %v1174 = vld [vmem:[%s9 + $0x350] sm:$0xff]
    %v1175 = vld [vmem:[%s9 + $0x358] sm:$0xff]
    %v1176 = vld [vmem:[%s9 + $0x360] sm:$0xff]
    %v1177 = vld [vmem:[%s9 + $0x368] sm:$0xff]
    %v1178 = vld [vmem:[%s9 + $0x370] sm:$0xff]
    %v1179 = vld [vmem:[%s9 + $0x378] sm:$0xff]
    %v1180 = vld [vmem:[%s9 + $0x380] sm:$0xff]
    %v1181 = vld [vmem:[%s9 + $0x388] sm:$0xff]
    %v1182 = vld [vmem:[%s9 + $0x390] sm:$0xff]
    %v1183 = vld [vmem:[%s9 + $0x398] sm:$0xff]
    %v1184 = vld [vmem:[%s9 + $0x3a0] sm:$0xff]
    %v1185 = vld [vmem:[%s9 + $0x3a8] sm:$0xff]
    %v1186 = vld [vmem:[%s9 + $0x3b0] sm:$0xff]
    %v1187 = vld [vmem:[%s9 + $0x3b8] sm:$0xff]
    %v1188 = vld [vmem:[%s9 + $0x3c0] sm:$0xff]
    %v1189 = vld [vmem:[%s9 + $0x3c8] sm:$0xff]
    %v1190 = vld [vmem:[%s9 + $0x3d0] sm:$0xff]
    %v1191 = vld [vmem:[%s9 + $0x3d8] sm:$0xff]
    %v1192 = vld [vmem:[%s9 + $0x3e0] sm:$0xff]
    %v1193 = vld [vmem:[%s9 + $0x3e8] sm:$0xff]
    %v1194 = vld [vmem:[%s9 + $0x3f0] sm:$0xff]
    %v1195 = vld [vmem:[%s9 + $0x3f8] sm:$0xff]
    %v1196 = vpack.c.bf16 %v1070, %v1068
    %v1197 = vpack.c.bf16 %v1071, %v1069
    %v1198 = vpack.c.bf16 %v1074, %v1072
    %v1199 = vpack.c.bf16 %v1075, %v1073
    %v1200 = vpack.c.bf16 %v1078, %v1076
    %v1201 = vpack.c.bf16 %v1079, %v1077
    %v1202 = vpack.c.bf16 %v1082, %v1080
    %v1203 = vpack.c.bf16 %v1083, %v1081
    %v1204 = vpack.c.bf16 %v1086, %v1084
    %v1205 = vpack.c.bf16 %v1087, %v1085
    %v1206 = vpack.c.bf16 %v1090, %v1088
    %v1207 = vpack.c.bf16 %v1091, %v1089
    %v1208 = vpack.c.bf16 %v1094, %v1092
    %v1209 = vpack.c.bf16 %v1095, %v1093
    %v1210 = vpack.c.bf16 %v1098, %v1096
    %v1211 = vpack.c.bf16 %v1099, %v1097
    %v1212 = vpack.c.bf16 %v1102, %v1100
    %v1213 = vpack.c.bf16 %v1103, %v1101
    %v1214 = vpack.c.bf16 %v1106, %v1104
    %v1215 = vpack.c.bf16 %v1107, %v1105
    %v1216 = vpack.c.bf16 %v1110, %v1108
    %v1217 = vpack.c.bf16 %v1111, %v1109
    %v1218 = vpack.c.bf16 %v1114, %v1112
    %v1219 = vpack.c.bf16 %v1115, %v1113
    %v1220 = vpack.c.bf16 %v1118, %v1116
    %v1221 = vpack.c.bf16 %v1119, %v1117
    %v1222 = vpack.c.bf16 %v1122, %v1120
    %v1223 = vpack.c.bf16 %v1123, %v1121
    %v1224 = vpack.c.bf16 %v1126, %v1124
    %v1225 = vpack.c.bf16 %v1127, %v1125
    %v1226 = vpack.c.bf16 %v1130, %v1128
    %v1227 = vpack.c.bf16 %v1131, %v1129
    %v1228 = vpack.c.bf16 %v1134, %v1132
    %v1229 = vpack.c.bf16 %v1135, %v1133
    %v1230 = vpack.c.bf16 %v1138, %v1136
    %v1231 = vpack.c.bf16 %v1139, %v1137
    %v1232 = vpack.c.bf16 %v1142, %v1140
    %v1233 = vpack.c.bf16 %v1143, %v1141
    %v1234 = vpack.c.bf16 %v1146, %v1144
    %v1235 = vpack.c.bf16 %v1147, %v1145
    %v1236 = vpack.c.bf16 %v1150, %v1148
    %v1237 = vpack.c.bf16 %v1151, %v1149
    %v1238 = vpack.c.bf16 %v1154, %v1152
    %v1239 = vpack.c.bf16 %v1155, %v1153
    %v1240 = vpack.c.bf16 %v1158, %v1156
    %v1241 = vpack.c.bf16 %v1159, %v1157
    %v1242 = vpack.c.bf16 %v1162, %v1160
    %v1243 = vpack.c.bf16 %v1163, %v1161
    %v1244 = vpack.c.bf16 %v1166, %v1164
    %v1245 = vpack.c.bf16 %v1167, %v1165
    %v1246 = vpack.c.bf16 %v1170, %v1168
    %v1247 = vpack.c.bf16 %v1171, %v1169
    %v1248 = vpack.c.bf16 %v1174, %v1172
    %v1249 = vpack.c.bf16 %v1175, %v1173
    %v1250 = vpack.c.bf16 %v1178, %v1176
    %v1251 = vpack.c.bf16 %v1179, %v1177
    %v1252 = vpack.c.bf16 %v1182, %v1180
    %v1253 = vpack.c.bf16 %v1183, %v1181
    %v1254 = vpack.c.bf16 %v1186, %v1184
    %v1255 = vpack.c.bf16 %v1187, %v1185
    %v1256 = vpack.c.bf16 %v1190, %v1188
    %v1257 = vpack.c.bf16 %v1191, %v1189
    %v1258 = vpack.c.bf16 %v1194, %v1192
    %v1259 = vpack.c.bf16 %v1195, %v1193
    %1260 = vmatprep.subr.bf16.mxu0 %v1197
    %1261 = vmatpush1.bf16.msra.mxu0 %v1196
    %1262 = vmatprep.subr.bf16.mxu0 %v1199
    %1263 = vmatpush1.bf16.msra.mxu0 %v1198
    %1264 = vmatprep.subr.bf16.mxu0 %v1201
    %1265 = vmatpush1.bf16.msra.mxu0 %v1200
    %1266 = vmatprep.subr.bf16.mxu0 %v1203
    %1267 = vmatpush1.bf16.msra.mxu0 %v1202
    %1268 = vmatprep.subr.bf16.mxu0 %v1205
    %1269 = vmatpush1.bf16.msra.mxu0 %v1204
    %1270 = vmatprep.subr.bf16.mxu0 %v1207
    %1271 = vmatpush1.bf16.msra.mxu0 %v1206
    %1272 = vmatprep.subr.bf16.mxu0 %v1209
    %1273 = vmatpush1.bf16.msra.mxu0 %v1208
    %1274 = vmatprep.subr.bf16.mxu0 %v1211
    %1275 = vmatpush1.bf16.msra.mxu0 %v1210
    %1276 = vmatprep.subr.bf16.mxu0 %v1213
    %1277 = vmatpush1.bf16.msra.mxu0 %v1212
    %1278 = vmatprep.subr.bf16.mxu0 %v1215
    %1279 = vmatpush1.bf16.msra.mxu0 %v1214
    %1280 = vmatprep.subr.bf16.mxu0 %v1217
    %1281 = vmatpush1.bf16.msra.mxu0 %v1216
    %1282 = vmatprep.subr.bf16.mxu0 %v1219
    %1283 = vmatpush1.bf16.msra.mxu0 %v1218
    %1284 = vmatprep.subr.bf16.mxu0 %v1221
    %1285 = vmatpush1.bf16.msra.mxu0 %v1220
    %1286 = vmatprep.subr.bf16.mxu0 %v1223
    %1287 = vmatpush1.bf16.msra.mxu0 %v1222
    %1288 = vmatprep.subr.bf16.mxu0 %v1225
    %1289 = vmatpush1.bf16.msra.mxu0 %v1224
    %1290 = vmatprep.subr.bf16.mxu0 %v1227
    %1291 = vmatpush1.bf16.msra.mxu0 %v1226
    %1292 = vmatprep.mubr.bf16.mxu0 %v1065
    %1293 = vmatmul.mubr.bf16.gmra.mrb[0].mxu0 %v1064
    %v1294 = vpop.f32.mrb[0].mxu0
    %v1295 = vadd.f32 0.0, %v1294
    %v1296 = vpop.f32.mrb[0].mxu0
    %v1297 = vadd.f32 0.0, %v1296
    %v1298 = vpop.f32.mrb[0].mxu0
    %v1299 = vpop.f32.mrb[0].mxu0
    %1300 = vdwg.mxu0
    %1301 = vmatprep.subr.bf16.mxu0 %v1229
    %1302 = vmatpush1.bf16.msra.mxu0 %v1228
    %1303 = vmatprep.subr.bf16.mxu0 %v1231
    %1304 = vmatpush1.bf16.msra.mxu0 %v1230
    %1305 = vmatprep.subr.bf16.mxu0 %v1233
    %1306 = vmatpush1.bf16.msra.mxu0 %v1232
    %1307 = vmatprep.subr.bf16.mxu0 %v1235
    %1308 = vmatpush1.bf16.msra.mxu0 %v1234
    %1309 = vmatprep.subr.bf16.mxu0 %v1237
    %1310 = vmatpush1.bf16.msra.mxu0 %v1236
    %1311 = vmatprep.subr.bf16.mxu0 %v1239
    %1312 = vmatpush1.bf16.msra.mxu0 %v1238
    %1313 = vmatprep.subr.bf16.mxu0 %v1241
    %1314 = vmatpush1.bf16.msra.mxu0 %v1240
    %1315 = vmatprep.subr.bf16.mxu0 %v1243
    %1316 = vmatpush1.bf16.msra.mxu0 %v1242
    %1317 = vmatprep.subr.bf16.mxu0 %v1245
    %1318 = vmatpush1.bf16.msra.mxu0 %v1244
    %1319 = vmatprep.subr.bf16.mxu0 %v1247
    %1320 = vmatpush1.bf16.msra.mxu0 %v1246
    %1321 = vmatprep.subr.bf16.mxu0 %v1249
    %1322 = vmatpush1.bf16.msra.mxu0 %v1248
    %1323 = vmatprep.subr.bf16.mxu0 %v1251
    %1324 = vmatpush1.bf16.msra.mxu0 %v1250
    %1325 = vmatprep.subr.bf16.mxu0 %v1253
    %1326 = vmatpush1.bf16.msra.mxu0 %v1252
    %1327 = vmatprep.subr.bf16.mxu0 %v1255
    %1328 = vmatpush1.bf16.msra.mxu0 %v1254
    %1329 = vmatprep.subr.bf16.mxu0 %v1257
    %1330 = vmatpush1.bf16.msra.mxu0 %v1256
    %1331 = vmatprep.subr.bf16.mxu0 %v1259
    %1332 = vmatpush1.bf16.msra.mxu0 %v1258
    %1333 = vmatprep.mubr.bf16.mxu0 %v1067
    %1334 = vmatmul.mubr.bf16.gmra.mrb[0].mxu0 %v1066
    %v1335 = vpop.f32.mrb[0].mxu0
    %v1336 = vadd.f32 %v1295, %v1335
    %v1337 = vpop.f32.mrb[0].mxu0
    %v1338 = vadd.f32 %v1297, %v1337
    %v1339 = vpop.f32.mrb[0].mxu0
    %v1340 = vpop.f32.mrb[0].mxu0
    %1341 = vdwg.mxu0
    %v1342 = vpack.c.bf16 %v1336, %v1336
    %v1343 = vpack.c.bf16 %v1338, %v1338
    %v1344 = vld [vmem:[%s10] sm:$0xff]
    %v1345 = vld [vmem:[%s10 + $0x8] sm:$0xff]
    %v1346 = vld [vmem:[%s10 + $0x10] sm:$0xff]
    %v1347 = vld [vmem:[%s10 + $0x18] sm:$0xff]
    %v1348 = vld [vmem:[%s10 + $0x20] sm:$0xff]
    %v1349 = vld [vmem:[%s10 + $0x28] sm:$0xff]
    %v1350 = vld [vmem:[%s10 + $0x30] sm:$0xff]
    %v1351 = vld [vmem:[%s10 + $0x38] sm:$0xff]
    %v1352 = vld [vmem:[%s10 + $0x40] sm:$0xff]
    %v1353 = vld [vmem:[%s10 + $0x48] sm:$0xff]
    %v1354 = vld [vmem:[%s10 + $0x50] sm:$0xff]
    %v1355 = vld [vmem:[%s10 + $0x58] sm:$0xff]
    %v1356 = vld [vmem:[%s10 + $0x60] sm:$0xff]
    %v1357 = vld [vmem:[%s10 + $0x68] sm:$0xff]
    %v1358 = vld [vmem:[%s10 + $0x70] sm:$0xff]
    %v1359 = vld [vmem:[%s10 + $0x78] sm:$0xff]
    %v1360 = vld [vmem:[%s10 + $0x80] sm:$0xff]
    %v1361 = vld [vmem:[%s10 + $0x88] sm:$0xff]
    %v1362 = vld [vmem:[%s10 + $0x90] sm:$0xff]
    %v1363 = vld [vmem:[%s10 + $0x98] sm:$0xff]
    %v1364 = vld [vmem:[%s10 + $0xa0] sm:$0xff]
    %v1365 = vld [vmem:[%s10 + $0xa8] sm:$0xff]
    %v1366 = vld [vmem:[%s10 + $0xb0] sm:$0xff]
    %v1367 = vld [vmem:[%s10 + $0xb8] sm:$0xff]
    %v1368 = vld [vmem:[%s10 + $0xc0] sm:$0xff]
    %v1369 = vld [vmem:[%s10 + $0xc8] sm:$0xff]
    %v1370 = vld [vmem:[%s10 + $0xd0] sm:$0xff]
    %v1371 = vld [vmem:[%s10 + $0xd8] sm:$0xff]
    %v1372 = vld [vmem:[%s10 + $0xe0] sm:$0xff]
    %v1373 = vld [vmem:[%s10 + $0xe8] sm:$0xff]
    %v1374 = vld [vmem:[%s10 + $0xf0] sm:$0xff]
    %v1375 = vld [vmem:[%s10 + $0xf8] sm:$0xff]
    %v1376 = vld [vmem:[%s10 + $0x100] sm:$0xff]
    %v1377 = vld [vmem:[%s10 + $0x108] sm:$0xff]
    %v1378 = vld [vmem:[%s10 + $0x110] sm:$0xff]
    %v1379 = vld [vmem:[%s10 + $0x118] sm:$0xff]
    %v1380 = vld [vmem:[%s10 + $0x120] sm:$0xff]
    %v1381 = vld [vmem:[%s10 + $0x128] sm:$0xff]
    %v1382 = vld [vmem:[%s10 + $0x130] sm:$0xff]
    %v1383 = vld [vmem:[%s10 + $0x138] sm:$0xff]
    %v1384 = vld [vmem:[%s10 + $0x140] sm:$0xff]
    %v1385 = vld [vmem:[%s10 + $0x148] sm:$0xff]
    %v1386 = vld [vmem:[%s10 + $0x150] sm:$0xff]
    %v1387 = vld [vmem:[%s10 + $0x158] sm:$0xff]
    %v1388 = vld [vmem:[%s10 + $0x160] sm:$0xff]
    %v1389 = vld [vmem:[%s10 + $0x168] sm:$0xff]
    %v1390 = vld [vmem:[%s10 + $0x170] sm:$0xff]
    %v1391 = vld [vmem:[%s10 + $0x178] sm:$0xff]
    %v1392 = vld [vmem:[%s10 + $0x180] sm:$0xff]
    %v1393 = vld [vmem:[%s10 + $0x188] sm:$0xff]
    %v1394 = vld [vmem:[%s10 + $0x190] sm:$0xff]
    %v1395 = vld [vmem:[%s10 + $0x198] sm:$0xff]
    %v1396 = vld [vmem:[%s10 + $0x1a0] sm:$0xff]
    %v1397 = vld [vmem:[%s10 + $0x1a8] sm:$0xff]
    %v1398 = vld [vmem:[%s10 + $0x1b0] sm:$0xff]
    %v1399 = vld [vmem:[%s10 + $0x1b8] sm:$0xff]
    %v1400 = vld [vmem:[%s10 + $0x1c0] sm:$0xff]
    %v1401 = vld [vmem:[%s10 + $0x1c8] sm:$0xff]
    %v1402 = vld [vmem:[%s10 + $0x1d0] sm:$0xff]
    %v1403 = vld [vmem:[%s10 + $0x1d8] sm:$0xff]
    %v1404 = vld [vmem:[%s10 + $0x1e0] sm:$0xff]
    %v1405 = vld [vmem:[%s10 + $0x1e8] sm:$0xff]
    %v1406 = vld [vmem:[%s10 + $0x1f0] sm:$0xff]
    %v1407 = vld [vmem:[%s10 + $0x1f8] sm:$0xff]
    %v1408 = vld [vmem:[%s10 + $0x200] sm:$0xff]
    %v1409 = vld [vmem:[%s10 + $0x208] sm:$0xff]
    %v1410 = vld [vmem:[%s10 + $0x210] sm:$0xff]
    %v1411 = vld [vmem:[%s10 + $0x218] sm:$0xff]
    %v1412 = vld [vmem:[%s10 + $0x220] sm:$0xff]
    %v1413 = vld [vmem:[%s10 + $0x228] sm:$0xff]
    %v1414 = vld [vmem:[%s10 + $0x230] sm:$0xff]
    %v1415 = vld [vmem:[%s10 + $0x238] sm:$0xff]
    %v1416 = vld [vmem:[%s10 + $0x240] sm:$0xff]
    %v1417 = vld [vmem:[%s10 + $0x248] sm:$0xff]
    %v1418 = vld [vmem:[%s10 + $0x250] sm:$0xff]
    %v1419 = vld [vmem:[%s10 + $0x258] sm:$0xff]
    %v1420 = vld [vmem:[%s10 + $0x260] sm:$0xff]
    %v1421 = vld [vmem:[%s10 + $0x268] sm:$0xff]
    %v1422 = vld [vmem:[%s10 + $0x270] sm:$0xff]
    %v1423 = vld [vmem:[%s10 + $0x278] sm:$0xff]
    %v1424 = vld [vmem:[%s10 + $0x280] sm:$0xff]
    %v1425 = vld [vmem:[%s10 + $0x288] sm:$0xff]
    %v1426 = vld [vmem:[%s10 + $0x290] sm:$0xff]
    %v1427 = vld [vmem:[%s10 + $0x298] sm:$0xff]
    %v1428 = vld [vmem:[%s10 + $0x2a0] sm:$0xff]
    %v1429 = vld [vmem:[%s10 + $0x2a8] sm:$0xff]
    %v1430 = vld [vmem:[%s10 + $0x2b0] sm:$0xff]
    %v1431 = vld [vmem:[%s10 + $0x2b8] sm:$0xff]
    %v1432 = vld [vmem:[%s10 + $0x2c0] sm:$0xff]
    %v1433 = vld [vmem:[%s10 + $0x2c8] sm:$0xff]
    %v1434 = vld [vmem:[%s10 + $0x2d0] sm:$0xff]
    %v1435 = vld [vmem:[%s10 + $0x2d8] sm:$0xff]
    %v1436 = vld [vmem:[%s10 + $0x2e0] sm:$0xff]
    %v1437 = vld [vmem:[%s10 + $0x2e8] sm:$0xff]
    %v1438 = vld [vmem:[%s10 + $0x2f0] sm:$0xff]
    %v1439 = vld [vmem:[%s10 + $0x2f8] sm:$0xff]
    %v1440 = vld [vmem:[%s10 + $0x300] sm:$0xff]
    %v1441 = vld [vmem:[%s10 + $0x308] sm:$0xff]
    %v1442 = vld [vmem:[%s10 + $0x310] sm:$0xff]
    %v1443 = vld [vmem:[%s10 + $0x318] sm:$0xff]
    %v1444 = vld [vmem:[%s10 + $0x320] sm:$0xff]
    %v1445 = vld [vmem:[%s10 + $0x328] sm:$0xff]
    %v1446 = vld [vmem:[%s10 + $0x330] sm:$0xff]
    %v1447 = vld [vmem:[%s10 + $0x338] sm:$0xff]
    %v1448 = vld [vmem:[%s10 + $0x340] sm:$0xff]
    %v1449 = vld [vmem:[%s10 + $0x348] sm:$0xff]
    %v1450 = vld [vmem:[%s10 + $0x350] sm:$0xff]
    %v1451 = vld [vmem:[%s10 + $0x358] sm:$0xff]
    %v1452 = vld [vmem:[%s10 + $0x360] sm:$0xff]
    %v1453 = vld [vmem:[%s10 + $0x368] sm:$0xff]
    %v1454 = vld [vmem:[%s10 + $0x370] sm:$0xff]
    %v1455 = vld [vmem:[%s10 + $0x378] sm:$0xff]
    %v1456 = vld [vmem:[%s10 + $0x380] sm:$0xff]
    %v1457 = vld [vmem:[%s10 + $0x388] sm:$0xff]
    %v1458 = vld [vmem:[%s10 + $0x390] sm:$0xff]
    %v1459 = vld [vmem:[%s10 + $0x398] sm:$0xff]
    %v1460 = vld [vmem:[%s10 + $0x3a0] sm:$0xff]
    %v1461 = vld [vmem:[%s10 + $0x3a8] sm:$0xff]
    %v1462 = vld [vmem:[%s10 + $0x3b0] sm:$0xff]
    %v1463 = vld [vmem:[%s10 + $0x3b8] sm:$0xff]
    %v1464 = vld [vmem:[%s10 + $0x3c0] sm:$0xff]
    %v1465 = vld [vmem:[%s10 + $0x3c8] sm:$0xff]
    %v1466 = vld [vmem:[%s10 + $0x3d0] sm:$0xff]
    %v1467 = vld [vmem:[%s10 + $0x3d8] sm:$0xff]
    %v1468 = vld [vmem:[%s10 + $0x3e0] sm:$0xff]
    %v1469 = vld [vmem:[%s10 + $0x3e8] sm:$0xff]
    %v1470 = vld [vmem:[%s10 + $0x3f0] sm:$0xff]
    %v1471 = vld [vmem:[%s10 + $0x3f8] sm:$0xff]
    %v1472 = vpack.c.bf16 %v1348, %v1344
    %v1473 = vpack.c.bf16 %v1349, %v1345
    %v1474 = vpack.c.bf16 %v1350, %v1346
    %v1475 = vpack.c.bf16 %v1351, %v1347
    %v1476 = vpack.c.bf16 %v1356, %v1352
    %v1477 = vpack.c.bf16 %v1357, %v1353
    %v1478 = vpack.c.bf16 %v1358, %v1354
    %v1479 = vpack.c.bf16 %v1359, %v1355
    %v1480 = vpack.c.bf16 %v1364, %v1360
    %v1481 = vpack.c.bf16 %v1365, %v1361
    %v1482 = vpack.c.bf16 %v1366, %v1362
    %v1483 = vpack.c.bf16 %v1367, %v1363
    %v1484 = vpack.c.bf16 %v1372, %v1368
    %v1485 = vpack.c.bf16 %v1373, %v1369
    %v1486 = vpack.c.bf16 %v1374, %v1370
    %v1487 = vpack.c.bf16 %v1375, %v1371
    %v1488 = vpack.c.bf16 %v1380, %v1376
    %v1489 = vpack.c.bf16 %v1381, %v1377
    %v1490 = vpack.c.bf16 %v1382, %v1378
    %v1491 = vpack.c.bf16 %v1383, %v1379
    %v1492 = vpack.c.bf16 %v1388, %v1384
    %v1493 = vpack.c.bf16 %v1389, %v1385
    %v1494 = vpack.c.bf16 %v1390, %v1386
    %v1495 = vpack.c.bf16 %v1391, %v1387
    %v1496 = vpack.c.bf16 %v1396, %v1392
    %v1497 = vpack.c.bf16 %v1397, %v1393
    %v1498 = vpack.c.bf16 %v1398, %v1394
    %v1499 = vpack.c.bf16 %v1399, %v1395
    %v1500 = vpack.c.bf16 %v1404, %v1400
    %v1501 = vpack.c.bf16 %v1405, %v1401
    %v1502 = vpack.c.bf16 %v1406, %v1402
    %v1503 = vpack.c.bf16 %v1407, %v1403
    %v1504 = vpack.c.bf16 %v1412, %v1408
    %v1505 = vpack.c.bf16 %v1413, %v1409
    %v1506 = vpack.c.bf16 %v1414, %v1410
    %v1507 = vpack.c.bf16 %v1415, %v1411
    %v1508 = vpack.c.bf16 %v1420, %v1416
    %v1509 = vpack.c.bf16 %v1421, %v1417
    %v1510 = vpack.c.bf16 %v1422, %v1418
    %v1511 = vpack.c.bf16 %v1423, %v1419
    %v1512 = vpack.c.bf16 %v1428, %v1424
    %v1513 = vpack.c.bf16 %v1429, %v1425
    %v1514 = vpack.c.bf16 %v1430, %v1426
    %v1515 = vpack.c.bf16 %v1431, %v1427
    %v1516 = vpack.c.bf16 %v1436, %v1432
    %v1517 = vpack.c.bf16 %v1437, %v1433
    %v1518 = vpack.c.bf16 %v1438, %v1434
    %v1519 = vpack.c.bf16 %v1439, %v1435
    %v1520 = vpack.c.bf16 %v1444, %v1440
    %v1521 = vpack.c.bf16 %v1445, %v1441
    %v1522 = vpack.c.bf16 %v1446, %v1442
    %v1523 = vpack.c.bf16 %v1447, %v1443
    %v1524 = vpack.c.bf16 %v1452, %v1448
    %v1525 = vpack.c.bf16 %v1453, %v1449
    %v1526 = vpack.c.bf16 %v1454, %v1450
    %v1527 = vpack.c.bf16 %v1455, %v1451
    %v1528 = vpack.c.bf16 %v1460, %v1456
    %v1529 = vpack.c.bf16 %v1461, %v1457
    %v1530 = vpack.c.bf16 %v1462, %v1458
    %v1531 = vpack.c.bf16 %v1463, %v1459
    %v1532 = vpack.c.bf16 %v1468, %v1464
    %v1533 = vpack.c.bf16 %v1469, %v1465
    %v1534 = vpack.c.bf16 %v1470, %v1466
    %v1535 = vpack.c.bf16 %v1471, %v1467
    %1536 = vmatprep.subr.bf16.mxu0 %v1473
    %1537 = vmatpush1.bf16.msra.mxu0 %v1472
    %1538 = vmatprep.subr.bf16.mxu0 %v1477
    %1539 = vmatpush1.bf16.msra.mxu0 %v1476
    %1540 = vmatprep.subr.bf16.mxu0 %v1481
    %1541 = vmatpush1.bf16.msra.mxu0 %v1480
    %1542 = vmatprep.subr.bf16.mxu0 %v1485
    %1543 = vmatpush1.bf16.msra.mxu0 %v1484
    %1544 = vmatprep.subr.bf16.mxu0 %v1489
    %1545 = vmatpush1.bf16.msra.mxu0 %v1488
    %1546 = vmatprep.subr.bf16.mxu0 %v1493
    %1547 = vmatpush1.bf16.msra.mxu0 %v1492
    %1548 = vmatprep.subr.bf16.mxu0 %v1497
    %1549 = vmatpush1.bf16.msra.mxu0 %v1496
    %1550 = vmatprep.subr.bf16.mxu0 %v1501
    %1551 = vmatpush1.bf16.msra.mxu0 %v1500
    %1552 = vmatprep.subr.bf16.mxu0 %v1505
    %1553 = vmatpush1.bf16.msra.mxu0 %v1504
    %1554 = vmatprep.subr.bf16.mxu0 %v1509
    %1555 = vmatpush1.bf16.msra.mxu0 %v1508
    %1556 = vmatprep.subr.bf16.mxu0 %v1513
    %1557 = vmatpush1.bf16.msra.mxu0 %v1512
    %1558 = vmatprep.subr.bf16.mxu0 %v1517
    %1559 = vmatpush1.bf16.msra.mxu0 %v1516
    %1560 = vmatprep.subr.bf16.mxu0 %v1521
    %1561 = vmatpush1.bf16.msra.mxu0 %v1520
    %1562 = vmatprep.subr.bf16.mxu0 %v1525
    %1563 = vmatpush1.bf16.msra.mxu0 %v1524
    %1564 = vmatprep.subr.bf16.mxu0 %v1529
    %1565 = vmatpush1.bf16.msra.mxu0 %v1528
    %1566 = vmatprep.subr.bf16.mxu0 %v1533
    %1567 = vmatpush1.bf16.msra.mxu0 %v1532
    %1568 = vmatprep.mubr.bf16.mxu0 %v1343
    %1569 = vmatmul.mubr.bf16.gmra.mrb[0].mxu0 %v1342
    %v1570 = vpop.f32.mrb[0].mxu0
    %v1571 = vadd.f32 0.0, %v1570
    %v1572 = vpop.f32.mrb[0].mxu0
    %v1573 = vadd.f32 0.0, %v1572
    %v1574 = vpop.f32.mrb[0].mxu0
    %v1575 = vpop.f32.mrb[0].mxu0
    %1576 = vdwg.mxu0
    %1577 = vmatprep.subr.bf16.mxu0 %v1475
    %1578 = vmatpush1.bf16.msra.mxu0 %v1474
    %1579 = vmatprep.subr.bf16.mxu0 %v1479
    %1580 = vmatpush1.bf16.msra.mxu0 %v1478
    %1581 = vmatprep.subr.bf16.mxu0 %v1483
    %1582 = vmatpush1.bf16.msra.mxu0 %v1482
    %1583 = vmatprep.subr.bf16.mxu0 %v1487
    %1584 = vmatpush1.bf16.msra.mxu0 %v1486
    %1585 = vmatprep.subr.bf16.mxu0 %v1491
    %1586 = vmatpush1.bf16.msra.mxu0 %v1490
    %1587 = vmatprep.subr.bf16.mxu0 %v1495
    %1588 = vmatpush1.bf16.msra.mxu0 %v1494
    %1589 = vmatprep.subr.bf16.mxu0 %v1499
    %1590 = vmatpush1.bf16.msra.mxu0 %v1498
    %1591 = vmatprep.subr.bf16.mxu0 %v1503
    %1592 = vmatpush1.bf16.msra.mxu0 %v1502
    %1593 = vmatprep.subr.bf16.mxu0 %v1507
    %1594 = vmatpush1.bf16.msra.mxu0 %v1506
    %1595 = vmatprep.subr.bf16.mxu0 %v1511
    %1596 = vmatpush1.bf16.msra.mxu0 %v1510
    %1597 = vmatprep.subr.bf16.mxu0 %v1515
    %1598 = vmatpush1.bf16.msra.mxu0 %v1514
    %1599 = vmatprep.subr.bf16.mxu0 %v1519
    %1600 = vmatpush1.bf16.msra.mxu0 %v1518
    %1601 = vmatprep.subr.bf16.mxu0 %v1523
    %1602 = vmatpush1.bf16.msra.mxu0 %v1522
    %1603 = vmatprep.subr.bf16.mxu0 %v1527
    %1604 = vmatpush1.bf16.msra.mxu0 %v1526
    %1605 = vmatprep.subr.bf16.mxu0 %v1531
    %1606 = vmatpush1.bf16.msra.mxu0 %v1530
    %1607 = vmatprep.subr.bf16.mxu0 %v1535
    %1608 = vmatpush1.bf16.msra.mxu0 %v1534
    %1609 = vmatprep.mubr.bf16.mxu0 %v1343
    %1610 = vmatmul.mubr.bf16.gmra.mrb[0].mxu0 %v1342
    %v1611 = vpop.f32.mrb[0].mxu0
    %v1612 = vadd.f32 0.0, %v1611
    %v1613 = vpop.f32.mrb[0].mxu0
    %v1614 = vadd.f32 0.0, %v1613
    %v1615 = vpop.f32.mrb[0].mxu0
    %v1616 = vpop.f32.mrb[0].mxu0
    %1617 = vdwg.mxu0
    %v1618 = vrot.slane %v1571, 4
    %v1619 = vadd.f32 %v1571, %v1618
    %v1620 = vrot.slane %v1619, 2
    %v1621 = vadd.f32 %v1619, %v1620
    %v1622 = vrot.slane %v1621, 1
    %v1623 = vadd.f32 %v1621, %v1622
    %v1624 = vrot.slane %v1573, 4
    %v1625 = vadd.f32 %v1573, %v1624
    %v1626 = vrot.slane %v1625, 2
    %v1627 = vadd.f32 %v1625, %v1626
    %v1628 = vrot.slane %v1627, 1
    %v1629 = vadd.f32 %v1627, %v1628
    %v1630 = vrot.slane %v1612, 4
    %v1631 = vadd.f32 %v1612, %v1630
    %v1632 = vrot.slane %v1631, 2
    %v1633 = vadd.f32 %v1631, %v1632
    %v1634 = vrot.slane %v1633, 1
    %v1635 = vadd.f32 %v1633, %v1634
    %v1636 = vrot.slane %v1614, 4
    %v1637 = vadd.f32 %v1614, %v1636
    %v1638 = vrot.slane %v1637, 2
    %v1639 = vadd.f32 %v1637, %v1638
    %v1640 = vrot.slane %v1639, 1
    %v1641 = vadd.f32 %v1639, %v1640
    %v1642 = vmul.f32 %v1623, %v955
    %v1643 = vmul.f32 %v1629, %v955
    %v1644 = vmul.f32 %v1635, %v955
    %v1645 = vmul.f32 %v1641, %v955
    %v1646 = vsub.f32 %v1571, %v1642
    %v1647 = vsub.f32 %v1573, %v1643
    %v1648 = vsub.f32 %v1612, %v1644
    %v1649 = vsub.f32 %v1614, %v1645
    %v1650 = vmul.f32 %v1646, %v1646
    %v1651 = vmul.f32 %v1647, %v1647
    %v1652 = vmul.f32 %v1648, %v1648
    %v1653 = vmul.f32 %v1649, %v1649
    %v1654 = vrot.slane %v1650, 4
    %v1655 = vadd.f32 %v1650, %v1654
    %v1656 = vrot.slane %v1655, 2
    %v1657 = vadd.f32 %v1655, %v1656
    %v1658 = vrot.slane %v1657, 1
    %v1659 = vadd.f32 %v1657, %v1658
    %v1660 = vrot.slane %v1651, 4
    %v1661 = vadd.f32 %v1651, %v1660
    %v1662 = vrot.slane %v1661, 2
    %v1663 = vadd.f32 %v1661, %v1662
    %v1664 = vrot.slane %v1663, 1
    %v1665 = vadd.f32 %v1663, %v1664
    %v1666 = vrot.slane %v1652, 4
    %v1667 = vadd.f32 %v1652, %v1666
    %v1668 = vrot.slane %v1667, 2
    %v1669 = vadd.f32 %v1667, %v1668
    %v1670 = vrot.slane %v1669, 1
    %v1671 = vadd.f32 %v1669, %v1670
    %v1672 = vrot.slane %v1653, 4
    %v1673 = vadd.f32 %v1653, %v1672
    %v1674 = vrot.slane %v1673, 2
    %v1675 = vadd.f32 %v1673, %v1674
    %v1676 = vrot.slane %v1675, 1
    %v1677 = vadd.f32 %v1675, %v1676
    %v1678 = vmul.f32 %v1659, %v955
    %v1679 = vmul.f32 %v1665, %v955
    %v1680 = vmul.f32 %v1671, %v955
    %v1681 = vmul.f32 %v1677, %v955
    %v1682 = vadd.f32 %v1678, 1e-05
    %v1683 = vadd.f32 %v1679, 1e-05
    %v1684 = vadd.f32 %v1680, 1e-05
    %v1685 = vadd.f32 %v1681, 1e-05
    %v1686 = vrsqrt.pop %v1682
    %v1687 = vrsqrt.pop %v1683
    %v1688 = vrsqrt.pop %v1684
    %v1689 = vrsqrt.pop %v1685
    %v1690 = vmul.f32 %v1646, %v1686
    %v1691 = vmul.f32 %v1647, %v1687
    %v1692 = vmul.f32 %v1648, %v1688
    %v1693 = vmul.f32 %v1649, %v1689
    %v1694 = vld [vmem:[%s11] sm:$0xf]
    %v1696 = vlaneseq
    %v1697 = vshrl.u32 %v1696, 7
    %v1698 = vsub.s32 0, %v1697
    %v1699 = vrot.slane %v1694, %v1698
    %v1700 = vlaneseq
    %v1701 = vshrl.u32 %v1700, 7
    %v1702 = vsub.s32 1, %v1701
    %v1703 = vrot.slane %v1694, %v1702
    %v1704 = vlaneseq
    %v1705 = vshrl.u32 %v1704, 7
    %v1706 = vsub.s32 2, %v1705
    %v1707 = vrot.slane %v1694, %v1706
    %v1708 = vlaneseq
    %v1709 = vshrl.u32 %v1708, 7
    %v1710 = vsub.s32 3, %v1709
    %v1711 = vrot.slane %v1694, %v1710
    %v1716 = vmul.f32 %v1690, %v1699
    %v1717 = vmul.f32 %v1691, %v1703
    %v1718 = vmul.f32 %v1692, %v1707
    %v1719 = vmul.f32 %v1693, %v1711
    %v1720 = vld [vmem:[%s12] sm:$0xf]
    %v1722 = vlaneseq
    %v1723 = vshrl.u32 %v1722, 7
    %v1724 = vsub.s32 0, %v1723
    %v1725 = vrot.slane %v1720, %v1724
    %v1726 = vlaneseq
    %v1727 = vshrl.u32 %v1726, 7
    %v1728 = vsub.s32 1, %v1727
    %v1729 = vrot.slane %v1720, %v1728
    %v1730 = vlaneseq
    %v1731 = vshrl.u32 %v1730, 7
    %v1732 = vsub.s32 2, %v1731
    %v1733 = vrot.slane %v1720, %v1732
    %v1734 = vlaneseq
    %v1735 = vshrl.u32 %v1734, 7
    %v1736 = vsub.s32 3, %v1735
    %v1737 = vrot.slane %v1720, %v1736
    %v1742 = vadd.f32 %v1716, %v1725
    %v1743 = vadd.f32 %v1717, %v1729
    %v1744 = vadd.f32 %v1718, %v1733
    %v1745 = vadd.f32 %v1719, %v1737
    %v1746 = vmax.f32 %v1742, 0.0
    %v1747 = vmax.f32 %v1743, 0.0
    %v1748 = vmax.f32 %v1744, 0.0
    %v1749 = vmax.f32 %v1745, 0.0
    %v1750 = vpack.c.bf16 %v1746, %v1746
    %v1751 = vpack.c.bf16 %v1747, %v1747
    %v1752 = vpack.c.bf16 %v1748, %v1748
    %v1753 = vpack.c.bf16 %v1749, %v1749
    %v1754 = vld [vmem:[%s13] sm:$0xff]
    %v1755 = vld [vmem:[%s13 + $0x8] sm:$0xff]
    %v1756 = vld [vmem:[%s13 + $0x10] sm:$0xff]
    %v1757 = vld [vmem:[%s13 + $0x18] sm:$0xff]
    %v1758 = vld [vmem:[%s13 + $0x20] sm:$0xff]
    %v1759 = vld [vmem:[%s13 + $0x28] sm:$0xff]
    %v1760 = vld [vmem:[%s13 + $0x30] sm:$0xff]
    %v1761 = vld [vmem:[%s13 + $0x38] sm:$0xff]
    %v1762 = vld [vmem:[%s13 + $0x40] sm:$0xff]
    %v1763 = vld [vmem:[%s13 + $0x48] sm:$0xff]
    %v1764 = vld [vmem:[%s13 + $0x50] sm:$0xff]
    %v1765 = vld [vmem:[%s13 + $0x58] sm:$0xff]
    %v1766 = vld [vmem:[%s13 + $0x60] sm:$0xff]
    %v1767 = vld [vmem:[%s13 + $0x68] sm:$0xff]
    %v1768 = vld [vmem:[%s13 + $0x70] sm:$0xff]
    %v1769 = vld [vmem:[%s13 + $0x78] sm:$0xff]
    %v1770 = vld [vmem:[%s13 + $0x80] sm:$0xff]
    %v1771 = vld [vmem:[%s13 + $0x88] sm:$0xff]
    %v1772 = vld [vmem:[%s13 + $0x90] sm:$0xff]
    %v1773 = vld [vmem:[%s13 + $0x98] sm:$0xff]
    %v1774 = vld [vmem:[%s13 + $0xa0] sm:$0xff]
    %v1775 = vld [vmem:[%s13 + $0xa8] sm:$0xff]
    %v1776 = vld [vmem:[%s13 + $0xb0] sm:$0xff]
    %v1777 = vld [vmem:[%s13 + $0xb8] sm:$0xff]
    %v1778 = vld [vmem:[%s13 + $0xc0] sm:$0xff]
    %v1779 = vld [vmem:[%s13 + $0xc8] sm:$0xff]
    %v1780 = vld [vmem:[%s13 + $0xd0] sm:$0xff]
    %v1781 = vld [vmem:[%s13 + $0xd8] sm:$0xff]
    %v1782 = vld [vmem:[%s13 + $0xe0] sm:$0xff]
    %v1783 = vld [vmem:[%s13 + $0xe8] sm:$0xff]
    %v1784 = vld [vmem:[%s13 + $0xf0] sm:$0xff]
    %v1785 = vld [vmem:[%s13 + $0xf8] sm:$0xff]
    %v1786 = vld [vmem:[%s13 + $0x100] sm:$0xff]
    %v1787 = vld [vmem:[%s13 + $0x108] sm:$0xff]
    %v1788 = vld [vmem:[%s13 + $0x110] sm:$0xff]
    %v1789 = vld [vmem:[%s13 + $0x118] sm:$0xff]
    %v1790 = vld [vmem:[%s13 + $0x120] sm:$0xff]
    %v1791 = vld [vmem:[%s13 + $0x128] sm:$0xff]
    %v1792 = vld [vmem:[%s13 + $0x130] sm:$0xff]
    %v1793 = vld [vmem:[%s13 + $0x138] sm:$0xff]
    %v1794 = vld [vmem:[%s13 + $0x140] sm:$0xff]
    %v1795 = vld [vmem:[%s13 + $0x148] sm:$0xff]
    %v1796 = vld [vmem:[%s13 + $0x150] sm:$0xff]
    %v1797 = vld [vmem:[%s13 + $0x158] sm:$0xff]
    %v1798 = vld [vmem:[%s13 + $0x160] sm:$0xff]
    %v1799 = vld [vmem:[%s13 + $0x168] sm:$0xff]
    %v1800 = vld [vmem:[%s13 + $0x170] sm:$0xff]
    %v1801 = vld [vmem:[%s13 + $0x178] sm:$0xff]
    %v1802 = vld [vmem:[%s13 + $0x180] sm:$0xff]
    %v1803 = vld [vmem:[%s13 + $0x188] sm:$0xff]
    %v1804 = vld [vmem:[%s13 + $0x190] sm:$0xff]
    %v1805 = vld [vmem:[%s13 + $0x198] sm:$0xff]
    %v1806 = vld [vmem:[%s13 + $0x1a0] sm:$0xff]
    %v1807 = vld [vmem:[%s13 + $0x1a8] sm:$0xff]
    %v1808 = vld [vmem:[%s13 + $0x1b0] sm:$0xff]
    %v1809 = vld [vmem:[%s13 + $0x1b8] sm:$0xff]
    %v1810 = vld [vmem:[%s13 + $0x1c0] sm:$0xff]
    %v1811 = vld [vmem:[%s13 + $0x1c8] sm:$0xff]
    %v1812 = vld [vmem:[%s13 + $0x1d0] sm:$0xff]
    %v1813 = vld [vmem:[%s13 + $0x1d8] sm:$0xff]
    %v1814 = vld [vmem:[%s13 + $0x1e0] sm:$0xff]
    %v1815 = vld [vmem:[%s13 + $0x1e8] sm:$0xff]
    %v1816 = vld [vmem:[%s13 + $0x1f0] sm:$0xff]
    %v1817 = vld [vmem:[%s13 + $0x1f8] sm:$0xff]
    %v1818 = vld [vmem:[%s13 + $0x200] sm:$0xff]
    %v1819 = vld [vmem:[%s13 + $0x208] sm:$0xff]
    %v1820 = vld [vmem:[%s13 + $0x210] sm:$0xff]
    %v1821 = vld [vmem:[%s13 + $0x218] sm:$0xff]
    %v1822 = vld [vmem:[%s13 + $0x220] sm:$0xff]
    %v1823 = vld [vmem:[%s13 + $0x228] sm:$0xff]
    %v1824 = vld [vmem:[%s13 + $0x230] sm:$0xff]
    %v1825 = vld [vmem:[%s13 + $0x238] sm:$0xff]
    %v1826 = vld [vmem:[%s13 + $0x240] sm:$0xff]
    %v1827 = vld [vmem:[%s13 + $0x248] sm:$0xff]
    %v1828 = vld [vmem:[%s13 + $0x250] sm:$0xff]
    %v1829 = vld [vmem:[%s13 + $0x258] sm:$0xff]
    %v1830 = vld [vmem:[%s13 + $0x260] sm:$0xff]
    %v1831 = vld [vmem:[%s13 + $0x268] sm:$0xff]
    %v1832 = vld [vmem:[%s13 + $0x270] sm:$0xff]
    %v1833 = vld [vmem:[%s13 + $0x278] sm:$0xff]
    %v1834 = vld [vmem:[%s13 + $0x280] sm:$0xff]
    %v1835 = vld [vmem:[%s13 + $0x288] sm:$0xff]
    %v1836 = vld [vmem:[%s13 + $0x290] sm:$0xff]
    %v1837 = vld [vmem:[%s13 + $0x298] sm:$0xff]
    %v1838 = vld [vmem:[%s13 + $0x2a0] sm:$0xff]
    %v1839 = vld [vmem:[%s13 + $0x2a8] sm:$0xff]
    %v1840 = vld [vmem:[%s13 + $0x2b0] sm:$0xff]
    %v1841 = vld [vmem:[%s13 + $0x2b8] sm:$0xff]
    %v1842 = vld [vmem:[%s13 + $0x2c0] sm:$0xff]
    %v1843 = vld [vmem:[%s13 + $0x2c8] sm:$0xff]
    %v1844 = vld [vmem:[%s13 + $0x2d0] sm:$0xff]
    %v1845 = vld [vmem:[%s13 + $0x2d8] sm:$0xff]
    %v1846 = vld [vmem:[%s13 + $0x2e0] sm:$0xff]
    %v1847 = vld [vmem:[%s13 + $0x2e8] sm:$0xff]
    %v1848 = vld [vmem:[%s13 + $0x2f0] sm:$0xff]
    %v1849 = vld [vmem:[%s13 + $0x2f8] sm:$0xff]
    %v1850 = vld [vmem:[%s13 + $0x300] sm:$0xff]
    %v1851 = vld [vmem:[%s13 + $0x308] sm:$0xff]
    %v1852 = vld [vmem:[%s13 + $0x310] sm:$0xff]
    %v1853 = vld [vmem:[%s13 + $0x318] sm:$0xff]
    %v1854 = vld [vmem:[%s13 + $0x320] sm:$0xff]
    %v1855 = vld [vmem:[%s13 + $0x328] sm:$0xff]
    %v1856 = vld [vmem:[%s13 + $0x330] sm:$0xff]
    %v1857 = vld [vmem:[%s13 + $0x338] sm:$0xff]
    %v1858 = vld [vmem:[%s13 + $0x340] sm:$0xff]
    %v1859 = vld [vmem:[%s13 + $0x348] sm:$0xff]
    %v1860 = vld [vmem:[%s13 + $0x350] sm:$0xff]
    %v1861 = vld [vmem:[%s13 + $0x358] sm:$0xff]
    %v1862 = vld [vmem:[%s13 + $0x360] sm:$0xff]
    %v1863 = vld [vmem:[%s13 + $0x368] sm:$0xff]
    %v1864 = vld [vmem:[%s13 + $0x370] sm:$0xff]
    %v1865 = vld [vmem:[%s13 + $0x378] sm:$0xff]
    %v1866 = vld [vmem:[%s13 + $0x380] sm:$0xff]
    %v1867 = vld [vmem:[%s13 + $0x388] sm:$0xff]
    %v1868 = vld [vmem:[%s13 + $0x390] sm:$0xff]
    %v1869 = vld [vmem:[%s13 + $0x398] sm:$0xff]
    %v1870 = vld [vmem:[%s13 + $0x3a0] sm:$0xff]
    %v1871 = vld [vmem:[%s13 + $0x3a8] sm:$0xff]
    %v1872 = vld [vmem:[%s13 + $0x3b0] sm:$0xff]
    %v1873 = vld [vmem:[%s13 + $0x3b8] sm:$0xff]
    %v1874 = vld [vmem:[%s13 + $0x3c0] sm:$0xff]
    %v1875 = vld [vmem:[%s13 + $0x3c8] sm:$0xff]
    %v1876 = vld [vmem:[%s13 + $0x3d0] sm:$0xff]
    %v1877 = vld [vmem:[%s13 + $0x3d8] sm:$0xff]
    %v1878 = vld [vmem:[%s13 + $0x3e0] sm:$0xff]
    %v1879 = vld [vmem:[%s13 + $0x3e8] sm:$0xff]
    %v1880 = vld [vmem:[%s13 + $0x3f0] sm:$0xff]
    %v1881 = vld [vmem:[%s13 + $0x3f8] sm:$0xff]
    %v1882 = vpack.c.bf16 %v1756, %v1754
    %v1883 = vpack.c.bf16 %v1757, %v1755
    %v1884 = vpack.c.bf16 %v1760, %v1758
    %v1885 = vpack.c.bf16 %v1761, %v1759
    %v1886 = vpack.c.bf16 %v1764, %v1762
    %v1887 = vpack.c.bf16 %v1765, %v1763
    %v1888 = vpack.c.bf16 %v1768, %v1766
    %v1889 = vpack.c.bf16 %v1769, %v1767
    %v1890 = vpack.c.bf16 %v1772, %v1770
    %v1891 = vpack.c.bf16 %v1773, %v1771
    %v1892 = vpack.c.bf16 %v1776, %v1774
    %v1893 = vpack.c.bf16 %v1777, %v1775
    %v1894 = vpack.c.bf16 %v1780, %v1778
    %v1895 = vpack.c.bf16 %v1781, %v1779
    %v1896 = vpack.c.bf16 %v1784, %v1782
    %v1897 = vpack.c.bf16 %v1785, %v1783
    %v1898 = vpack.c.bf16 %v1788, %v1786
    %v1899 = vpack.c.bf16 %v1789, %v1787
    %v1900 = vpack.c.bf16 %v1792, %v1790
    %v1901 = vpack.c.bf16 %v1793, %v1791
    %v1902 = vpack.c.bf16 %v1796, %v1794
    %v1903 = vpack.c.bf16 %v1797, %v1795
    %v1904 = vpack.c.bf16 %v1800, %v1798
    %v1905 = vpack.c.bf16 %v1801, %v1799
    %v1906 = vpack.c.bf16 %v1804, %v1802
    %v1907 = vpack.c.bf16 %v1805, %v1803
    %v1908 = vpack.c.bf16 %v1808, %v1806
    %v1909 = vpack.c.bf16 %v1809, %v1807
    %v1910 = vpack.c.bf16 %v1812, %v1810
    %v1911 = vpack.c.bf16 %v1813, %v1811
    %v1912 = vpack.c.bf16 %v1816, %v1814
    %v1913 = vpack.c.bf16 %v1817, %v1815
    %v1914 = vpack.c.bf16 %v1820, %v1818
    %v1915 = vpack.c.bf16 %v1821, %v1819
    %v1916 = vpack.c.bf16 %v1824, %v1822
    %v1917 = vpack.c.bf16 %v1825, %v1823
    %v1918 = vpack.c.bf16 %v1828, %v1826
    %v1919 = vpack.c.bf16 %v1829, %v1827
    %v1920 = vpack.c.bf16 %v1832, %v1830
    %v1921 = vpack.c.bf16 %v1833, %v1831
    %v1922 = vpack.c.bf16 %v1836, %v1834
    %v1923 = vpack.c.bf16 %v1837, %v1835
    %v1924 = vpack.c.bf16 %v1840, %v1838
    %v1925 = vpack.c.bf16 %v1841, %v1839
    %v1926 = vpack.c.bf16 %v1844, %v1842
    %v1927 = vpack.c.bf16 %v1845, %v1843
    %v1928 = vpack.c.bf16 %v1848, %v1846
    %v1929 = vpack.c.bf16 %v1849, %v1847
    %v1930 = vpack.c.bf16 %v1852, %v1850
    %v1931 = vpack.c.bf16 %v1853, %v1851
    %v1932 = vpack.c.bf16 %v1856, %v1854
    %v1933 = vpack.c.bf16 %v1857, %v1855
    %v1934 = vpack.c.bf16 %v1860, %v1858
    %v1935 = vpack.c.bf16 %v1861, %v1859
    %v1936 = vpack.c.bf16 %v1864, %v1862
    %v1937 = vpack.c.bf16 %v1865, %v1863
    %v1938 = vpack.c.bf16 %v1868, %v1866
    %v1939 = vpack.c.bf16 %v1869, %v1867
    %v1940 = vpack.c.bf16 %v1872, %v1870
    %v1941 = vpack.c.bf16 %v1873, %v1871
    %v1942 = vpack.c.bf16 %v1876, %v1874
    %v1943 = vpack.c.bf16 %v1877, %v1875
    %v1944 = vpack.c.bf16 %v1880, %v1878
    %v1945 = vpack.c.bf16 %v1881, %v1879
    %1946 = vmatprep.subr.bf16.mxu0 %v1883
    %1947 = vmatpush1.bf16.msra.mxu0 %v1882
    %1948 = vmatprep.subr.bf16.mxu0 %v1885
    %1949 = vmatpush1.bf16.msra.mxu0 %v1884
    %1950 = vmatprep.subr.bf16.mxu0 %v1887
    %1951 = vmatpush1.bf16.msra.mxu0 %v1886
    %1952 = vmatprep.subr.bf16.mxu0 %v1889
    %1953 = vmatpush1.bf16.msra.mxu0 %v1888
    %1954 = vmatprep.subr.bf16.mxu0 %v1891
    %1955 = vmatpush1.bf16.msra.mxu0 %v1890
    %1956 = vmatprep.subr.bf16.mxu0 %v1893
    %1957 = vmatpush1.bf16.msra.mxu0 %v1892
    %1958 = vmatprep.subr.bf16.mxu0 %v1895
    %1959 = vmatpush1.bf16.msra.mxu0 %v1894
    %1960 = vmatprep.subr.bf16.mxu0 %v1897
    %1961 = vmatpush1.bf16.msra.mxu0 %v1896
    %1962 = vmatprep.subr.bf16.mxu0 %v1899
    %1963 = vmatpush1.bf16.msra.mxu0 %v1898
    %1964 = vmatprep.subr.bf16.mxu0 %v1901
    %1965 = vmatpush1.bf16.msra.mxu0 %v1900
    %1966 = vmatprep.subr.bf16.mxu0 %v1903
    %1967 = vmatpush1.bf16.msra.mxu0 %v1902
    %1968 = vmatprep.subr.bf16.mxu0 %v1905
    %1969 = vmatpush1.bf16.msra.mxu0 %v1904
    %1970 = vmatprep.subr.bf16.mxu0 %v1907
    %1971 = vmatpush1.bf16.msra.mxu0 %v1906
    %1972 = vmatprep.subr.bf16.mxu0 %v1909
    %1973 = vmatpush1.bf16.msra.mxu0 %v1908
    %1974 = vmatprep.subr.bf16.mxu0 %v1911
    %1975 = vmatpush1.bf16.msra.mxu0 %v1910
    %1976 = vmatprep.subr.bf16.mxu0 %v1913
    %1977 = vmatpush1.bf16.msra.mxu0 %v1912
    %1978 = vmatprep.mubr.bf16.mxu0 %v1751
    %1979 = vmatmul.mubr.bf16.gmra.mrb[0].mxu0 %v1750
    %v1980 = vpop.f32.mrb[0].mxu0
    %v1981 = vadd.f32 0.0, %v1980
    %v1982 = vpop.f32.mrb[0].mxu0
    %v1983 = vadd.f32 0.0, %v1982
    %v1984 = vpop.f32.mrb[0].mxu0
    %v1985 = vpop.f32.mrb[0].mxu0
    %1986 = vdwg.mxu0
    %1987 = vmatprep.subr.bf16.mxu0 %v1915
    %1988 = vmatpush1.bf16.msra.mxu0 %v1914
    %1989 = vmatprep.subr.bf16.mxu0 %v1917
    %1990 = vmatpush1.bf16.msra.mxu0 %v1916
    %1991 = vmatprep.subr.bf16.mxu0 %v1919
    %1992 = vmatpush1.bf16.msra.mxu0 %v1918
    %1993 = vmatprep.subr.bf16.mxu0 %v1921
    %1994 = vmatpush1.bf16.msra.mxu0 %v1920
    %1995 = vmatprep.subr.bf16.mxu0 %v1923
    %1996 = vmatpush1.bf16.msra.mxu0 %v1922
    %1997 = vmatprep.subr.bf16.mxu0 %v1925
    %1998 = vmatpush1.bf16.msra.mxu0 %v1924
    %1999 = vmatprep.subr.bf16.mxu0 %v1927
    %2000 = vmatpush1.bf16.msra.mxu0 %v1926
    %2001 = vmatprep.subr.bf16.mxu0 %v1929
    %2002 = vmatpush1.bf16.msra.mxu0 %v1928
    %2003 = vmatprep.subr.bf16.mxu0 %v1931
    %2004 = vmatpush1.bf16.msra.mxu0 %v1930
    %2005 = vmatprep.subr.bf16.mxu0 %v1933
    %2006 = vmatpush1.bf16.msra.mxu0 %v1932
    %2007 = vmatprep.subr.bf16.mxu0 %v1935
    %2008 = vmatpush1.bf16.msra.mxu0 %v1934
    %2009 = vmatprep.subr.bf16.mxu0 %v1937
    %2010 = vmatpush1.bf16.msra.mxu0 %v1936
    %2011 = vmatprep.subr.bf16.mxu0 %v1939
    %2012 = vmatpush1.bf16.msra.mxu0 %v1938
    %2013 = vmatprep.subr.bf16.mxu0 %v1941
    %2014 = vmatpush1.bf16.msra.mxu0 %v1940
    %2015 = vmatprep.subr.bf16.mxu0 %v1943
    %2016 = vmatpush1.bf16.msra.mxu0 %v1942
    %2017 = vmatprep.subr.bf16.mxu0 %v1945
    %2018 = vmatpush1.bf16.msra.mxu0 %v1944
    %2019 = vmatprep.mubr.bf16.mxu0 %v1753
    %2020 = vmatmul.mubr.bf16.gmra.mrb[0].mxu0 %v1752
    %v2021 = vpop.f32.mrb[0].mxu0
    %v2022 = vadd.f32 %v1981, %v2021
    %v2023 = vpop.f32.mrb[0].mxu0
    %v2024 = vadd.f32 %v1983, %v2023
    %v2025 = vpop.f32.mrb[0].mxu0
    %v2026 = vpop.f32.mrb[0].mxu0
    %2027 = vdwg.mxu0
    %v2028 = vld [vmem:[%s2] sm:$0xff]
    %v2029 = vld [vmem:[%s2 + $0x8] sm:$0xff]
    %v2030 = vld [vmem:[%s2 + $0x10] sm:$0xff]
    %v2031 = vld [vmem:[%s2 + $0x18] sm:$0xff]
    %v2032 = vld [vmem:[%s2 + $0x20] sm:$0xff]
    %v2033 = vld [vmem:[%s2 + $0x28] sm:$0xff]
    %v2034 = vld [vmem:[%s2 + $0x30] sm:$0xff]
    %v2035 = vld [vmem:[%s2 + $0x38] sm:$0xff]
    %v2036 = vld [vmem:[%s2 + $0x40] sm:$0xff]
    %v2037 = vld [vmem:[%s2 + $0x48] sm:$0xff]
    %v2038 = vld [vmem:[%s2 + $0x50] sm:$0xff]
    %v2039 = vld [vmem:[%s2 + $0x58] sm:$0xff]
    %v2040 = vld [vmem:[%s2 + $0x60] sm:$0xff]
    %v2041 = vld [vmem:[%s2 + $0x68] sm:$0xff]
    %v2042 = vld [vmem:[%s2 + $0x70] sm:$0xff]
    %v2043 = vld [vmem:[%s2 + $0x78] sm:$0xff]
    %v2044 = vld [vmem:[%s3] sm:$0x1]
    %v2045 = vld [vmem:[%s3 + $0x1] sm:$0x1]
    %v2046 = vld [vmem:[%s3 + $0x2] sm:$0x1]
    %v2047 = vld [vmem:[%s3 + $0x3] sm:$0x1]
    %v2048 = vld [vmem:[%s3 + $0x4] sm:$0x1]
    %v2049 = vld [vmem:[%s3 + $0x5] sm:$0x1]
    %v2050 = vld [vmem:[%s3 + $0x6] sm:$0x1]
    %v2051 = vld [vmem:[%s3 + $0x7] sm:$0x1]
    %v2060 = vlaneseq
    %v2061 = vshrl.u32 %v2060, 7
    %v2062 = vsub.s32 0, %v2061
    %v2063 = vrot.slane %v2044, %v2062
    %v2064 = vlaneseq
    %v2065 = vshrl.u32 %v2064, 7
    %v2066 = vsub.s32 0, %v2065
    %v2067 = vrot.slane %v2045, %v2066
    %v2068 = vlaneseq
    %v2069 = vshrl.u32 %v2068, 7
    %v2070 = vsub.s32 0, %v2069
    %v2071 = vrot.slane %v2046, %v2070
    %v2072 = vlaneseq
    %v2073 = vshrl.u32 %v2072, 7
    %v2074 = vsub.s32 0, %v2073
    %v2075 = vrot.slane %v2047, %v2074
    %v2076 = vlaneseq
    %v2077 = vshrl.u32 %v2076, 7
    %v2078 = vsub.s32 0, %v2077
    %v2079 = vrot.slane %v2048, %v2078
    %v2080 = vlaneseq
    %v2081 = vshrl.u32 %v2080, 7
    %v2082 = vsub.s32 0, %v2081
    %v2083 = vrot.slane %v2049, %v2082
    %v2084 = vlaneseq
    %v2085 = vshrl.u32 %v2084, 7
    %v2086 = vsub.s32 0, %v2085
    %v2087 = vrot.slane %v2050, %v2086
    %v2088 = vlaneseq
    %v2089 = vshrl.u32 %v2088, 7
    %v2090 = vsub.s32 0, %v2089
    %v2091 = vrot.slane %v2051, %v2090
    %vm2100 = vcmp.lt.f32.partialorder %v91, %v2063
    %vm2101 = vcmp.lt.f32.partialorder %v92, %v2063
    %vm2102 = vcmp.lt.f32.partialorder %v91, %v2067
    %vm2103 = vcmp.lt.f32.partialorder %v92, %v2067
    %vm2104 = vcmp.lt.f32.partialorder %v91, %v2071
    %vm2105 = vcmp.lt.f32.partialorder %v92, %v2071
    %vm2106 = vcmp.lt.f32.partialorder %v91, %v2075
    %vm2107 = vcmp.lt.f32.partialorder %v92, %v2075
    %vm2108 = vcmp.lt.f32.partialorder %v91, %v2079
    %vm2109 = vcmp.lt.f32.partialorder %v92, %v2079
    %vm2110 = vcmp.lt.f32.partialorder %v91, %v2083
    %vm2111 = vcmp.lt.f32.partialorder %v92, %v2083
    %vm2112 = vcmp.lt.f32.partialorder %v91, %v2087
    %vm2113 = vcmp.lt.f32.partialorder %v92, %v2087
    %vm2114 = vcmp.lt.f32.partialorder %v91, %v2091
    %vm2115 = vcmp.lt.f32.partialorder %v92, %v2091
    %v2116 = vsel %vm2100, 1, 0
    %v2117 = vsel %vm2101, 1, 0
    %v2118 = vsel %vm2102, 1, 0
    %v2119 = vsel %vm2103, 1, 0
    %v2120 = vsel %vm2104, 1, 0
    %v2121 = vsel %vm2105, 1, 0
    %v2122 = vsel %vm2106, 1, 0
    %v2123 = vsel %vm2107, 1, 0
    %v2124 = vsel %vm2108, 1, 0
    %v2125 = vsel %vm2109, 1, 0
    %v2126 = vsel %vm2110, 1, 0
    %v2127 = vsel %vm2111, 1, 0
    %v2128 = vsel %vm2112, 1, 0
    %v2129 = vsel %vm2113, 1, 0
    %v2130 = vsel %vm2114, 1, 0
    %v2131 = vsel %vm2115, 1, 0
    %v2132 = vcvt.s32.f32 %v2116
    %v2133 = vcvt.s32.f32 %v2117
    %v2134 = vcvt.s32.f32 %v2118
    %v2135 = vcvt.s32.f32 %v2119
    %v2136 = vcvt.s32.f32 %v2120
    %v2137 = vcvt.s32.f32 %v2121
    %v2138 = vcvt.s32.f32 %v2122
    %v2139 = vcvt.s32.f32 %v2123
    %v2140 = vcvt.s32.f32 %v2124
    %v2141 = vcvt.s32.f32 %v2125
    %v2142 = vcvt.s32.f32 %v2126
    %v2143 = vcvt.s32.f32 %v2127
    %v2144 = vcvt.s32.f32 %v2128
    %v2145 = vcvt.s32.f32 %v2129
    %v2146 = vcvt.s32.f32 %v2130
    %v2147 = vcvt.s32.f32 %v2131
    %v2148 = vmax.f32 %v2044, 1.0
    %v2149 = vmax.f32 %v2045, 1.0
    %v2150 = vmax.f32 %v2046, 1.0
    %v2151 = vmax.f32 %v2047, 1.0
    %v2152 = vmax.f32 %v2048, 1.0
    %v2153 = vmax.f32 %v2049, 1.0
    %v2154 = vmax.f32 %v2050, 1.0
    %v2155 = vmax.f32 %v2051, 1.0
    %v2156 = vrcp.pop %v2148
    %v2157 = vrcp.pop %v2149
    %v2158 = vrcp.pop %v2150
    %v2159 = vrcp.pop %v2151
    %v2160 = vrcp.pop %v2152
    %v2161 = vrcp.pop %v2153
    %v2162 = vrcp.pop %v2154
    %v2163 = vrcp.pop %v2155
    %v2172 = vlaneseq
    %v2173 = vshrl.u32 %v2172, 7
    %v2174 = vsub.s32 0, %v2173
    %v2175 = vrot.slane %v2156, %v2174
    %v2176 = vlaneseq
    %v2177 = vshrl.u32 %v2176, 7
    %v2178 = vsub.s32 0, %v2177
    %v2179 = vrot.slane %v2157, %v2178
    %v2180 = vlaneseq
    %v2181 = vshrl.u32 %v2180, 7
    %v2182 = vsub.s32 0, %v2181
    %v2183 = vrot.slane %v2158, %v2182
    %v2184 = vlaneseq
    %v2185 = vshrl.u32 %v2184, 7
    %v2186 = vsub.s32 0, %v2185
    %v2187 = vrot.slane %v2159, %v2186
    %v2188 = vlaneseq
    %v2189 = vshrl.u32 %v2188, 7
    %v2190 = vsub.s32 0, %v2189
    %v2191 = vrot.slane %v2160, %v2190
    %v2192 = vlaneseq
    %v2193 = vshrl.u32 %v2192, 7
    %v2194 = vsub.s32 0, %v2193
    %v2195 = vrot.slane %v2161, %v2194
    %v2196 = vlaneseq
    %v2197 = vshrl.u32 %v2196, 7
    %v2198 = vsub.s32 0, %v2197
    %v2199 = vrot.slane %v2162, %v2198
    %v2200 = vlaneseq
    %v2201 = vshrl.u32 %v2200, 7
    %v2202 = vsub.s32 0, %v2201
    %v2203 = vrot.slane %v2163, %v2202
    %v2212 = vmul.f32 %v2132, %v2175
    %v2213 = vmul.f32 %v2133, %v2175
    %v2214 = vmul.f32 %v2134, %v2179
    %v2215 = vmul.f32 %v2135, %v2179
    %v2216 = vmul.f32 %v2136, %v2183
    %v2217 = vmul.f32 %v2137, %v2183
    %v2218 = vmul.f32 %v2138, %v2187
    %v2219 = vmul.f32 %v2139, %v2187
    %v2220 = vmul.f32 %v2140, %v2191
    %v2221 = vmul.f32 %v2141, %v2191
    %v2222 = vmul.f32 %v2142, %v2195
    %v2223 = vmul.f32 %v2143, %v2195
    %v2224 = vmul.f32 %v2144, %v2199
    %v2225 = vmul.f32 %v2145, %v2199
    %v2226 = vmul.f32 %v2146, %v2203
    %v2227 = vmul.f32 %v2147, %v2203
    %2229 = vset.pattern.permute.xlu0 0
    %2230 = vperm.xlu0 %2229, %v2212
    %v2231 = vpop.permute.xlu0 %2230
    %2234 = vset.pattern.permute.xlu0 0
    %2235 = vperm.xlu0 %2234, %v2213
    %v2236 = vpop.permute.xlu0 %2235
    %2239 = vset.pattern.permute.xlu0 0
    %2240 = vperm.xlu0 %2239, %v2214
    %v2241 = vpop.permute.xlu0 %2240
    %2244 = vset.pattern.permute.xlu0 0
    %2245 = vperm.xlu0 %2244, %v2215
    %v2246 = vpop.permute.xlu0 %2245
    %2249 = vset.pattern.permute.xlu0 0
    %2250 = vperm.xlu0 %2249, %v2216
    %v2251 = vpop.permute.xlu0 %2250
    %2254 = vset.pattern.permute.xlu0 0
    %2255 = vperm.xlu0 %2254, %v2217
    %v2256 = vpop.permute.xlu0 %2255
    %2259 = vset.pattern.permute.xlu0 0
    %2260 = vperm.xlu0 %2259, %v2218
    %v2261 = vpop.permute.xlu0 %2260
    %2264 = vset.pattern.permute.xlu0 0
    %2265 = vperm.xlu0 %2264, %v2219
    %v2266 = vpop.permute.xlu0 %2265
    %2269 = vset.pattern.permute.xlu0 0
    %2270 = vperm.xlu0 %2269, %v2220
    %v2271 = vpop.permute.xlu0 %2270
    %2274 = vset.pattern.permute.xlu0 0
    %2275 = vperm.xlu0 %2274, %v2221
    %v2276 = vpop.permute.xlu0 %2275
    %2279 = vset.pattern.permute.xlu0 0
    %2280 = vperm.xlu0 %2279, %v2222
    %v2281 = vpop.permute.xlu0 %2280
    %2284 = vset.pattern.permute.xlu0 0
    %2285 = vperm.xlu0 %2284, %v2223
    %v2286 = vpop.permute.xlu0 %2285
    %2289 = vset.pattern.permute.xlu0 0
    %2290 = vperm.xlu0 %2289, %v2224
    %v2291 = vpop.permute.xlu0 %2290
    %2294 = vset.pattern.permute.xlu0 0
    %2295 = vperm.xlu0 %2294, %v2225
    %v2296 = vpop.permute.xlu0 %2295
    %2299 = vset.pattern.permute.xlu0 0
    %2300 = vperm.xlu0 %2299, %v2226
    %v2301 = vpop.permute.xlu0 %2300
    %2304 = vset.pattern.permute.xlu0 0
    %2305 = vperm.xlu0 %2304, %v2227
    %v2306 = vpop.permute.xlu0 %2305
    %v2308 = vmul.f32 %v2028, %v2231
    %v2309 = vmul.f32 %v2029, %v2236
    %v2310 = vmul.f32 %v2030, %v2241
    %v2311 = vmul.f32 %v2031, %v2246
    %v2312 = vmul.f32 %v2032, %v2251
    %v2313 = vmul.f32 %v2033, %v2256
    %v2314 = vmul.f32 %v2034, %v2261
    %v2315 = vmul.f32 %v2035, %v2266
    %v2316 = vmul.f32 %v2036, %v2271
    %v2317 = vmul.f32 %v2037, %v2276
    %v2318 = vmul.f32 %v2038, %v2281
    %v2319 = vmul.f32 %v2039, %v2286
    %v2320 = vmul.f32 %v2040, %v2291
    %v2321 = vmul.f32 %v2041, %v2296
    %v2322 = vmul.f32 %v2042, %v2301
    %v2323 = vmul.f32 %v2043, %v2306
    %v2324 = vadd.f32 %v2308, %v2309
    %v2325 = vrot.slane %v2324, 4
    %v2326 = vadd.f32 %v2324, %v2325
    %v2327 = vrot.slane %v2326, 2
    %v2328 = vadd.f32 %v2326, %v2327
    %v2329 = vrot.slane %v2328, 1
    %v2330 = vadd.f32 %v2328, %v2329
    %v2331 = vadd.f32 %v2310, %v2311
    %v2332 = vrot.slane %v2331, 4
    %v2333 = vadd.f32 %v2331, %v2332
    %v2334 = vrot.slane %v2333, 2
    %v2335 = vadd.f32 %v2333, %v2334
    %v2336 = vrot.slane %v2335, 1
    %v2337 = vadd.f32 %v2335, %v2336
    %v2338 = vadd.f32 %v2312, %v2313
    %v2339 = vrot.slane %v2338, 4
    %v2340 = vadd.f32 %v2338, %v2339
    %v2341 = vrot.slane %v2340, 2
    %v2342 = vadd.f32 %v2340, %v2341
    %v2343 = vrot.slane %v2342, 1
    %v2344 = vadd.f32 %v2342, %v2343
    %v2345 = vadd.f32 %v2314, %v2315
    %v2346 = vrot.slane %v2345, 4
    %v2347 = vadd.f32 %v2345, %v2346
    %v2348 = vrot.slane %v2347, 2
    %v2349 = vadd.f32 %v2347, %v2348
    %v2350 = vrot.slane %v2349, 1
    %v2351 = vadd.f32 %v2349, %v2350
    %v2352 = vadd.f32 %v2316, %v2317
    %v2353 = vrot.slane %v2352, 4
    %v2354 = vadd.f32 %v2352, %v2353
    %v2355 = vrot.slane %v2354, 2
    %v2356 = vadd.f32 %v2354, %v2355
    %v2357 = vrot.slane %v2356, 1
    %v2358 = vadd.f32 %v2356, %v2357
    %v2359 = vadd.f32 %v2318, %v2319
    %v2360 = vrot.slane %v2359, 4
    %v2361 = vadd.f32 %v2359, %v2360
    %v2362 = vrot.slane %v2361, 2
    %v2363 = vadd.f32 %v2361, %v2362
    %v2364 = vrot.slane %v2363, 1
    %v2365 = vadd.f32 %v2363, %v2364
    %v2366 = vadd.f32 %v2320, %v2321
    %v2367 = vrot.slane %v2366, 4
    %v2368 = vadd.f32 %v2366, %v2367
    %v2369 = vrot.slane %v2368, 2
    %v2370 = vadd.f32 %v2368, %v2369
    %v2371 = vrot.slane %v2370, 1
    %v2372 = vadd.f32 %v2370, %v2371
    %v2373 = vadd.f32 %v2322, %v2323
    %v2374 = vrot.slane %v2373, 4
    %v2375 = vadd.f32 %v2373, %v2374
    %v2376 = vrot.slane %v2375, 2
    %v2377 = vadd.f32 %v2375, %v2376
    %v2378 = vrot.slane %v2377, 1
    %v2379 = vadd.f32 %v2377, %v2378
    %v2380 = vpack.c.bf16 %v2330, %v2330
    %v2381 = vpack.c.bf16 %v2337, %v2337
    %v2382 = vpack.c.bf16 %v2344, %v2344
    %v2383 = vpack.c.bf16 %v2351, %v2351
    %v2384 = vpack.c.bf16 %v2358, %v2358
    %v2385 = vpack.c.bf16 %v2365, %v2365
    %v2386 = vpack.c.bf16 %v2372, %v2372
    %v2387 = vpack.c.bf16 %v2379, %v2379
    %v2388 = vld [vmem:[%s5] sm:$0xff]
    %v2389 = vld [vmem:[%s5 + $0x8] sm:$0xff]
    %v2390 = vld [vmem:[%s5 + $0x10] sm:$0xff]
    %v2391 = vld [vmem:[%s5 + $0x18] sm:$0xff]
    %v2392 = vld [vmem:[%s5 + $0x20] sm:$0xff]
    %v2393 = vld [vmem:[%s5 + $0x28] sm:$0xff]
    %v2394 = vld [vmem:[%s5 + $0x30] sm:$0xff]
    %v2395 = vld [vmem:[%s5 + $0x38] sm:$0xff]
    %v2396 = vld [vmem:[%s5 + $0x40] sm:$0xff]
    %v2397 = vld [vmem:[%s5 + $0x48] sm:$0xff]
    %v2398 = vld [vmem:[%s5 + $0x50] sm:$0xff]
    %v2399 = vld [vmem:[%s5 + $0x58] sm:$0xff]
    %v2400 = vld [vmem:[%s5 + $0x60] sm:$0xff]
    %v2401 = vld [vmem:[%s5 + $0x68] sm:$0xff]
    %v2402 = vld [vmem:[%s5 + $0x70] sm:$0xff]
    %v2403 = vld [vmem:[%s5 + $0x78] sm:$0xff]
    %v2404 = vld [vmem:[%s5 + $0x80] sm:$0xff]
    %v2405 = vld [vmem:[%s5 + $0x88] sm:$0xff]
    %v2406 = vld [vmem:[%s5 + $0x90] sm:$0xff]
    %v2407 = vld [vmem:[%s5 + $0x98] sm:$0xff]
    %v2408 = vld [vmem:[%s5 + $0xa0] sm:$0xff]
    %v2409 = vld [vmem:[%s5 + $0xa8] sm:$0xff]
    %v2410 = vld [vmem:[%s5 + $0xb0] sm:$0xff]
    %v2411 = vld [vmem:[%s5 + $0xb8] sm:$0xff]
    %v2412 = vld [vmem:[%s5 + $0xc0] sm:$0xff]
    %v2413 = vld [vmem:[%s5 + $0xc8] sm:$0xff]
    %v2414 = vld [vmem:[%s5 + $0xd0] sm:$0xff]
    %v2415 = vld [vmem:[%s5 + $0xd8] sm:$0xff]
    %v2416 = vld [vmem:[%s5 + $0xe0] sm:$0xff]
    %v2417 = vld [vmem:[%s5 + $0xe8] sm:$0xff]
    %v2418 = vld [vmem:[%s5 + $0xf0] sm:$0xff]
    %v2419 = vld [vmem:[%s5 + $0xf8] sm:$0xff]
    %v2420 = vpack.c.bf16 %v2390, %v2388
    %v2421 = vpack.c.bf16 %v2391, %v2389
    %v2422 = vpack.c.bf16 %v2394, %v2392
    %v2423 = vpack.c.bf16 %v2395, %v2393
    %v2424 = vpack.c.bf16 %v2398, %v2396
    %v2425 = vpack.c.bf16 %v2399, %v2397
    %v2426 = vpack.c.bf16 %v2402, %v2400
    %v2427 = vpack.c.bf16 %v2403, %v2401
    %v2428 = vpack.c.bf16 %v2406, %v2404
    %v2429 = vpack.c.bf16 %v2407, %v2405
    %v2430 = vpack.c.bf16 %v2410, %v2408
    %v2431 = vpack.c.bf16 %v2411, %v2409
    %v2432 = vpack.c.bf16 %v2414, %v2412
    %v2433 = vpack.c.bf16 %v2415, %v2413
    %v2434 = vpack.c.bf16 %v2418, %v2416
    %v2435 = vpack.c.bf16 %v2419, %v2417
    %v2444 = vunpack.c.l.b16 %v2380
    %v2445 = vunpack.c.l.b16 %v2381
    %v2446 = vunpack.c.l.b16 %v2382
    %v2447 = vunpack.c.l.b16 %v2383
    %v2448 = vunpack.c.l.b16 %v2384
    %v2449 = vunpack.c.l.b16 %v2385
    %v2450 = vunpack.c.l.b16 %v2386
    %v2451 = vunpack.c.l.b16 %v2387
    %v2452 = vsel %vm493, %v2445, %v2444
    %v2453 = vsel %vm495, %v2446, %v2452
    %v2454 = vsel %vm497, %v2447, %v2453
    %v2455 = vsel %vm499, %v2448, %v2454
    %v2456 = vsel %vm501, %v2449, %v2455
    %v2457 = vsel %vm503, %v2450, %v2456
    %v2458 = vsel %vm505, %v2451, %v2457
    %v2459 = vpack.c.b16 %v2458, %v2458
    %2461 = vmatprep.subr.bf16.mxu0 %v2421
    %2462 = vmatpush1.bf16.msra.mxu0 %v2420
    %2463 = vmatprep.subr.bf16.mxu0 %v2423
    %2464 = vmatpush1.bf16.msra.mxu0 %v2422
    %2465 = vmatprep.subr.bf16.mxu0 %v2425
    %2466 = vmatpush1.bf16.msra.mxu0 %v2424
    %2467 = vmatprep.subr.bf16.mxu0 %v2427
    %2468 = vmatpush1.bf16.msra.mxu0 %v2426
    %2469 = vmatprep.subr.bf16.mxu0 %v2429
    %2470 = vmatpush1.bf16.msra.mxu0 %v2428
    %2471 = vmatprep.subr.bf16.mxu0 %v2431
    %2472 = vmatpush1.bf16.msra.mxu0 %v2430
    %2473 = vmatprep.subr.bf16.mxu0 %v2433
    %2474 = vmatpush1.bf16.msra.mxu0 %v2432
    %2475 = vmatprep.subr.bf16.mxu0 %v2435
    %2476 = vmatpush1.bf16.msra.mxu0 %v2434
    %2477 = vmatprep.subr.bf16.mxu0 0
    %2478 = vmatpush1.bf16.msra.mxu0 0
    %2479 = vmatprep.subr.bf16.mxu0 0
    %2480 = vmatpush1.bf16.msra.mxu0 0
    %2481 = vmatprep.subr.bf16.mxu0 0
    %2482 = vmatpush1.bf16.msra.mxu0 0
    %2483 = vmatprep.subr.bf16.mxu0 0
    %2484 = vmatpush1.bf16.msra.mxu0 0
    %2485 = vmatprep.subr.bf16.mxu0 0
    %2486 = vmatpush1.bf16.msra.mxu0 0
    %2487 = vmatprep.subr.bf16.mxu0 0
    %2488 = vmatpush1.bf16.msra.mxu0 0
    %2489 = vmatprep.subr.bf16.mxu0 0
    %2490 = vmatpush1.bf16.msra.mxu0 0
    %2491 = vmatprep.subr.bf16.mxu0 0
    %2492 = vmatpush1.bf16.msra.mxu0 0
    %2493 = vmatprep.mubr.bf16.mxu0 0
    %2494 = vmatmul.mubr.bf16.gmra.mrb[0].mxu0 %v2459
    %v2495 = vpop.f32.mrb[0].mxu0
    %v2496 = vadd.f32 0.0, %v2495
    %v2497 = vpop.f32.mrb[0].mxu0
    %v2498 = vadd.f32 0.0, %v2497
    %v2499 = vpop.f32.mrb[0].mxu0
    %v2500 = vpop.f32.mrb[0].mxu0
    %2501 = vdwg.mxu0
    %v2502 = vpack.c.bf16 %v2496, %v2496
    %v2503 = vpack.c.bf16 %v2498, %v2498
    %v2504 = vld [vmem:[%s14] sm:$0xff]
    %v2505 = vld [vmem:[%s14 + $0x8] sm:$0xff]
    %v2506 = vld [vmem:[%s14 + $0x10] sm:$0xff]
    %v2507 = vld [vmem:[%s14 + $0x18] sm:$0xff]
    %v2508 = vld [vmem:[%s14 + $0x20] sm:$0xff]
    %v2509 = vld [vmem:[%s14 + $0x28] sm:$0xff]
    %v2510 = vld [vmem:[%s14 + $0x30] sm:$0xff]
    %v2511 = vld [vmem:[%s14 + $0x38] sm:$0xff]
    %v2512 = vld [vmem:[%s14 + $0x40] sm:$0xff]
    %v2513 = vld [vmem:[%s14 + $0x48] sm:$0xff]
    %v2514 = vld [vmem:[%s14 + $0x50] sm:$0xff]
    %v2515 = vld [vmem:[%s14 + $0x58] sm:$0xff]
    %v2516 = vld [vmem:[%s14 + $0x60] sm:$0xff]
    %v2517 = vld [vmem:[%s14 + $0x68] sm:$0xff]
    %v2518 = vld [vmem:[%s14 + $0x70] sm:$0xff]
    %v2519 = vld [vmem:[%s14 + $0x78] sm:$0xff]
    %v2520 = vld [vmem:[%s14 + $0x80] sm:$0xff]
    %v2521 = vld [vmem:[%s14 + $0x88] sm:$0xff]
    %v2522 = vld [vmem:[%s14 + $0x90] sm:$0xff]
    %v2523 = vld [vmem:[%s14 + $0x98] sm:$0xff]
    %v2524 = vld [vmem:[%s14 + $0xa0] sm:$0xff]
    %v2525 = vld [vmem:[%s14 + $0xa8] sm:$0xff]
    %v2526 = vld [vmem:[%s14 + $0xb0] sm:$0xff]
    %v2527 = vld [vmem:[%s14 + $0xb8] sm:$0xff]
    %v2528 = vld [vmem:[%s14 + $0xc0] sm:$0xff]
    %v2529 = vld [vmem:[%s14 + $0xc8] sm:$0xff]
    %v2530 = vld [vmem:[%s14 + $0xd0] sm:$0xff]
    %v2531 = vld [vmem:[%s14 + $0xd8] sm:$0xff]
    %v2532 = vld [vmem:[%s14 + $0xe0] sm:$0xff]
    %v2533 = vld [vmem:[%s14 + $0xe8] sm:$0xff]
    %v2534 = vld [vmem:[%s14 + $0xf0] sm:$0xff]
    %v2535 = vld [vmem:[%s14 + $0xf8] sm:$0xff]
    %v2536 = vld [vmem:[%s14 + $0x100] sm:$0xff]
    %v2537 = vld [vmem:[%s14 + $0x108] sm:$0xff]
    %v2538 = vld [vmem:[%s14 + $0x110] sm:$0xff]
    %v2539 = vld [vmem:[%s14 + $0x118] sm:$0xff]
    %v2540 = vld [vmem:[%s14 + $0x120] sm:$0xff]
    %v2541 = vld [vmem:[%s14 + $0x128] sm:$0xff]
    %v2542 = vld [vmem:[%s14 + $0x130] sm:$0xff]
    %v2543 = vld [vmem:[%s14 + $0x138] sm:$0xff]
    %v2544 = vld [vmem:[%s14 + $0x140] sm:$0xff]
    %v2545 = vld [vmem:[%s14 + $0x148] sm:$0xff]
    %v2546 = vld [vmem:[%s14 + $0x150] sm:$0xff]
    %v2547 = vld [vmem:[%s14 + $0x158] sm:$0xff]
    %v2548 = vld [vmem:[%s14 + $0x160] sm:$0xff]
    %v2549 = vld [vmem:[%s14 + $0x168] sm:$0xff]
    %v2550 = vld [vmem:[%s14 + $0x170] sm:$0xff]
    %v2551 = vld [vmem:[%s14 + $0x178] sm:$0xff]
    %v2552 = vld [vmem:[%s14 + $0x180] sm:$0xff]
    %v2553 = vld [vmem:[%s14 + $0x188] sm:$0xff]
    %v2554 = vld [vmem:[%s14 + $0x190] sm:$0xff]
    %v2555 = vld [vmem:[%s14 + $0x198] sm:$0xff]
    %v2556 = vld [vmem:[%s14 + $0x1a0] sm:$0xff]
    %v2557 = vld [vmem:[%s14 + $0x1a8] sm:$0xff]
    %v2558 = vld [vmem:[%s14 + $0x1b0] sm:$0xff]
    %v2559 = vld [vmem:[%s14 + $0x1b8] sm:$0xff]
    %v2560 = vld [vmem:[%s14 + $0x1c0] sm:$0xff]
    %v2561 = vld [vmem:[%s14 + $0x1c8] sm:$0xff]
    %v2562 = vld [vmem:[%s14 + $0x1d0] sm:$0xff]
    %v2563 = vld [vmem:[%s14 + $0x1d8] sm:$0xff]
    %v2564 = vld [vmem:[%s14 + $0x1e0] sm:$0xff]
    %v2565 = vld [vmem:[%s14 + $0x1e8] sm:$0xff]
    %v2566 = vld [vmem:[%s14 + $0x1f0] sm:$0xff]
    %v2567 = vld [vmem:[%s14 + $0x1f8] sm:$0xff]
    %v2568 = vld [vmem:[%s14 + $0x200] sm:$0xff]
    %v2569 = vld [vmem:[%s14 + $0x208] sm:$0xff]
    %v2570 = vld [vmem:[%s14 + $0x210] sm:$0xff]
    %v2571 = vld [vmem:[%s14 + $0x218] sm:$0xff]
    %v2572 = vld [vmem:[%s14 + $0x220] sm:$0xff]
    %v2573 = vld [vmem:[%s14 + $0x228] sm:$0xff]
    %v2574 = vld [vmem:[%s14 + $0x230] sm:$0xff]
    %v2575 = vld [vmem:[%s14 + $0x238] sm:$0xff]
    %v2576 = vld [vmem:[%s14 + $0x240] sm:$0xff]
    %v2577 = vld [vmem:[%s14 + $0x248] sm:$0xff]
    %v2578 = vld [vmem:[%s14 + $0x250] sm:$0xff]
    %v2579 = vld [vmem:[%s14 + $0x258] sm:$0xff]
    %v2580 = vld [vmem:[%s14 + $0x260] sm:$0xff]
    %v2581 = vld [vmem:[%s14 + $0x268] sm:$0xff]
    %v2582 = vld [vmem:[%s14 + $0x270] sm:$0xff]
    %v2583 = vld [vmem:[%s14 + $0x278] sm:$0xff]
    %v2584 = vld [vmem:[%s14 + $0x280] sm:$0xff]
    %v2585 = vld [vmem:[%s14 + $0x288] sm:$0xff]
    %v2586 = vld [vmem:[%s14 + $0x290] sm:$0xff]
    %v2587 = vld [vmem:[%s14 + $0x298] sm:$0xff]
    %v2588 = vld [vmem:[%s14 + $0x2a0] sm:$0xff]
    %v2589 = vld [vmem:[%s14 + $0x2a8] sm:$0xff]
    %v2590 = vld [vmem:[%s14 + $0x2b0] sm:$0xff]
    %v2591 = vld [vmem:[%s14 + $0x2b8] sm:$0xff]
    %v2592 = vld [vmem:[%s14 + $0x2c0] sm:$0xff]
    %v2593 = vld [vmem:[%s14 + $0x2c8] sm:$0xff]
    %v2594 = vld [vmem:[%s14 + $0x2d0] sm:$0xff]
    %v2595 = vld [vmem:[%s14 + $0x2d8] sm:$0xff]
    %v2596 = vld [vmem:[%s14 + $0x2e0] sm:$0xff]
    %v2597 = vld [vmem:[%s14 + $0x2e8] sm:$0xff]
    %v2598 = vld [vmem:[%s14 + $0x2f0] sm:$0xff]
    %v2599 = vld [vmem:[%s14 + $0x2f8] sm:$0xff]
    %v2600 = vld [vmem:[%s14 + $0x300] sm:$0xff]
    %v2601 = vld [vmem:[%s14 + $0x308] sm:$0xff]
    %v2602 = vld [vmem:[%s14 + $0x310] sm:$0xff]
    %v2603 = vld [vmem:[%s14 + $0x318] sm:$0xff]
    %v2604 = vld [vmem:[%s14 + $0x320] sm:$0xff]
    %v2605 = vld [vmem:[%s14 + $0x328] sm:$0xff]
    %v2606 = vld [vmem:[%s14 + $0x330] sm:$0xff]
    %v2607 = vld [vmem:[%s14 + $0x338] sm:$0xff]
    %v2608 = vld [vmem:[%s14 + $0x340] sm:$0xff]
    %v2609 = vld [vmem:[%s14 + $0x348] sm:$0xff]
    %v2610 = vld [vmem:[%s14 + $0x350] sm:$0xff]
    %v2611 = vld [vmem:[%s14 + $0x358] sm:$0xff]
    %v2612 = vld [vmem:[%s14 + $0x360] sm:$0xff]
    %v2613 = vld [vmem:[%s14 + $0x368] sm:$0xff]
    %v2614 = vld [vmem:[%s14 + $0x370] sm:$0xff]
    %v2615 = vld [vmem:[%s14 + $0x378] sm:$0xff]
    %v2616 = vld [vmem:[%s14 + $0x380] sm:$0xff]
    %v2617 = vld [vmem:[%s14 + $0x388] sm:$0xff]
    %v2618 = vld [vmem:[%s14 + $0x390] sm:$0xff]
    %v2619 = vld [vmem:[%s14 + $0x398] sm:$0xff]
    %v2620 = vld [vmem:[%s14 + $0x3a0] sm:$0xff]
    %v2621 = vld [vmem:[%s14 + $0x3a8] sm:$0xff]
    %v2622 = vld [vmem:[%s14 + $0x3b0] sm:$0xff]
    %v2623 = vld [vmem:[%s14 + $0x3b8] sm:$0xff]
    %v2624 = vld [vmem:[%s14 + $0x3c0] sm:$0xff]
    %v2625 = vld [vmem:[%s14 + $0x3c8] sm:$0xff]
    %v2626 = vld [vmem:[%s14 + $0x3d0] sm:$0xff]
    %v2627 = vld [vmem:[%s14 + $0x3d8] sm:$0xff]
    %v2628 = vld [vmem:[%s14 + $0x3e0] sm:$0xff]
    %v2629 = vld [vmem:[%s14 + $0x3e8] sm:$0xff]
    %v2630 = vld [vmem:[%s14 + $0x3f0] sm:$0xff]
    %v2631 = vld [vmem:[%s14 + $0x3f8] sm:$0xff]
    %v2632 = vpack.c.bf16 %v2508, %v2504
    %v2633 = vpack.c.bf16 %v2509, %v2505
    %v2634 = vpack.c.bf16 %v2510, %v2506
    %v2635 = vpack.c.bf16 %v2511, %v2507
    %v2636 = vpack.c.bf16 %v2516, %v2512
    %v2637 = vpack.c.bf16 %v2517, %v2513
    %v2638 = vpack.c.bf16 %v2518, %v2514
    %v2639 = vpack.c.bf16 %v2519, %v2515
    %v2640 = vpack.c.bf16 %v2524, %v2520
    %v2641 = vpack.c.bf16 %v2525, %v2521
    %v2642 = vpack.c.bf16 %v2526, %v2522
    %v2643 = vpack.c.bf16 %v2527, %v2523
    %v2644 = vpack.c.bf16 %v2532, %v2528
    %v2645 = vpack.c.bf16 %v2533, %v2529
    %v2646 = vpack.c.bf16 %v2534, %v2530
    %v2647 = vpack.c.bf16 %v2535, %v2531
    %v2648 = vpack.c.bf16 %v2540, %v2536
    %v2649 = vpack.c.bf16 %v2541, %v2537
    %v2650 = vpack.c.bf16 %v2542, %v2538
    %v2651 = vpack.c.bf16 %v2543, %v2539
    %v2652 = vpack.c.bf16 %v2548, %v2544
    %v2653 = vpack.c.bf16 %v2549, %v2545
    %v2654 = vpack.c.bf16 %v2550, %v2546
    %v2655 = vpack.c.bf16 %v2551, %v2547
    %v2656 = vpack.c.bf16 %v2556, %v2552
    %v2657 = vpack.c.bf16 %v2557, %v2553
    %v2658 = vpack.c.bf16 %v2558, %v2554
    %v2659 = vpack.c.bf16 %v2559, %v2555
    %v2660 = vpack.c.bf16 %v2564, %v2560
    %v2661 = vpack.c.bf16 %v2565, %v2561
    %v2662 = vpack.c.bf16 %v2566, %v2562
    %v2663 = vpack.c.bf16 %v2567, %v2563
    %v2664 = vpack.c.bf16 %v2572, %v2568
    %v2665 = vpack.c.bf16 %v2573, %v2569
    %v2666 = vpack.c.bf16 %v2574, %v2570
    %v2667 = vpack.c.bf16 %v2575, %v2571
    %v2668 = vpack.c.bf16 %v2580, %v2576
    %v2669 = vpack.c.bf16 %v2581, %v2577
    %v2670 = vpack.c.bf16 %v2582, %v2578
    %v2671 = vpack.c.bf16 %v2583, %v2579
    %v2672 = vpack.c.bf16 %v2588, %v2584
    %v2673 = vpack.c.bf16 %v2589, %v2585
    %v2674 = vpack.c.bf16 %v2590, %v2586
    %v2675 = vpack.c.bf16 %v2591, %v2587
    %v2676 = vpack.c.bf16 %v2596, %v2592
    %v2677 = vpack.c.bf16 %v2597, %v2593
    %v2678 = vpack.c.bf16 %v2598, %v2594
    %v2679 = vpack.c.bf16 %v2599, %v2595
    %v2680 = vpack.c.bf16 %v2604, %v2600
    %v2681 = vpack.c.bf16 %v2605, %v2601
    %v2682 = vpack.c.bf16 %v2606, %v2602
    %v2683 = vpack.c.bf16 %v2607, %v2603
    %v2684 = vpack.c.bf16 %v2612, %v2608
    %v2685 = vpack.c.bf16 %v2613, %v2609
    %v2686 = vpack.c.bf16 %v2614, %v2610
    %v2687 = vpack.c.bf16 %v2615, %v2611
    %v2688 = vpack.c.bf16 %v2620, %v2616
    %v2689 = vpack.c.bf16 %v2621, %v2617
    %v2690 = vpack.c.bf16 %v2622, %v2618
    %v2691 = vpack.c.bf16 %v2623, %v2619
    %v2692 = vpack.c.bf16 %v2628, %v2624
    %v2693 = vpack.c.bf16 %v2629, %v2625
    %v2694 = vpack.c.bf16 %v2630, %v2626
    %v2695 = vpack.c.bf16 %v2631, %v2627
    %2696 = vmatprep.subr.bf16.mxu0 %v2633
    %2697 = vmatpush1.bf16.msra.mxu0 %v2632
    %2698 = vmatprep.subr.bf16.mxu0 %v2637
    %2699 = vmatpush1.bf16.msra.mxu0 %v2636
    %2700 = vmatprep.subr.bf16.mxu0 %v2641
    %2701 = vmatpush1.bf16.msra.mxu0 %v2640
    %2702 = vmatprep.subr.bf16.mxu0 %v2645
    %2703 = vmatpush1.bf16.msra.mxu0 %v2644
    %2704 = vmatprep.subr.bf16.mxu0 %v2649
    %2705 = vmatpush1.bf16.msra.mxu0 %v2648
    %2706 = vmatprep.subr.bf16.mxu0 %v2653
    %2707 = vmatpush1.bf16.msra.mxu0 %v2652
    %2708 = vmatprep.subr.bf16.mxu0 %v2657
    %2709 = vmatpush1.bf16.msra.mxu0 %v2656
    %2710 = vmatprep.subr.bf16.mxu0 %v2661
    %2711 = vmatpush1.bf16.msra.mxu0 %v2660
    %2712 = vmatprep.subr.bf16.mxu0 %v2665
    %2713 = vmatpush1.bf16.msra.mxu0 %v2664
    %2714 = vmatprep.subr.bf16.mxu0 %v2669
    %2715 = vmatpush1.bf16.msra.mxu0 %v2668
    %2716 = vmatprep.subr.bf16.mxu0 %v2673
    %2717 = vmatpush1.bf16.msra.mxu0 %v2672
    %2718 = vmatprep.subr.bf16.mxu0 %v2677
    %2719 = vmatpush1.bf16.msra.mxu0 %v2676
    %2720 = vmatprep.subr.bf16.mxu0 %v2681
    %2721 = vmatpush1.bf16.msra.mxu0 %v2680
    %2722 = vmatprep.subr.bf16.mxu0 %v2685
    %2723 = vmatpush1.bf16.msra.mxu0 %v2684
    %2724 = vmatprep.subr.bf16.mxu0 %v2689
    %2725 = vmatpush1.bf16.msra.mxu0 %v2688
    %2726 = vmatprep.subr.bf16.mxu0 %v2693
    %2727 = vmatpush1.bf16.msra.mxu0 %v2692
    %2728 = vmatprep.mubr.bf16.mxu0 %v2503
    %2729 = vmatmul.mubr.bf16.gmra.mrb[0].mxu0 %v2502
    %v2730 = vpop.f32.mrb[0].mxu0
    %v2731 = vadd.f32 0.0, %v2730
    %v2732 = vpop.f32.mrb[0].mxu0
    %v2733 = vadd.f32 0.0, %v2732
    %v2734 = vpop.f32.mrb[0].mxu0
    %v2735 = vpop.f32.mrb[0].mxu0
    %2736 = vdwg.mxu0
    %2737 = vmatprep.subr.bf16.mxu0 %v2635
    %2738 = vmatpush1.bf16.msra.mxu0 %v2634
    %2739 = vmatprep.subr.bf16.mxu0 %v2639
    %2740 = vmatpush1.bf16.msra.mxu0 %v2638
    %2741 = vmatprep.subr.bf16.mxu0 %v2643
    %2742 = vmatpush1.bf16.msra.mxu0 %v2642
    %2743 = vmatprep.subr.bf16.mxu0 %v2647
    %2744 = vmatpush1.bf16.msra.mxu0 %v2646
    %2745 = vmatprep.subr.bf16.mxu0 %v2651
    %2746 = vmatpush1.bf16.msra.mxu0 %v2650
    %2747 = vmatprep.subr.bf16.mxu0 %v2655
    %2748 = vmatpush1.bf16.msra.mxu0 %v2654
    %2749 = vmatprep.subr.bf16.mxu0 %v2659
    %2750 = vmatpush1.bf16.msra.mxu0 %v2658
    %2751 = vmatprep.subr.bf16.mxu0 %v2663
    %2752 = vmatpush1.bf16.msra.mxu0 %v2662
    %2753 = vmatprep.subr.bf16.mxu0 %v2667
    %2754 = vmatpush1.bf16.msra.mxu0 %v2666
    %2755 = vmatprep.subr.bf16.mxu0 %v2671
    %2756 = vmatpush1.bf16.msra.mxu0 %v2670
    %2757 = vmatprep.subr.bf16.mxu0 %v2675
    %2758 = vmatpush1.bf16.msra.mxu0 %v2674
    %2759 = vmatprep.subr.bf16.mxu0 %v2679
    %2760 = vmatpush1.bf16.msra.mxu0 %v2678
    %2761 = vmatprep.subr.bf16.mxu0 %v2683
    %2762 = vmatpush1.bf16.msra.mxu0 %v2682
    %2763 = vmatprep.subr.bf16.mxu0 %v2687
    %2764 = vmatpush1.bf16.msra.mxu0 %v2686
    %2765 = vmatprep.subr.bf16.mxu0 %v2691
    %2766 = vmatpush1.bf16.msra.mxu0 %v2690
    %2767 = vmatprep.subr.bf16.mxu0 %v2695
    %2768 = vmatpush1.bf16.msra.mxu0 %v2694
    %2769 = vmatprep.mubr.bf16.mxu0 %v2503
    %2770 = vmatmul.mubr.bf16.gmra.mrb[0].mxu0 %v2502
    %v2771 = vpop.f32.mrb[0].mxu0
    %v2772 = vadd.f32 0.0, %v2771
    %v2773 = vpop.f32.mrb[0].mxu0
    %v2774 = vadd.f32 0.0, %v2773
    %v2775 = vpop.f32.mrb[0].mxu0
    %v2776 = vpop.f32.mrb[0].mxu0
    %2777 = vdwg.mxu0
    %v2778 = vrot.slane %v2731, 4
    %v2779 = vadd.f32 %v2731, %v2778
    %v2780 = vrot.slane %v2779, 2
    %v2781 = vadd.f32 %v2779, %v2780
    %v2782 = vrot.slane %v2781, 1
    %v2783 = vadd.f32 %v2781, %v2782
    %v2784 = vrot.slane %v2733, 4
    %v2785 = vadd.f32 %v2733, %v2784
    %v2786 = vrot.slane %v2785, 2
    %v2787 = vadd.f32 %v2785, %v2786
    %v2788 = vrot.slane %v2787, 1
    %v2789 = vadd.f32 %v2787, %v2788
    %v2790 = vrot.slane %v2772, 4
    %v2791 = vadd.f32 %v2772, %v2790
    %v2792 = vrot.slane %v2791, 2
    %v2793 = vadd.f32 %v2791, %v2792
    %v2794 = vrot.slane %v2793, 1
    %v2795 = vadd.f32 %v2793, %v2794
    %v2796 = vrot.slane %v2774, 4
    %v2797 = vadd.f32 %v2774, %v2796
    %v2798 = vrot.slane %v2797, 2
    %v2799 = vadd.f32 %v2797, %v2798
    %v2800 = vrot.slane %v2799, 1
    %v2801 = vadd.f32 %v2799, %v2800
    %v2802 = vmul.f32 %v2783, %v955
    %v2803 = vmul.f32 %v2789, %v955
    %v2804 = vmul.f32 %v2795, %v955
    %v2805 = vmul.f32 %v2801, %v955
    %v2806 = vsub.f32 %v2731, %v2802
    %v2807 = vsub.f32 %v2733, %v2803
    %v2808 = vsub.f32 %v2772, %v2804
    %v2809 = vsub.f32 %v2774, %v2805
    %v2810 = vmul.f32 %v2806, %v2806
    %v2811 = vmul.f32 %v2807, %v2807
    %v2812 = vmul.f32 %v2808, %v2808
    %v2813 = vmul.f32 %v2809, %v2809
    %v2814 = vrot.slane %v2810, 4
    %v2815 = vadd.f32 %v2810, %v2814
    %v2816 = vrot.slane %v2815, 2
    %v2817 = vadd.f32 %v2815, %v2816
    %v2818 = vrot.slane %v2817, 1
    %v2819 = vadd.f32 %v2817, %v2818
    %v2820 = vrot.slane %v2811, 4
    %v2821 = vadd.f32 %v2811, %v2820
    %v2822 = vrot.slane %v2821, 2
    %v2823 = vadd.f32 %v2821, %v2822
    %v2824 = vrot.slane %v2823, 1
    %v2825 = vadd.f32 %v2823, %v2824
    %v2826 = vrot.slane %v2812, 4
    %v2827 = vadd.f32 %v2812, %v2826
    %v2828 = vrot.slane %v2827, 2
    %v2829 = vadd.f32 %v2827, %v2828
    %v2830 = vrot.slane %v2829, 1
    %v2831 = vadd.f32 %v2829, %v2830
    %v2832 = vrot.slane %v2813, 4
    %v2833 = vadd.f32 %v2813, %v2832
    %v2834 = vrot.slane %v2833, 2
    %v2835 = vadd.f32 %v2833, %v2834
    %v2836 = vrot.slane %v2835, 1
    %v2837 = vadd.f32 %v2835, %v2836
    %v2838 = vmul.f32 %v2819, %v955
    %v2839 = vmul.f32 %v2825, %v955
    %v2840 = vmul.f32 %v2831, %v955
    %v2841 = vmul.f32 %v2837, %v955
    %v2842 = vadd.f32 %v2838, 1e-05
    %v2843 = vadd.f32 %v2839, 1e-05
    %v2844 = vadd.f32 %v2840, 1e-05
    %v2845 = vadd.f32 %v2841, 1e-05
    %v2846 = vrsqrt.pop %v2842
    %v2847 = vrsqrt.pop %v2843
    %v2848 = vrsqrt.pop %v2844
    %v2849 = vrsqrt.pop %v2845
    %v2850 = vmul.f32 %v2806, %v2846
    %v2851 = vmul.f32 %v2807, %v2847
    %v2852 = vmul.f32 %v2808, %v2848
    %v2853 = vmul.f32 %v2809, %v2849
    %v2854 = vld [vmem:[%s15] sm:$0xf]
    %v2856 = vlaneseq
    %v2857 = vshrl.u32 %v2856, 7
    %v2858 = vsub.s32 0, %v2857
    %v2859 = vrot.slane %v2854, %v2858
    %v2860 = vlaneseq
    %v2861 = vshrl.u32 %v2860, 7
    %v2862 = vsub.s32 1, %v2861
    %v2863 = vrot.slane %v2854, %v2862
    %v2864 = vlaneseq
    %v2865 = vshrl.u32 %v2864, 7
    %v2866 = vsub.s32 2, %v2865
    %v2867 = vrot.slane %v2854, %v2866
    %v2868 = vlaneseq
    %v2869 = vshrl.u32 %v2868, 7
    %v2870 = vsub.s32 3, %v2869
    %v2871 = vrot.slane %v2854, %v2870
    %v2876 = vmul.f32 %v2850, %v2859
    %v2877 = vmul.f32 %v2851, %v2863
    %v2878 = vmul.f32 %v2852, %v2867
    %v2879 = vmul.f32 %v2853, %v2871
    %v2880 = vld [vmem:[%s16] sm:$0xf]
    %v2882 = vlaneseq
    %v2883 = vshrl.u32 %v2882, 7
    %v2884 = vsub.s32 0, %v2883
    %v2885 = vrot.slane %v2880, %v2884
    %v2886 = vlaneseq
    %v2887 = vshrl.u32 %v2886, 7
    %v2888 = vsub.s32 1, %v2887
    %v2889 = vrot.slane %v2880, %v2888
    %v2890 = vlaneseq
    %v2891 = vshrl.u32 %v2890, 7
    %v2892 = vsub.s32 2, %v2891
    %v2893 = vrot.slane %v2880, %v2892
    %v2894 = vlaneseq
    %v2895 = vshrl.u32 %v2894, 7
    %v2896 = vsub.s32 3, %v2895
    %v2897 = vrot.slane %v2880, %v2896
    %v2902 = vadd.f32 %v2876, %v2885
    %v2903 = vadd.f32 %v2877, %v2889
    %v2904 = vadd.f32 %v2878, %v2893
    %v2905 = vadd.f32 %v2879, %v2897
    %v2906 = vmax.f32 %v2902, 0.0
    %v2907 = vmax.f32 %v2903, 0.0
    %v2908 = vmax.f32 %v2904, 0.0
    %v2909 = vmax.f32 %v2905, 0.0
    %v2910 = vpack.c.bf16 %v2906, %v2906
    %v2911 = vpack.c.bf16 %v2907, %v2907
    %v2912 = vpack.c.bf16 %v2908, %v2908
    %v2913 = vpack.c.bf16 %v2909, %v2909
    %v2914 = vld [vmem:[%s17] sm:$0xff]
    %v2915 = vld [vmem:[%s17 + $0x8] sm:$0xff]
    %v2916 = vld [vmem:[%s17 + $0x10] sm:$0xff]
    %v2917 = vld [vmem:[%s17 + $0x18] sm:$0xff]
    %v2918 = vld [vmem:[%s17 + $0x20] sm:$0xff]
    %v2919 = vld [vmem:[%s17 + $0x28] sm:$0xff]
    %v2920 = vld [vmem:[%s17 + $0x30] sm:$0xff]
    %v2921 = vld [vmem:[%s17 + $0x38] sm:$0xff]
    %v2922 = vld [vmem:[%s17 + $0x40] sm:$0xff]
    %v2923 = vld [vmem:[%s17 + $0x48] sm:$0xff]
    %v2924 = vld [vmem:[%s17 + $0x50] sm:$0xff]
    %v2925 = vld [vmem:[%s17 + $0x58] sm:$0xff]
    %v2926 = vld [vmem:[%s17 + $0x60] sm:$0xff]
    %v2927 = vld [vmem:[%s17 + $0x68] sm:$0xff]
    %v2928 = vld [vmem:[%s17 + $0x70] sm:$0xff]
    %v2929 = vld [vmem:[%s17 + $0x78] sm:$0xff]
    %v2930 = vld [vmem:[%s17 + $0x80] sm:$0xff]
    %v2931 = vld [vmem:[%s17 + $0x88] sm:$0xff]
    %v2932 = vld [vmem:[%s17 + $0x90] sm:$0xff]
    %v2933 = vld [vmem:[%s17 + $0x98] sm:$0xff]
    %v2934 = vld [vmem:[%s17 + $0xa0] sm:$0xff]
    %v2935 = vld [vmem:[%s17 + $0xa8] sm:$0xff]
    %v2936 = vld [vmem:[%s17 + $0xb0] sm:$0xff]
    %v2937 = vld [vmem:[%s17 + $0xb8] sm:$0xff]
    %v2938 = vld [vmem:[%s17 + $0xc0] sm:$0xff]
    %v2939 = vld [vmem:[%s17 + $0xc8] sm:$0xff]
    %v2940 = vld [vmem:[%s17 + $0xd0] sm:$0xff]
    %v2941 = vld [vmem:[%s17 + $0xd8] sm:$0xff]
    %v2942 = vld [vmem:[%s17 + $0xe0] sm:$0xff]
    %v2943 = vld [vmem:[%s17 + $0xe8] sm:$0xff]
    %v2944 = vld [vmem:[%s17 + $0xf0] sm:$0xff]
    %v2945 = vld [vmem:[%s17 + $0xf8] sm:$0xff]
    %v2946 = vld [vmem:[%s17 + $0x100] sm:$0xff]
    %v2947 = vld [vmem:[%s17 + $0x108] sm:$0xff]
    %v2948 = vld [vmem:[%s17 + $0x110] sm:$0xff]
    %v2949 = vld [vmem:[%s17 + $0x118] sm:$0xff]
    %v2950 = vld [vmem:[%s17 + $0x120] sm:$0xff]
    %v2951 = vld [vmem:[%s17 + $0x128] sm:$0xff]
    %v2952 = vld [vmem:[%s17 + $0x130] sm:$0xff]
    %v2953 = vld [vmem:[%s17 + $0x138] sm:$0xff]
    %v2954 = vld [vmem:[%s17 + $0x140] sm:$0xff]
    %v2955 = vld [vmem:[%s17 + $0x148] sm:$0xff]
    %v2956 = vld [vmem:[%s17 + $0x150] sm:$0xff]
    %v2957 = vld [vmem:[%s17 + $0x158] sm:$0xff]
    %v2958 = vld [vmem:[%s17 + $0x160] sm:$0xff]
    %v2959 = vld [vmem:[%s17 + $0x168] sm:$0xff]
    %v2960 = vld [vmem:[%s17 + $0x170] sm:$0xff]
    %v2961 = vld [vmem:[%s17 + $0x178] sm:$0xff]
    %v2962 = vld [vmem:[%s17 + $0x180] sm:$0xff]
    %v2963 = vld [vmem:[%s17 + $0x188] sm:$0xff]
    %v2964 = vld [vmem:[%s17 + $0x190] sm:$0xff]
    %v2965 = vld [vmem:[%s17 + $0x198] sm:$0xff]
    %v2966 = vld [vmem:[%s17 + $0x1a0] sm:$0xff]
    %v2967 = vld [vmem:[%s17 + $0x1a8] sm:$0xff]
    %v2968 = vld [vmem:[%s17 + $0x1b0] sm:$0xff]
    %v2969 = vld [vmem:[%s17 + $0x1b8] sm:$0xff]
    %v2970 = vld [vmem:[%s17 + $0x1c0] sm:$0xff]
    %v2971 = vld [vmem:[%s17 + $0x1c8] sm:$0xff]
    %v2972 = vld [vmem:[%s17 + $0x1d0] sm:$0xff]
    %v2973 = vld [vmem:[%s17 + $0x1d8] sm:$0xff]
    %v2974 = vld [vmem:[%s17 + $0x1e0] sm:$0xff]
    %v2975 = vld [vmem:[%s17 + $0x1e8] sm:$0xff]
    %v2976 = vld [vmem:[%s17 + $0x1f0] sm:$0xff]
    %v2977 = vld [vmem:[%s17 + $0x1f8] sm:$0xff]
    %v2978 = vld [vmem:[%s17 + $0x200] sm:$0xff]
    %v2979 = vld [vmem:[%s17 + $0x208] sm:$0xff]
    %v2980 = vld [vmem:[%s17 + $0x210] sm:$0xff]
    %v2981 = vld [vmem:[%s17 + $0x218] sm:$0xff]
    %v2982 = vld [vmem:[%s17 + $0x220] sm:$0xff]
    %v2983 = vld [vmem:[%s17 + $0x228] sm:$0xff]
    %v2984 = vld [vmem:[%s17 + $0x230] sm:$0xff]
    %v2985 = vld [vmem:[%s17 + $0x238] sm:$0xff]
    %v2986 = vld [vmem:[%s17 + $0x240] sm:$0xff]
    %v2987 = vld [vmem:[%s17 + $0x248] sm:$0xff]
    %v2988 = vld [vmem:[%s17 + $0x250] sm:$0xff]
    %v2989 = vld [vmem:[%s17 + $0x258] sm:$0xff]
    %v2990 = vld [vmem:[%s17 + $0x260] sm:$0xff]
    %v2991 = vld [vmem:[%s17 + $0x268] sm:$0xff]
    %v2992 = vld [vmem:[%s17 + $0x270] sm:$0xff]
    %v2993 = vld [vmem:[%s17 + $0x278] sm:$0xff]
    %v2994 = vld [vmem:[%s17 + $0x280] sm:$0xff]
    %v2995 = vld [vmem:[%s17 + $0x288] sm:$0xff]
    %v2996 = vld [vmem:[%s17 + $0x290] sm:$0xff]
    %v2997 = vld [vmem:[%s17 + $0x298] sm:$0xff]
    %v2998 = vld [vmem:[%s17 + $0x2a0] sm:$0xff]
    %v2999 = vld [vmem:[%s17 + $0x2a8] sm:$0xff]
    %v3000 = vld [vmem:[%s17 + $0x2b0] sm:$0xff]
    %v3001 = vld [vmem:[%s17 + $0x2b8] sm:$0xff]
    %v3002 = vld [vmem:[%s17 + $0x2c0] sm:$0xff]
    %v3003 = vld [vmem:[%s17 + $0x2c8] sm:$0xff]
    %v3004 = vld [vmem:[%s17 + $0x2d0] sm:$0xff]
    %v3005 = vld [vmem:[%s17 + $0x2d8] sm:$0xff]
    %v3006 = vld [vmem:[%s17 + $0x2e0] sm:$0xff]
    %v3007 = vld [vmem:[%s17 + $0x2e8] sm:$0xff]
    %v3008 = vld [vmem:[%s17 + $0x2f0] sm:$0xff]
    %v3009 = vld [vmem:[%s17 + $0x2f8] sm:$0xff]
    %v3010 = vld [vmem:[%s17 + $0x300] sm:$0xff]
    %v3011 = vld [vmem:[%s17 + $0x308] sm:$0xff]
    %v3012 = vld [vmem:[%s17 + $0x310] sm:$0xff]
    %v3013 = vld [vmem:[%s17 + $0x318] sm:$0xff]
    %v3014 = vld [vmem:[%s17 + $0x320] sm:$0xff]
    %v3015 = vld [vmem:[%s17 + $0x328] sm:$0xff]
    %v3016 = vld [vmem:[%s17 + $0x330] sm:$0xff]
    %v3017 = vld [vmem:[%s17 + $0x338] sm:$0xff]
    %v3018 = vld [vmem:[%s17 + $0x340] sm:$0xff]
    %v3019 = vld [vmem:[%s17 + $0x348] sm:$0xff]
    %v3020 = vld [vmem:[%s17 + $0x350] sm:$0xff]
    %v3021 = vld [vmem:[%s17 + $0x358] sm:$0xff]
    %v3022 = vld [vmem:[%s17 + $0x360] sm:$0xff]
    %v3023 = vld [vmem:[%s17 + $0x368] sm:$0xff]
    %v3024 = vld [vmem:[%s17 + $0x370] sm:$0xff]
    %v3025 = vld [vmem:[%s17 + $0x378] sm:$0xff]
    %v3026 = vld [vmem:[%s17 + $0x380] sm:$0xff]
    %v3027 = vld [vmem:[%s17 + $0x388] sm:$0xff]
    %v3028 = vld [vmem:[%s17 + $0x390] sm:$0xff]
    %v3029 = vld [vmem:[%s17 + $0x398] sm:$0xff]
    %v3030 = vld [vmem:[%s17 + $0x3a0] sm:$0xff]
    %v3031 = vld [vmem:[%s17 + $0x3a8] sm:$0xff]
    %v3032 = vld [vmem:[%s17 + $0x3b0] sm:$0xff]
    %v3033 = vld [vmem:[%s17 + $0x3b8] sm:$0xff]
    %v3034 = vld [vmem:[%s17 + $0x3c0] sm:$0xff]
    %v3035 = vld [vmem:[%s17 + $0x3c8] sm:$0xff]
    %v3036 = vld [vmem:[%s17 + $0x3d0] sm:$0xff]
    %v3037 = vld [vmem:[%s17 + $0x3d8] sm:$0xff]
    %v3038 = vld [vmem:[%s17 + $0x3e0] sm:$0xff]
    %v3039 = vld [vmem:[%s17 + $0x3e8] sm:$0xff]
    %v3040 = vld [vmem:[%s17 + $0x3f0] sm:$0xff]
    %v3041 = vld [vmem:[%s17 + $0x3f8] sm:$0xff]
    %v3042 = vpack.c.bf16 %v2916, %v2914
    %v3043 = vpack.c.bf16 %v2917, %v2915
    %v3044 = vpack.c.bf16 %v2920, %v2918
    %v3045 = vpack.c.bf16 %v2921, %v2919
    %v3046 = vpack.c.bf16 %v2924, %v2922
    %v3047 = vpack.c.bf16 %v2925, %v2923
    %v3048 = vpack.c.bf16 %v2928, %v2926
    %v3049 = vpack.c.bf16 %v2929, %v2927
    %v3050 = vpack.c.bf16 %v2932, %v2930
    %v3051 = vpack.c.bf16 %v2933, %v2931
    %v3052 = vpack.c.bf16 %v2936, %v2934
    %v3053 = vpack.c.bf16 %v2937, %v2935
    %v3054 = vpack.c.bf16 %v2940, %v2938
    %v3055 = vpack.c.bf16 %v2941, %v2939
    %v3056 = vpack.c.bf16 %v2944, %v2942
    %v3057 = vpack.c.bf16 %v2945, %v2943
    %v3058 = vpack.c.bf16 %v2948, %v2946
    %v3059 = vpack.c.bf16 %v2949, %v2947
    %v3060 = vpack.c.bf16 %v2952, %v2950
    %v3061 = vpack.c.bf16 %v2953, %v2951
    %v3062 = vpack.c.bf16 %v2956, %v2954
    %v3063 = vpack.c.bf16 %v2957, %v2955
    %v3064 = vpack.c.bf16 %v2960, %v2958
    %v3065 = vpack.c.bf16 %v2961, %v2959
    %v3066 = vpack.c.bf16 %v2964, %v2962
    %v3067 = vpack.c.bf16 %v2965, %v2963
    %v3068 = vpack.c.bf16 %v2968, %v2966
    %v3069 = vpack.c.bf16 %v2969, %v2967
    %v3070 = vpack.c.bf16 %v2972, %v2970
    %v3071 = vpack.c.bf16 %v2973, %v2971
    %v3072 = vpack.c.bf16 %v2976, %v2974
    %v3073 = vpack.c.bf16 %v2977, %v2975
    %v3074 = vpack.c.bf16 %v2980, %v2978
    %v3075 = vpack.c.bf16 %v2981, %v2979
    %v3076 = vpack.c.bf16 %v2984, %v2982
    %v3077 = vpack.c.bf16 %v2985, %v2983
    %v3078 = vpack.c.bf16 %v2988, %v2986
    %v3079 = vpack.c.bf16 %v2989, %v2987
    %v3080 = vpack.c.bf16 %v2992, %v2990
    %v3081 = vpack.c.bf16 %v2993, %v2991
    %v3082 = vpack.c.bf16 %v2996, %v2994
    %v3083 = vpack.c.bf16 %v2997, %v2995
    %v3084 = vpack.c.bf16 %v3000, %v2998
    %v3085 = vpack.c.bf16 %v3001, %v2999
    %v3086 = vpack.c.bf16 %v3004, %v3002
    %v3087 = vpack.c.bf16 %v3005, %v3003
    %v3088 = vpack.c.bf16 %v3008, %v3006
    %v3089 = vpack.c.bf16 %v3009, %v3007
    %v3090 = vpack.c.bf16 %v3012, %v3010
    %v3091 = vpack.c.bf16 %v3013, %v3011
    %v3092 = vpack.c.bf16 %v3016, %v3014
    %v3093 = vpack.c.bf16 %v3017, %v3015
    %v3094 = vpack.c.bf16 %v3020, %v3018
    %v3095 = vpack.c.bf16 %v3021, %v3019
    %v3096 = vpack.c.bf16 %v3024, %v3022
    %v3097 = vpack.c.bf16 %v3025, %v3023
    %v3098 = vpack.c.bf16 %v3028, %v3026
    %v3099 = vpack.c.bf16 %v3029, %v3027
    %v3100 = vpack.c.bf16 %v3032, %v3030
    %v3101 = vpack.c.bf16 %v3033, %v3031
    %v3102 = vpack.c.bf16 %v3036, %v3034
    %v3103 = vpack.c.bf16 %v3037, %v3035
    %v3104 = vpack.c.bf16 %v3040, %v3038
    %v3105 = vpack.c.bf16 %v3041, %v3039
    %3106 = vmatprep.subr.bf16.mxu0 %v3043
    %3107 = vmatpush1.bf16.msra.mxu0 %v3042
    %3108 = vmatprep.subr.bf16.mxu0 %v3045
    %3109 = vmatpush1.bf16.msra.mxu0 %v3044
    %3110 = vmatprep.subr.bf16.mxu0 %v3047
    %3111 = vmatpush1.bf16.msra.mxu0 %v3046
    %3112 = vmatprep.subr.bf16.mxu0 %v3049
    %3113 = vmatpush1.bf16.msra.mxu0 %v3048
    %3114 = vmatprep.subr.bf16.mxu0 %v3051
    %3115 = vmatpush1.bf16.msra.mxu0 %v3050
    %3116 = vmatprep.subr.bf16.mxu0 %v3053
    %3117 = vmatpush1.bf16.msra.mxu0 %v3052
    %3118 = vmatprep.subr.bf16.mxu0 %v3055
    %3119 = vmatpush1.bf16.msra.mxu0 %v3054
    %3120 = vmatprep.subr.bf16.mxu0 %v3057
    %3121 = vmatpush1.bf16.msra.mxu0 %v3056
    %3122 = vmatprep.subr.bf16.mxu0 %v3059
    %3123 = vmatpush1.bf16.msra.mxu0 %v3058
    %3124 = vmatprep.subr.bf16.mxu0 %v3061
    %3125 = vmatpush1.bf16.msra.mxu0 %v3060
    %3126 = vmatprep.subr.bf16.mxu0 %v3063
    %3127 = vmatpush1.bf16.msra.mxu0 %v3062
    %3128 = vmatprep.subr.bf16.mxu0 %v3065
    %3129 = vmatpush1.bf16.msra.mxu0 %v3064
    %3130 = vmatprep.subr.bf16.mxu0 %v3067
    %3131 = vmatpush1.bf16.msra.mxu0 %v3066
    %3132 = vmatprep.subr.bf16.mxu0 %v3069
    %3133 = vmatpush1.bf16.msra.mxu0 %v3068
    %3134 = vmatprep.subr.bf16.mxu0 %v3071
    %3135 = vmatpush1.bf16.msra.mxu0 %v3070
    %3136 = vmatprep.subr.bf16.mxu0 %v3073
    %3137 = vmatpush1.bf16.msra.mxu0 %v3072
    %3138 = vmatprep.mubr.bf16.mxu0 %v2911
    %3139 = vmatmul.mubr.bf16.gmra.mrb[0].mxu0 %v2910
    %v3140 = vpop.f32.mrb[0].mxu0
    %v3141 = vadd.f32 0.0, %v3140
    %v3142 = vpop.f32.mrb[0].mxu0
    %v3143 = vadd.f32 0.0, %v3142
    %v3144 = vpop.f32.mrb[0].mxu0
    %v3145 = vpop.f32.mrb[0].mxu0
    %3146 = vdwg.mxu0
    %3147 = vmatprep.subr.bf16.mxu0 %v3075
    %3148 = vmatpush1.bf16.msra.mxu0 %v3074
    %3149 = vmatprep.subr.bf16.mxu0 %v3077
    %3150 = vmatpush1.bf16.msra.mxu0 %v3076
    %3151 = vmatprep.subr.bf16.mxu0 %v3079
    %3152 = vmatpush1.bf16.msra.mxu0 %v3078
    %3153 = vmatprep.subr.bf16.mxu0 %v3081
    %3154 = vmatpush1.bf16.msra.mxu0 %v3080
    %3155 = vmatprep.subr.bf16.mxu0 %v3083
    %3156 = vmatpush1.bf16.msra.mxu0 %v3082
    %3157 = vmatprep.subr.bf16.mxu0 %v3085
    %3158 = vmatpush1.bf16.msra.mxu0 %v3084
    %3159 = vmatprep.subr.bf16.mxu0 %v3087
    %3160 = vmatpush1.bf16.msra.mxu0 %v3086
    %3161 = vmatprep.subr.bf16.mxu0 %v3089
    %3162 = vmatpush1.bf16.msra.mxu0 %v3088
    %3163 = vmatprep.subr.bf16.mxu0 %v3091
    %3164 = vmatpush1.bf16.msra.mxu0 %v3090
    %3165 = vmatprep.subr.bf16.mxu0 %v3093
    %3166 = vmatpush1.bf16.msra.mxu0 %v3092
    %3167 = vmatprep.subr.bf16.mxu0 %v3095
    %3168 = vmatpush1.bf16.msra.mxu0 %v3094
    %3169 = vmatprep.subr.bf16.mxu0 %v3097
    %3170 = vmatpush1.bf16.msra.mxu0 %v3096
    %3171 = vmatprep.subr.bf16.mxu0 %v3099
    %3172 = vmatpush1.bf16.msra.mxu0 %v3098
    %3173 = vmatprep.subr.bf16.mxu0 %v3101
    %3174 = vmatpush1.bf16.msra.mxu0 %v3100
    %3175 = vmatprep.subr.bf16.mxu0 %v3103
    %3176 = vmatpush1.bf16.msra.mxu0 %v3102
    %3177 = vmatprep.subr.bf16.mxu0 %v3105
    %3178 = vmatpush1.bf16.msra.mxu0 %v3104
    %3179 = vmatprep.mubr.bf16.mxu0 %v2913
    %3180 = vmatmul.mubr.bf16.gmra.mrb[0].mxu0 %v2912
    %v3181 = vpop.f32.mrb[0].mxu0
    %v3182 = vadd.f32 %v3141, %v3181
    %v3183 = vpop.f32.mrb[0].mxu0
    %v3184 = vadd.f32 %v3143, %v3183
    %v3185 = vpop.f32.mrb[0].mxu0
    %v3186 = vpop.f32.mrb[0].mxu0
    %3187 = vdwg.mxu0
    %v3188 = vmul.f32 %v3182, %v3182
    %v3189 = vmul.f32 %v3184, %v3184
    %v3190 = vadd.f32 %v3188, %v3189
    %3191 = vadd.xlane.f32.xlu0 %v3190
    %v3192 = vpop.xlane.xlu0 %3191
    %v3193 = vmax.f32 %v3192, 1e-24
    %v3194 = vrsqrt.pop %v3193
    %v3195 = vmul.f32 %v3182, %v3194
    %v3196 = vmul.f32 %v3184, %v3194
    %v3197 = vmul.f32 %v2022, %v3195
    %v3198 = vmul.f32 %v2024, %v3196
    %v3199 = vadd.f32 %v3197, %v3198
    %3200 = vadd.xlane.f32.xlu0 %v3199
    %v3201 = vpop.xlane.xlu0 %3200
    %v3202 = vmul.f32 %v2022, %v2022
    %v3203 = vmul.f32 %v2024, %v2024
    %v3204 = vadd.f32 %v3202, %v3203
    %3205 = vadd.xlane.f32.xlu0 %v3204
    %v3206 = vpop.xlane.xlu0 %3205
    %v3207 = vrsqrt.pop %v3206
    %v3208 = vmul.f32 %v3206, %v3207
    %vm3209 = vcmp.eq.f32.partialorder %v3206, inf
    %v3210 = vsel %vm3209, %v3206, %v3208
    %vm3211 = vcmp.eq.f32.partialorder %v3206, 0.0
    %v3212 = vand.u32 %v3206, 2147483648
    %v3213 = vsel %vm3211, %v3212, %v3210
    %v3214 = vmax.f32 %v3213, 1e-08
    %v3215 = vrcp.pop %v3214
    %v3216 = vmul.f32 %v3201, %v3215
    %v3217 = vsel %vm640, %v3216, 0.0
    %3218 = vadd.xlane.f32.xlu0 %v3217
    %v3219 = vpop.xlane.xlu0 %3218
    %v3220 = vrot.slane %v3219, 4
    %v3221 = vadd.f32 %v3219, %v3220
    %v3222 = vrot.slane %v3221, 2
    %v3223 = vadd.f32 %v3221, %v3222
    %v3224 = vrot.slane %v3223, 1
    %v3225 = vadd.f32 %v3223, %v3224
    %s3226 = vtos %v3225
    %v3227 = vrcp.pop 8.0
    %s3228 = vtos %v3227
    %s3229 = smul.f32 %s3226, %s3228
    %s3230 = smul.f32 %s3229, 2.0
    %s3231 = ssub.f32 2.0, %s3230
    %s3232 = scalar_lea.smem [#allocation2], 0
    %3233 = sst [smem:[%s3232]] %s3231
    %s3234 = scalar_lea.smem [#allocation4], 0
    %3235 = sst [smem:[%s3234]] %s654
    // Predicated region
    $region74: #{_byol_step.1} parent=1 // pred_check
      _
    $region75: #{_byol_step.1} parent=1 // pred_check_branch
      %3237 = sbr.rel (0) target = $region77
    $region76: #{_byol_step.1} parent=1 // pred_region
      %s3239 = ssub.s32 16, 16
      %3240 = vsyncadd [#allocation3], %s3239
      %3243 = dma.smem_to_hbm [#allocation2], 16, %s18, [#allocation3]
    $region77: #{_byol_step.1} parent=1 // pred_fallthru
      _
    // Predicated region
    $region78: #{_byol_step.1} parent=1 // pred_check
      _
    $region79: #{_byol_step.1} parent=1 // pred_check_branch
      %3245 = sbr.rel (0) target = $region81
    $region80: #{_byol_step.1} parent=1 // pred_region
      %s3247 = ssub.s32 16, 16
      %3248 = vsyncadd [#allocation5], %s3247
      %3251 = dma.smem_to_hbm [#allocation4], 16, %s19, [#allocation5]
    $region81: #{_byol_step.1} parent=1 // pred_fallthru
      _
    // Predicated region
    $region82: #{_byol_step.1} parent=1 // pred_check
      _
    $region83: #{_byol_step.1} parent=1 // pred_check_branch
      %3253 = sbr.rel (0) target = $region85
    $region84: #{_byol_step.1} parent=1 // pred_region
      %3254 = dma.done [#allocation3], 16
    $region85: #{_byol_step.1} parent=1 // pred_fallthru
      _
    // Predicated region
    $region86: #{_byol_step.1} parent=1 // pred_check
      _
    $region87: #{_byol_step.1} parent=1 // pred_check_branch
      %3256 = sbr.rel (0) target = $region89
    $region88: #{_byol_step.1} parent=1 // pred_region
      %3257 = dma.done [#allocation5], 16
    $region89: #{_byol_step.1} parent=1 // pred_fallthru
      _
    %3258 = sfence
    %3259 = vsyncpa [#allocation3], 1
    %3260 = vsyncpa [#allocation5], 1

</llo_original>
